<compile_context>
chip_gen: v5e
topology: v5e:2x2
jax: 0.10.0
libtpu: 0.0.40
codegen_flags: <defaults>
</compile_context>

<pallas_src>
import functools

import numpy as np
import jax
import jax.numpy as jnp
from jax.experimental import pallas as pl
from jax.experimental.pallas import tpu as pltpu


# ----------------------------------------------------------------------------
# Host-side constants (tiny 0/1 matrices, computed once at trace time).
# ----------------------------------------------------------------------------
def _tap_masks(h, w):
    """(9, h*w) 0/1 validity mask per 3x3 tap: mask[t, y*w+x] == 1 iff the
    input pixel (y+di-1, x+dj-1) for tap t = di*3+dj lies inside the image
    (zero padding elsewhere)."""
    m = np.zeros((9, h * w), np.float32)
    for di in range(3):
        for dj in range(3):
            t = di * 3 + dj
            for y in range(h):
                yy = y + di - 1
                if yy < 0 or yy >= h:
                    continue
                for x in range(w):
                    xx = x + dj - 1
                    if 0 <= xx < w:
                        m[t, y * w + x] = 1.0
    return m


def _decimation_matrix(h, w):
    """(h*w, (h//2)*(w//2)) 0/1 matrix selecting the stride-2 output pixels
    (even rows / even cols) of a row-major flattened full-resolution map."""
    ho, wo = h // 2, w // 2
    d = np.zeros((h * w, ho * wo), np.float32)
    for qy in range(ho):
        for qx in range(wo):
            d[(2 * qy) * w + 2 * qx, qy * wo + qx] = 1.0
    return d


# ----------------------------------------------------------------------------
# The single fused Pallas kernel (one grid step == Bb batch elements).
# ----------------------------------------------------------------------------
def _tarn_kernel(*refs, batch_blk, time_steps, layer_dims):
    # ---- unpack refs (order matches the wrapper's `args`) ----
    pos = 0
    x_ref = refs[pos]
    pos += 1
    layer_refs = []
    for (_, _, stride) in layer_dims:
        mask_ref, w9_ref, b_ref = refs[pos], refs[pos + 1], refs[pos + 2]
        pos += 3
        d_ref = None
        if stride == 2:
            d_ref = refs[pos]
            pos += 1
        layer_refs.append((mask_ref, w9_ref, b_ref, d_ref))
    (wb_ref, bb_ref, wt_ref, bt_ref,
     wf1_ref, bf1_ref, wf2_ref, bf2_ref) = refs[pos:pos + 8]
    temb_ref, ce_ref, pred_ref = refs[pos + 8:pos + 11]

    n_frames = batch_blk * time_steps

    # ---- 0. assemble (C0, N*S0) activation, frames ordered (t, b) on lanes.
    #      x arrives f32 from HBM; casts happen on-chip (VPU).
    cols = []
    for t in range(time_steps):
        for b in range(batch_blk):
            cols.append(x_ref[b, t])                           # (C0, S0) f32
    h = cols[0] if len(cols) == 1 else jnp.concatenate(cols, axis=1)

    # ---- 1. spatial encoder: roll-based im2col + ONE weight matmul / layer.
    for (h_in, w_in, stride), (mask_ref, w9_ref, b_ref, d_ref) in zip(
            layer_dims, layer_refs):
        s_in = h_in * w_in
        lanes = n_frames * s_in
        mvals = mask_ref[...]                                  # (9, lanes) 0/1 f32
        taps = []
        for ki in range(3):
            for kj in range(3):
                off = (ki - 1) * w_in + (kj - 1)
                if off == 0:
                    taps.append(h)                             # centre tap: mask==1
                else:
                    rolled = pltpu.roll(h, shift=(-off) % lanes, axis=1)
                    t9 = ki * 3 + kj
                    taps.append(rolled * mvals[t9:t9 + 1, :])
        x9 = jnp.concatenate(taps, axis=0).astype(jnp.bfloat16)  # (9*C_in, lanes)
        acc = jnp.dot(w9_ref[...], x9, preferred_element_type=jnp.float32)
        acc = jnp.maximum(acc + b_ref[...], 0.0)               # f32 bias + ReLU
        if stride == 2:
            # stride-2 lane decimation: per-frame 0/1 selection matmul.
            h_bf = acc.astype(jnp.bfloat16)
            dmat = d_ref[...]                                  # (S_in, S_in//4) bf16
            outs = []
            for n in range(n_frames):
                blk = h_bf[:, n * s_in:(n + 1) * s_in]
                outs.append(jnp.dot(blk, dmat,
                                    preferred_element_type=jnp.float32))
            h = outs[0] if n_frames == 1 else jnp.concatenate(outs, axis=1)
        else:
            h = acc

    hh, ww, st = layer_dims[-1]
    s_cur = (hh // st) * (ww // st)                            # final spatial / frame

    # ---- 2. 1x1 bottleneck on ALL frames at once (spatial embeddings) ----
    s_all = jnp.maximum(
        jnp.dot(wb_ref[...], h.astype(jnp.bfloat16),
                preferred_element_type=jnp.float32) + bb_ref[...], 0.0)

    # ---- 3. temporal residual recurrence (state stays on-chip):
    #      z_0 = relu(Wt s_0 + b);  z_t = relu(Wt z_{t-1} + b + s_t)
    w_blk = batch_blk * s_cur
    zs = []
    z_prev = None
    for t in range(time_steps):
        s_t = s_all[:, t * w_blk:(t + 1) * w_blk]              # (Cb, Bb*S3) f32
        rec_in = s_t.astype(jnp.bfloat16) if z_prev is None else z_prev
        z = jnp.dot(wt_ref[...], rec_in,
                    preferred_element_type=jnp.float32) + bt_ref[...]
        if z_prev is not None:
            z = z + s_t
        z = jnp.maximum(z, 0.0)
        z_prev = z.astype(jnp.bfloat16)
        zs.append(z)

    # ---- 4. lane-dense temporal-embeds writeback (one slab per grid step) ----
    z_cat = zs[0] if time_steps == 1 else jnp.concatenate(zs, axis=1)
    temb_ref[0] = z_cat.astype(temb_ref.dtype)                 # (Cb, T*Bb*S3)

    # ---- 5. fused global-avg-pool + classifier head ----
    inv_pool = 1.0 / float(s_cur)
    m_parts = []
    for t in range(time_steps):
        if batch_blk == 1:
            m_parts.append(jnp.sum(zs[t], axis=1, keepdims=True) * inv_pool)
        else:
            per_b = [jnp.sum(zs[t][:, b * s_cur:(b + 1) * s_cur],
                             axis=1, keepdims=True) * inv_pool
                     for b in range(batch_blk)]
            m_parts.append(jnp.concatenate(per_b, axis=1))
    m_cols = jnp.concatenate(m_parts, axis=0)                  # (T*Cb, Bb) f32
    m_rows = jnp.transpose(m_cols).astype(jnp.bfloat16)        # (Bb, T*Cb)

    class_embed = jnp.maximum(
        jnp.dot(m_rows, wf1_ref[...],
                preferred_element_type=jnp.float32) + bf1_ref[...], 0.0)
    ce_ref[0] = class_embed.astype(ce_ref.dtype)               # (Bb, E) rows
    # TODO(synk): Dropout(classifier_drop_rate) is eval-mode identity here.
    logits = jnp.dot(class_embed.astype(jnp.bfloat16), wf2_ref[...],
                     preferred_element_type=jnp.float32) + bf2_ref[...]
    pred_ref[0] = logits.astype(pred_ref.dtype)                # (Bb, n_cls) rows


def _resident_spec(shape):
    zeros = (0,) * len(shape)
    return pl.BlockSpec(shape, lambda i, _z=zeros: _z)


# ----------------------------------------------------------------------------
# Parameter init (he_init equivalent, deterministic) — same as before.
# ----------------------------------------------------------------------------
def _he_conv(key, kh, kw, cin, cout):
    std = (2.0 / (kh * kw * cin)) ** 0.5
    return jax.random.normal(key, (kh, kw, cin, cout), jnp.float32) * std


def _he_linear(key, fin, fout):
    std = (2.0 / fin) ** 0.5
    return jax.random.normal(key, (fin, fout), jnp.float32) * std


def init_params(key, time_steps, spatial_planes, bottleneck_planes,
                class_embed_planes, num_classes, in_channels):
    keys = iter(jax.random.split(key, len(spatial_planes) + 8))
    params = {"spatial": []}
    cin = in_channels
    for p in spatial_planes:
        params["spatial"].append(
            {"w": _he_conv(next(keys), 3, 3, cin, p),
             "b": jnp.zeros((p,), jnp.float32)})
        cin = p
    params["bottleneck"] = {"w": _he_conv(next(keys), 1, 1, cin, bottleneck_planes),
                            "b": jnp.zeros((bottleneck_planes,), jnp.float32)}
    params["temporal"] = {"w": _he_conv(next(keys), 1, 1, bottleneck_planes,
                                        bottleneck_planes),
                          "b": jnp.zeros((bottleneck_planes,), jnp.float32)}
    class_in = bottleneck_planes * time_steps
    params["fc1"] = {"w": _he_linear(next(keys), class_in, class_embed_planes),
                     "b": jnp.zeros((class_embed_planes,), jnp.float32)}
    params["fc2"] = {"w": _he_linear(next(keys), class_embed_planes, num_classes),
                     "b": jnp.zeros((num_classes,), jnp.float32)}
    return params


# ----------------------------------------------------------------------------
# Forward pass: one pallas_call over the whole network, grid = (B // Bb,).
# ----------------------------------------------------------------------------
def time_aligned_resnet_forward(params, x_btchw, *, time_steps, batch_block=None):
    B, T, C, H, W = x_btchw.shape
    assert T == time_steps

    spatial_layers = params["spatial"]
    cb = params["bottleneck"]["w"].shape[-1]
    e_dim = params["fc1"]["w"].shape[-1]
    nc = params["fc2"]["w"].shape[-1]

    # Batch blocking: flatten Bb*T frames onto the matmul lane axis.  Keep the
    # grid length >= 2 so v7x's two TensorCores can both be used.
    if batch_block is None:
        batch_block = 1
        for cand in (8, 4, 2):
            if B % cand == 0 and B // cand >= 2:
                batch_block = cand
                break
    Bb = batch_block
    assert B % Bb == 0
    G = B // Bb
    N = Bb * T

    # ---- host-side constants + parameter repack (tiny, done once under jit) --
    args = [x_btchw.reshape(B, T, C, H * W)]          # f32; cast inside kernel
    in_specs = [pl.BlockSpec((Bb, T, C, H * W), lambda i: (i, 0, 0, 0))]

    layer_dims = []
    h_cur, w_cur = H, W
    cin = C
    for idx, layer in enumerate(spatial_layers):
        stride = 1 if idx == 0 else 2
        layer_dims.append((h_cur, w_cur, stride))
        cout = layer["w"].shape[-1]
        # per-tap boundary masks, tiled over the Bb*T frames on the lane axis
        mask = np.tile(_tap_masks(h_cur, w_cur), (1, N))         # (9, N*S_in)
        w9 = layer["w"].transpose(3, 0, 1, 2).reshape(cout, 9 * cin)
        args += [jnp.asarray(mask, jnp.float32),
                 w9.astype(jnp.bfloat16),
                 layer["b"].reshape(cout, 1).astype(jnp.float32)]
        if stride == 2:
            args.append(jnp.asarray(_decimation_matrix(h_cur, w_cur),
                                    jnp.bfloat16))
            h_cur //= 2
            w_cur //= 2
        cin = cout
    s_final = h_cur * w_cur

    wb = params["bottleneck"]["w"].reshape(cin, cb).T.astype(jnp.bfloat16)
    bb = params["bottleneck"]["b"].reshape(cb, 1).astype(jnp.float32)
    wt = params["temporal"]["w"].reshape(cb, cb).T.astype(jnp.bfloat16)
    bt = params["temporal"]["b"].reshape(cb, 1).astype(jnp.float32)
    # classifier input flattened time-major (t outer, channel inner)
    wf1 = params["fc1"]["w"].astype(jnp.bfloat16)                # (T*cb, E)
    bf1 = params["fc1"]["b"].reshape(1, e_dim).astype(jnp.float32)
    wf2 = params["fc2"]["w"].astype(jnp.bfloat16)                # (E, n_cls)
    bf2 = params["fc2"]["b"].reshape(1, nc).astype(jnp.float32)
    args += [wb, bb, wt, bt, wf1, bf1, wf2, bf2]

    in_specs += [_resident_spec(a.shape) for a in args[1:]]

    lt = T * Bb * s_final
    temb, ce, pred = pl.pallas_call(
        functools.partial(_tarn_kernel, batch_blk=Bb, time_steps=T,
                          layer_dims=tuple(layer_dims)),
        grid=(G,),
        in_specs=in_specs,
        out_specs=[
            pl.BlockSpec((1, cb, lt), lambda i: (i, 0, 0)),
            pl.BlockSpec((1, Bb, e_dim), lambda i: (i, 0, 0)),
            pl.BlockSpec((1, Bb, nc), lambda i: (i, 0, 0)),
        ],
        out_shape=[
            jax.ShapeDtypeStruct((G, cb, lt), jnp.float32),
            jax.ShapeDtypeStruct((G, Bb, e_dim), jnp.float32),
            jax.ShapeDtypeStruct((G, Bb, nc), jnp.float32),
        ],
        compiler_params=pltpu.CompilerParams(
            dimension_semantics=("parallel",),
            vmem_limit_bytes=32 * 1024 * 1024),
    )(*args)

    # un-interleave the lane-dense slabs (layout plumbing, XLA side)
    temporal_embeds = (temb.reshape(G, cb, T, Bb, s_final)
                           .transpose(0, 3, 2, 1, 4)
                           .reshape(B, T, cb, h_cur, w_cur))
    class_embed = ce.reshape(B, e_dim)
    pred = pred.reshape(B, nc)
    return pred, temporal_embeds, class_embed


# ----------------------------------------------------------------------------
if __name__ == "__main__":
    B, T, C, H, W = 2, 4, 3, 16, 16
    spatial_planes = (8, 16, 32)
    bottleneck_planes = 32
    class_embed_planes = 64
    num_classes = 10

    key = jax.random.PRNGKey(0)
    pkey, xkey = jax.random.split(key)
    params = init_params(pkey, T, spatial_planes, bottleneck_planes,
                         class_embed_planes, num_classes, in_channels=C)
    x = jax.random.normal(xkey, (B, T, C, H, W), jnp.float32)

    fwd = jax.jit(functools.partial(time_aligned_resnet_forward, time_steps=T))
    pred, temporal_embeds, class_embed = fwd(params, x)
    jax.block_until_ready((pred, temporal_embeds, class_embed))

    assert pred.shape == (B, num_classes)
    assert temporal_embeds.shape == (B, T, bottleneck_planes, H // 4, W // 4)
    assert class_embed.shape == (B, class_embed_planes)
    assert bool(jnp.all(jnp.isfinite(pred)))
    assert bool(jnp.all(jnp.isfinite(temporal_embeds)))
    assert bool(jnp.all(jnp.isfinite(class_embed)))
    print("KERNEL_OK")
</pallas_src>

<mosaic_0001>
module attributes {stable_mosaic.version = 11 : i64} {
  func.func @_tarn_kernel(%arg0: i32, %arg1: memref<1x4x3x256xf32, #tpu.memory_space<vmem>>, %arg2: memref<9x1024xf32, #tpu.memory_space<vmem>>, %arg3: memref<8x27xbf16, #tpu.memory_space<vmem>>, %arg4: memref<8x1xf32, #tpu.memory_space<vmem>>, %arg5: memref<9x1024xf32, #tpu.memory_space<vmem>>, %arg6: memref<16x72xbf16, #tpu.memory_space<vmem>>, %arg7: memref<16x1xf32, #tpu.memory_space<vmem>>, %arg8: memref<256x64xbf16, #tpu.memory_space<vmem>>, %arg9: memref<9x256xf32, #tpu.memory_space<vmem>>, %arg10: memref<32x144xbf16, #tpu.memory_space<vmem>>, %arg11: memref<32x1xf32, #tpu.memory_space<vmem>>, %arg12: memref<64x16xbf16, #tpu.memory_space<vmem>>, %arg13: memref<32x32xbf16, #tpu.memory_space<vmem>>, %arg14: memref<32x1xf32, #tpu.memory_space<vmem>>, %arg15: memref<32x32xbf16, #tpu.memory_space<vmem>>, %arg16: memref<32x1xf32, #tpu.memory_space<vmem>>, %arg17: memref<128x64xbf16, #tpu.memory_space<vmem>>, %arg18: memref<1x64xf32, #tpu.memory_space<vmem>>, %arg19: memref<64x10xbf16, #tpu.memory_space<vmem>>, %arg20: memref<1x10xf32, #tpu.memory_space<vmem>>, %arg21: memref<1x32x64xf32, #tpu.memory_space<vmem>>, %arg22: memref<1x1x64xf32, #tpu.memory_space<vmem>>, %arg23: memref<1x1x10xf32, #tpu.memory_space<vmem>>) attributes {dimension_semantics = [#tpu.dimension_semantics<parallel>], iteration_bounds = array<i64: 2>, scalar_prefetch = 0 : i64, scratch_operands = 0 : i64, tpu.core_type = #tpu.core_type<tc>, window_params = [{transform_indices = @transform_0, window_bounds = array<i64: 1, 4, 3, 256>}, {pipeline_mode = #tpu.pipeline_mode<synchronous>, transform_indices = @transform_1, window_bounds = array<i64: 9, 1024>}, {pipeline_mode = #tpu.pipeline_mode<synchronous>, transform_indices = @transform_2, window_bounds = array<i64: 8, 27>}, {pipeline_mode = #tpu.pipeline_mode<synchronous>, transform_indices = @transform_3, window_bounds = array<i64: 8, 1>}, {pipeline_mode = #tpu.pipeline_mode<synchronous>, transform_indices = @transform_4, window_bounds = array<i64: 9, 1024>}, {pipeline_mode = #tpu.pipeline_mode<synchronous>, transform_indices = @transform_5, window_bounds = array<i64: 16, 72>}, {pipeline_mode = #tpu.pipeline_mode<synchronous>, transform_indices = @transform_6, window_bounds = array<i64: 16, 1>}, {pipeline_mode = #tpu.pipeline_mode<synchronous>, transform_indices = @transform_7, window_bounds = array<i64: 256, 64>}, {pipeline_mode = #tpu.pipeline_mode<synchronous>, transform_indices = @transform_8, window_bounds = array<i64: 9, 256>}, {pipeline_mode = #tpu.pipeline_mode<synchronous>, transform_indices = @transform_9, window_bounds = array<i64: 32, 144>}, {pipeline_mode = #tpu.pipeline_mode<synchronous>, transform_indices = @transform_10, window_bounds = array<i64: 32, 1>}, {pipeline_mode = #tpu.pipeline_mode<synchronous>, transform_indices = @transform_11, window_bounds = array<i64: 64, 16>}, {pipeline_mode = #tpu.pipeline_mode<synchronous>, transform_indices = @transform_12, window_bounds = array<i64: 32, 32>}, {pipeline_mode = #tpu.pipeline_mode<synchronous>, transform_indices = @transform_13, window_bounds = array<i64: 32, 1>}, {pipeline_mode = #tpu.pipeline_mode<synchronous>, transform_indices = @transform_14, window_bounds = array<i64: 32, 32>}, {pipeline_mode = #tpu.pipeline_mode<synchronous>, transform_indices = @transform_15, window_bounds = array<i64: 32, 1>}, {pipeline_mode = #tpu.pipeline_mode<synchronous>, transform_indices = @transform_16, window_bounds = array<i64: 128, 64>}, {pipeline_mode = #tpu.pipeline_mode<synchronous>, transform_indices = @transform_17, window_bounds = array<i64: 1, 64>}, {pipeline_mode = #tpu.pipeline_mode<synchronous>, transform_indices = @transform_18, window_bounds = array<i64: 64, 10>}, {pipeline_mode = #tpu.pipeline_mode<synchronous>, transform_indices = @transform_19, window_bounds = array<i64: 1, 10>}, {transform_indices = @transform_20, window_bounds = array<i64: 1, 32, 64>}, {transform_indices = @transform_21, window_bounds = array<i64: 1, 1, 64>}, {transform_indices = @transform_22, window_bounds = array<i64: 1, 1, 10>}]} {
    %c0 = arith.constant 0 : index
    %c0_0 = arith.constant 0 : index
    %c0_1 = arith.constant 0 : index
    %c0_2 = arith.constant 0 : index
    %0 = vector.load %arg1[%c0, %c0_0, %c0_1, %c0_2] : memref<1x4x3x256xf32, #tpu.memory_space<vmem>>, vector<1x1x3x256xf32>
    %1 = vector.shape_cast %0 : vector<1x1x3x256xf32> to vector<3x256xf32>
    %c0_3 = arith.constant 0 : index
    %c1 = arith.constant 1 : index
    %c0_4 = arith.constant 0 : index
    %c0_5 = arith.constant 0 : index
    %2 = vector.load %arg1[%c0_3, %c1, %c0_4, %c0_5] : memref<1x4x3x256xf32, #tpu.memory_space<vmem>>, vector<1x1x3x256xf32>
    %3 = vector.shape_cast %2 : vector<1x1x3x256xf32> to vector<3x256xf32>
    %c0_6 = arith.constant 0 : index
    %c2 = arith.constant 2 : index
    %c0_7 = arith.constant 0 : index
    %c0_8 = arith.constant 0 : index
    %4 = vector.load %arg1[%c0_6, %c2, %c0_7, %c0_8] : memref<1x4x3x256xf32, #tpu.memory_space<vmem>>, vector<1x1x3x256xf32>
    %5 = vector.shape_cast %4 : vector<1x1x3x256xf32> to vector<3x256xf32>
    %c0_9 = arith.constant 0 : index
    %c3 = arith.constant 3 : index
    %c0_10 = arith.constant 0 : index
    %c0_11 = arith.constant 0 : index
    %6 = vector.load %arg1[%c0_9, %c3, %c0_10, %c0_11] : memref<1x4x3x256xf32, #tpu.memory_space<vmem>>, vector<1x1x3x256xf32>
    %7 = vector.shape_cast %6 : vector<1x1x3x256xf32> to vector<3x256xf32>
    %8 = tpu.concatenate %1, %3, %5, %7 in 1 : vector<3x256xf32>, vector<3x256xf32>, vector<3x256xf32>, vector<3x256xf32> -> vector<3x1024xf32>
    %c0_12 = arith.constant 0 : index
    %c0_13 = arith.constant 0 : index
    %9 = vector.load %arg2[%c0_12, %c0_13] : memref<9x1024xf32, #tpu.memory_space<vmem>>, vector<9x1024xf32>
    %c17_i32 = arith.constant 17 : i32
    %10 = tpu.dynamic_rotate %8 by %c17_i32 dim 1 : vector<3x1024xf32>, i32 -> vector<3x1024xf32>
    %11 = vector.extract_strided_slice %9 {offsets = [0, 0], sizes = [1, 1024], strides = [1, 1]} : vector<9x1024xf32> to vector<1x1024xf32>
    %12 = vector.broadcast %11 : vector<1x1024xf32> to vector<3x1024xf32>
    %13 = arith.mulf %10, %12 : vector<3x1024xf32>
    %c16_i32 = arith.constant 16 : i32
    %14 = tpu.dynamic_rotate %8 by %c16_i32 dim 1 : vector<3x1024xf32>, i32 -> vector<3x1024xf32>
    %15 = vector.extract_strided_slice %9 {offsets = [1, 0], sizes = [1, 1024], strides = [1, 1]} : vector<9x1024xf32> to vector<1x1024xf32>
    %16 = vector.broadcast %15 : vector<1x1024xf32> to vector<3x1024xf32>
    %17 = arith.mulf %14, %16 : vector<3x1024xf32>
    %c15_i32 = arith.constant 15 : i32
    %18 = tpu.dynamic_rotate %8 by %c15_i32 dim 1 : vector<3x1024xf32>, i32 -> vector<3x1024xf32>
    %19 = vector.extract_strided_slice %9 {offsets = [2, 0], sizes = [1, 1024], strides = [1, 1]} : vector<9x1024xf32> to vector<1x1024xf32>
    %20 = vector.broadcast %19 : vector<1x1024xf32> to vector<3x1024xf32>
    %21 = arith.mulf %18, %20 : vector<3x1024xf32>
    %c1_i32 = arith.constant 1 : i32
    %22 = tpu.dynamic_rotate %8 by %c1_i32 dim 1 : vector<3x1024xf32>, i32 -> vector<3x1024xf32>
    %23 = vector.extract_strided_slice %9 {offsets = [3, 0], sizes = [1, 1024], strides = [1, 1]} : vector<9x1024xf32> to vector<1x1024xf32>
    %24 = vector.broadcast %23 : vector<1x1024xf32> to vector<3x1024xf32>
    %25 = arith.mulf %22, %24 : vector<3x1024xf32>
    %c1023_i32 = arith.constant 1023 : i32
    %26 = tpu.dynamic_rotate %8 by %c1023_i32 dim 1 : vector<3x1024xf32>, i32 -> vector<3x1024xf32>
    %27 = vector.extract_strided_slice %9 {offsets = [5, 0], sizes = [1, 1024], strides = [1, 1]} : vector<9x1024xf32> to vector<1x1024xf32>
    %28 = vector.broadcast %27 : vector<1x1024xf32> to vector<3x1024xf32>
    %29 = arith.mulf %26, %28 : vector<3x1024xf32>
    %c1009_i32 = arith.constant 1009 : i32
    %30 = tpu.dynamic_rotate %8 by %c1009_i32 dim 1 : vector<3x1024xf32>, i32 -> vector<3x1024xf32>
    %31 = vector.extract_strided_slice %9 {offsets = [6, 0], sizes = [1, 1024], strides = [1, 1]} : vector<9x1024xf32> to vector<1x1024xf32>
    %32 = vector.broadcast %31 : vector<1x1024xf32> to vector<3x1024xf32>
    %33 = arith.mulf %30, %32 : vector<3x1024xf32>
    %c1008_i32 = arith.constant 1008 : i32
    %34 = tpu.dynamic_rotate %8 by %c1008_i32 dim 1 : vector<3x1024xf32>, i32 -> vector<3x1024xf32>
    %35 = vector.extract_strided_slice %9 {offsets = [7, 0], sizes = [1, 1024], strides = [1, 1]} : vector<9x1024xf32> to vector<1x1024xf32>
    %36 = vector.broadcast %35 : vector<1x1024xf32> to vector<3x1024xf32>
    %37 = arith.mulf %34, %36 : vector<3x1024xf32>
    %c1007_i32 = arith.constant 1007 : i32
    %38 = tpu.dynamic_rotate %8 by %c1007_i32 dim 1 : vector<3x1024xf32>, i32 -> vector<3x1024xf32>
    %39 = vector.extract_strided_slice %9 {offsets = [8, 0], sizes = [1, 1024], strides = [1, 1]} : vector<9x1024xf32> to vector<1x1024xf32>
    %40 = vector.broadcast %39 : vector<1x1024xf32> to vector<3x1024xf32>
    %41 = arith.mulf %38, %40 : vector<3x1024xf32>
    %42 = tpu.concatenate %13, %17, %21, %25, %8, %29, %33, %37, %41 in 0 : vector<3x1024xf32>, vector<3x1024xf32>, vector<3x1024xf32>, vector<3x1024xf32>, vector<3x1024xf32>, vector<3x1024xf32>, vector<3x1024xf32>, vector<3x1024xf32>, vector<3x1024xf32> -> vector<27x1024xf32>
    %43 = arith.truncf %42 : vector<27x1024xf32> to vector<27x1024xbf16>
    %c0_14 = arith.constant 0 : index
    %c0_15 = arith.constant 0 : index
    %44 = vector.load %arg3[%c0_14, %c0_15] : memref<8x27xbf16, #tpu.memory_space<vmem>>, vector<8x27xbf16>
    %cst = arith.constant dense<0.000000e+00> : vector<8x1024xf32>
    %45 = tpu.matmul %44, %43, %cst {dimension_numbers = #tpu.dot_dimension_numbers<[1], [0], [0], [1], [0, 0, 1, 1], [], []>} : vector<8x27xbf16>, vector<27x1024xbf16>, vector<8x1024xf32> -> vector<8x1024xf32>
    %c0_16 = arith.constant 0 : index
    %c0_17 = arith.constant 0 : index
    %46 = vector.load %arg4[%c0_16, %c0_17] : memref<8x1xf32, #tpu.memory_space<vmem>>, vector<8x1xf32>
    %47 = vector.broadcast %46 : vector<8x1xf32> to vector<8x1024xf32>
    %48 = arith.addf %45, %47 : vector<8x1024xf32>
    %cst_18 = arith.constant 0.000000e+00 : f32
    %49 = vector.broadcast %cst_18 : f32 to vector<8x1024xf32>
    %50 = arith.maximumf %48, %49 : vector<8x1024xf32>
    %c0_19 = arith.constant 0 : index
    %c0_20 = arith.constant 0 : index
    %51 = vector.load %arg5[%c0_19, %c0_20] : memref<9x1024xf32, #tpu.memory_space<vmem>>, vector<9x1024xf32>
    %c17_i32_21 = arith.constant 17 : i32
    %52 = tpu.dynamic_rotate %50 by %c17_i32_21 dim 1 : vector<8x1024xf32>, i32 -> vector<8x1024xf32>
    %53 = vector.extract_strided_slice %51 {offsets = [0, 0], sizes = [1, 1024], strides = [1, 1]} : vector<9x1024xf32> to vector<1x1024xf32>
    %54 = vector.broadcast %53 : vector<1x1024xf32> to vector<8x1024xf32>
    %55 = arith.mulf %52, %54 : vector<8x1024xf32>
    %c16_i32_22 = arith.constant 16 : i32
    %56 = tpu.dynamic_rotate %50 by %c16_i32_22 dim 1 : vector<8x1024xf32>, i32 -> vector<8x1024xf32>
    %57 = vector.extract_strided_slice %51 {offsets = [1, 0], sizes = [1, 1024], strides = [1, 1]} : vector<9x1024xf32> to vector<1x1024xf32>
    %58 = vector.broadcast %57 : vector<1x1024xf32> to vector<8x1024xf32>
    %59 = arith.mulf %56, %58 : vector<8x1024xf32>
    %c15_i32_23 = arith.constant 15 : i32
    %60 = tpu.dynamic_rotate %50 by %c15_i32_23 dim 1 : vector<8x1024xf32>, i32 -> vector<8x1024xf32>
    %61 = vector.extract_strided_slice %51 {offsets = [2, 0], sizes = [1, 1024], strides = [1, 1]} : vector<9x1024xf32> to vector<1x1024xf32>
    %62 = vector.broadcast %61 : vector<1x1024xf32> to vector<8x1024xf32>
    %63 = arith.mulf %60, %62 : vector<8x1024xf32>
    %c1_i32_24 = arith.constant 1 : i32
    %64 = tpu.dynamic_rotate %50 by %c1_i32_24 dim 1 : vector<8x1024xf32>, i32 -> vector<8x1024xf32>
    %65 = vector.extract_strided_slice %51 {offsets = [3, 0], sizes = [1, 1024], strides = [1, 1]} : vector<9x1024xf32> to vector<1x1024xf32>
    %66 = vector.broadcast %65 : vector<1x1024xf32> to vector<8x1024xf32>
    %67 = arith.mulf %64, %66 : vector<8x1024xf32>
    %c1023_i32_25 = arith.constant 1023 : i32
    %68 = tpu.dynamic_rotate %50 by %c1023_i32_25 dim 1 : vector<8x1024xf32>, i32 -> vector<8x1024xf32>
    %69 = vector.extract_strided_slice %51 {offsets = [5, 0], sizes = [1, 1024], strides = [1, 1]} : vector<9x1024xf32> to vector<1x1024xf32>
    %70 = vector.broadcast %69 : vector<1x1024xf32> to vector<8x1024xf32>
    %71 = arith.mulf %68, %70 : vector<8x1024xf32>
    %c1009_i32_26 = arith.constant 1009 : i32
    %72 = tpu.dynamic_rotate %50 by %c1009_i32_26 dim 1 : vector<8x1024xf32>, i32 -> vector<8x1024xf32>
    %73 = vector.extract_strided_slice %51 {offsets = [6, 0], sizes = [1, 1024], strides = [1, 1]} : vector<9x1024xf32> to vector<1x1024xf32>
    %74 = vector.broadcast %73 : vector<1x1024xf32> to vector<8x1024xf32>
    %75 = arith.mulf %72, %74 : vector<8x1024xf32>
    %c1008_i32_27 = arith.constant 1008 : i32
    %76 = tpu.dynamic_rotate %50 by %c1008_i32_27 dim 1 : vector<8x1024xf32>, i32 -> vector<8x1024xf32>
    %77 = vector.extract_strided_slice %51 {offsets = [7, 0], sizes = [1, 1024], strides = [1, 1]} : vector<9x1024xf32> to vector<1x1024xf32>
    %78 = vector.broadcast %77 : vector<1x1024xf32> to vector<8x1024xf32>
    %79 = arith.mulf %76, %78 : vector<8x1024xf32>
    %c1007_i32_28 = arith.constant 1007 : i32
    %80 = tpu.dynamic_rotate %50 by %c1007_i32_28 dim 1 : vector<8x1024xf32>, i32 -> vector<8x1024xf32>
    %81 = vector.extract_strided_slice %51 {offsets = [8, 0], sizes = [1, 1024], strides = [1, 1]} : vector<9x1024xf32> to vector<1x1024xf32>
    %82 = vector.broadcast %81 : vector<1x1024xf32> to vector<8x1024xf32>
    %83 = arith.mulf %80, %82 : vector<8x1024xf32>
    %84 = tpu.concatenate %55, %59, %63, %67, %50, %71, %75, %79, %83 in 0 : vector<8x1024xf32>, vector<8x1024xf32>, vector<8x1024xf32>, vector<8x1024xf32>, vector<8x1024xf32>, vector<8x1024xf32>, vector<8x1024xf32>, vector<8x1024xf32>, vector<8x1024xf32> -> vector<72x1024xf32>
    %85 = arith.truncf %84 : vector<72x1024xf32> to vector<72x1024xbf16>
    %c0_29 = arith.constant 0 : index
    %c0_30 = arith.constant 0 : index
    %86 = vector.load %arg6[%c0_29, %c0_30] : memref<16x72xbf16, #tpu.memory_space<vmem>>, vector<16x72xbf16>
    %cst_31 = arith.constant dense<0.000000e+00> : vector<16x1024xf32>
    %87 = tpu.matmul %86, %85, %cst_31 {dimension_numbers = #tpu.dot_dimension_numbers<[1], [0], [0], [1], [0, 0, 1, 1], [], []>} : vector<16x72xbf16>, vector<72x1024xbf16>, vector<16x1024xf32> -> vector<16x1024xf32>
    %c0_32 = arith.constant 0 : index
    %c0_33 = arith.constant 0 : index
    %88 = vector.load %arg7[%c0_32, %c0_33] : memref<16x1xf32, #tpu.memory_space<vmem>>, vector<16x1xf32>
    %89 = vector.broadcast %88 : vector<16x1xf32> to vector<16x1024xf32>
    %90 = arith.addf %87, %89 : vector<16x1024xf32>
    %cst_34 = arith.constant 0.000000e+00 : f32
    %91 = vector.broadcast %cst_34 : f32 to vector<16x1024xf32>
    %92 = arith.maximumf %90, %91 : vector<16x1024xf32>
    %93 = arith.truncf %92 : vector<16x1024xf32> to vector<16x1024xbf16>
    %c0_35 = arith.constant 0 : index
    %c0_36 = arith.constant 0 : index
    %94 = vector.load %arg8[%c0_35, %c0_36] : memref<256x64xbf16, #tpu.memory_space<vmem>>, vector<256x64xbf16>
    %95 = vector.extract_strided_slice %93 {offsets = [0, 0], sizes = [16, 256], strides = [1, 1]} : vector<16x1024xbf16> to vector<16x256xbf16>
    %cst_37 = arith.constant dense<0.000000e+00> : vector<16x64xf32>
    %96 = tpu.matmul %95, %94, %cst_37 {dimension_numbers = #tpu.dot_dimension_numbers<[1], [0], [0], [1], [0, 0, 1, 1], [], []>} : vector<16x256xbf16>, vector<256x64xbf16>, vector<16x64xf32> -> vector<16x64xf32>
    %97 = vector.extract_strided_slice %93 {offsets = [0, 256], sizes = [16, 256], strides = [1, 1]} : vector<16x1024xbf16> to vector<16x256xbf16>
    %cst_38 = arith.constant dense<0.000000e+00> : vector<16x64xf32>
    %98 = tpu.matmul %97, %94, %cst_38 {dimension_numbers = #tpu.dot_dimension_numbers<[1], [0], [0], [1], [0, 0, 1, 1], [], []>} : vector<16x256xbf16>, vector<256x64xbf16>, vector<16x64xf32> -> vector<16x64xf32>
    %99 = vector.extract_strided_slice %93 {offsets = [0, 512], sizes = [16, 256], strides = [1, 1]} : vector<16x1024xbf16> to vector<16x256xbf16>
    %cst_39 = arith.constant dense<0.000000e+00> : vector<16x64xf32>
    %100 = tpu.matmul %99, %94, %cst_39 {dimension_numbers = #tpu.dot_dimension_numbers<[1], [0], [0], [1], [0, 0, 1, 1], [], []>} : vector<16x256xbf16>, vector<256x64xbf16>, vector<16x64xf32> -> vector<16x64xf32>
    %101 = vector.extract_strided_slice %93 {offsets = [0, 768], sizes = [16, 256], strides = [1, 1]} : vector<16x1024xbf16> to vector<16x256xbf16>
    %cst_40 = arith.constant dense<0.000000e+00> : vector<16x64xf32>
    %102 = tpu.matmul %101, %94, %cst_40 {dimension_numbers = #tpu.dot_dimension_numbers<[1], [0], [0], [1], [0, 0, 1, 1], [], []>} : vector<16x256xbf16>, vector<256x64xbf16>, vector<16x64xf32> -> vector<16x64xf32>
    %103 = tpu.concatenate %96, %98, %100, %102 in 1 : vector<16x64xf32>, vector<16x64xf32>, vector<16x64xf32>, vector<16x64xf32> -> vector<16x256xf32>
    %c0_41 = arith.constant 0 : index
    %c0_42 = arith.constant 0 : index
    %104 = vector.load %arg9[%c0_41, %c0_42] : memref<9x256xf32, #tpu.memory_space<vmem>>, vector<9x256xf32>
    %c9_i32 = arith.constant 9 : i32
    %105 = tpu.dynamic_rotate %103 by %c9_i32 dim 1 : vector<16x256xf32>, i32 -> vector<16x256xf32>
    %106 = vector.extract_strided_slice %104 {offsets = [0, 0], sizes = [1, 256], strides = [1, 1]} : vector<9x256xf32> to vector<1x256xf32>
    %107 = vector.broadcast %106 : vector<1x256xf32> to vector<16x256xf32>
    %108 = arith.mulf %105, %107 : vector<16x256xf32>
    %c8_i32 = arith.constant 8 : i32
    %109 = tpu.dynamic_rotate %103 by %c8_i32 dim 1 : vector<16x256xf32>, i32 -> vector<16x256xf32>
    %110 = vector.extract_strided_slice %104 {offsets = [1, 0], sizes = [1, 256], strides = [1, 1]} : vector<9x256xf32> to vector<1x256xf32>
    %111 = vector.broadcast %110 : vector<1x256xf32> to vector<16x256xf32>
    %112 = arith.mulf %109, %111 : vector<16x256xf32>
    %c7_i32 = arith.constant 7 : i32
    %113 = tpu.dynamic_rotate %103 by %c7_i32 dim 1 : vector<16x256xf32>, i32 -> vector<16x256xf32>
    %114 = vector.extract_strided_slice %104 {offsets = [2, 0], sizes = [1, 256], strides = [1, 1]} : vector<9x256xf32> to vector<1x256xf32>
    %115 = vector.broadcast %114 : vector<1x256xf32> to vector<16x256xf32>
    %116 = arith.mulf %113, %115 : vector<16x256xf32>
    %c1_i32_43 = arith.constant 1 : i32
    %117 = tpu.dynamic_rotate %103 by %c1_i32_43 dim 1 : vector<16x256xf32>, i32 -> vector<16x256xf32>
    %118 = vector.extract_strided_slice %104 {offsets = [3, 0], sizes = [1, 256], strides = [1, 1]} : vector<9x256xf32> to vector<1x256xf32>
    %119 = vector.broadcast %118 : vector<1x256xf32> to vector<16x256xf32>
    %120 = arith.mulf %117, %119 : vector<16x256xf32>
    %c255_i32 = arith.constant 255 : i32
    %121 = tpu.dynamic_rotate %103 by %c255_i32 dim 1 : vector<16x256xf32>, i32 -> vector<16x256xf32>
    %122 = vector.extract_strided_slice %104 {offsets = [5, 0], sizes = [1, 256], strides = [1, 1]} : vector<9x256xf32> to vector<1x256xf32>
    %123 = vector.broadcast %122 : vector<1x256xf32> to vector<16x256xf32>
    %124 = arith.mulf %121, %123 : vector<16x256xf32>
    %c249_i32 = arith.constant 249 : i32
    %125 = tpu.dynamic_rotate %103 by %c249_i32 dim 1 : vector<16x256xf32>, i32 -> vector<16x256xf32>
    %126 = vector.extract_strided_slice %104 {offsets = [6, 0], sizes = [1, 256], strides = [1, 1]} : vector<9x256xf32> to vector<1x256xf32>
    %127 = vector.broadcast %126 : vector<1x256xf32> to vector<16x256xf32>
    %128 = arith.mulf %125, %127 : vector<16x256xf32>
    %c248_i32 = arith.constant 248 : i32
    %129 = tpu.dynamic_rotate %103 by %c248_i32 dim 1 : vector<16x256xf32>, i32 -> vector<16x256xf32>
    %130 = vector.extract_strided_slice %104 {offsets = [7, 0], sizes = [1, 256], strides = [1, 1]} : vector<9x256xf32> to vector<1x256xf32>
    %131 = vector.broadcast %130 : vector<1x256xf32> to vector<16x256xf32>
    %132 = arith.mulf %129, %131 : vector<16x256xf32>
    %c247_i32 = arith.constant 247 : i32
    %133 = tpu.dynamic_rotate %103 by %c247_i32 dim 1 : vector<16x256xf32>, i32 -> vector<16x256xf32>
    %134 = vector.extract_strided_slice %104 {offsets = [8, 0], sizes = [1, 256], strides = [1, 1]} : vector<9x256xf32> to vector<1x256xf32>
    %135 = vector.broadcast %134 : vector<1x256xf32> to vector<16x256xf32>
    %136 = arith.mulf %133, %135 : vector<16x256xf32>
    %137 = tpu.concatenate %108, %112, %116, %120, %103, %124, %128, %132, %136 in 0 : vector<16x256xf32>, vector<16x256xf32>, vector<16x256xf32>, vector<16x256xf32>, vector<16x256xf32>, vector<16x256xf32>, vector<16x256xf32>, vector<16x256xf32>, vector<16x256xf32> -> vector<144x256xf32>
    %138 = arith.truncf %137 : vector<144x256xf32> to vector<144x256xbf16>
    %c0_44 = arith.constant 0 : index
    %c0_45 = arith.constant 0 : index
    %139 = vector.load %arg10[%c0_44, %c0_45] : memref<32x144xbf16, #tpu.memory_space<vmem>>, vector<32x144xbf16>
    %cst_46 = arith.constant dense<0.000000e+00> : vector<32x256xf32>
    %140 = tpu.matmul %139, %138, %cst_46 {dimension_numbers = #tpu.dot_dimension_numbers<[1], [0], [0], [1], [0, 0, 1, 1], [], []>} : vector<32x144xbf16>, vector<144x256xbf16>, vector<32x256xf32> -> vector<32x256xf32>
    %c0_47 = arith.constant 0 : index
    %c0_48 = arith.constant 0 : index
    %141 = vector.load %arg11[%c0_47, %c0_48] : memref<32x1xf32, #tpu.memory_space<vmem>>, vector<32x1xf32>
    %142 = vector.broadcast %141 : vector<32x1xf32> to vector<32x256xf32>
    %143 = arith.addf %140, %142 : vector<32x256xf32>
    %cst_49 = arith.constant 0.000000e+00 : f32
    %144 = vector.broadcast %cst_49 : f32 to vector<32x256xf32>
    %145 = arith.maximumf %143, %144 : vector<32x256xf32>
    %146 = arith.truncf %145 : vector<32x256xf32> to vector<32x256xbf16>
    %c0_50 = arith.constant 0 : index
    %c0_51 = arith.constant 0 : index
    %147 = vector.load %arg12[%c0_50, %c0_51] : memref<64x16xbf16, #tpu.memory_space<vmem>>, vector<64x16xbf16>
    %148 = vector.extract_strided_slice %146 {offsets = [0, 0], sizes = [32, 64], strides = [1, 1]} : vector<32x256xbf16> to vector<32x64xbf16>
    %cst_52 = arith.constant dense<0.000000e+00> : vector<32x16xf32>
    %149 = tpu.matmul %148, %147, %cst_52 {dimension_numbers = #tpu.dot_dimension_numbers<[1], [0], [0], [1], [0, 0, 1, 1], [], []>} : vector<32x64xbf16>, vector<64x16xbf16>, vector<32x16xf32> -> vector<32x16xf32>
    %150 = vector.extract_strided_slice %146 {offsets = [0, 64], sizes = [32, 64], strides = [1, 1]} : vector<32x256xbf16> to vector<32x64xbf16>
    %cst_53 = arith.constant dense<0.000000e+00> : vector<32x16xf32>
    %151 = tpu.matmul %150, %147, %cst_53 {dimension_numbers = #tpu.dot_dimension_numbers<[1], [0], [0], [1], [0, 0, 1, 1], [], []>} : vector<32x64xbf16>, vector<64x16xbf16>, vector<32x16xf32> -> vector<32x16xf32>
    %152 = vector.extract_strided_slice %146 {offsets = [0, 128], sizes = [32, 64], strides = [1, 1]} : vector<32x256xbf16> to vector<32x64xbf16>
    %cst_54 = arith.constant dense<0.000000e+00> : vector<32x16xf32>
    %153 = tpu.matmul %152, %147, %cst_54 {dimension_numbers = #tpu.dot_dimension_numbers<[1], [0], [0], [1], [0, 0, 1, 1], [], []>} : vector<32x64xbf16>, vector<64x16xbf16>, vector<32x16xf32> -> vector<32x16xf32>
    %154 = vector.extract_strided_slice %146 {offsets = [0, 192], sizes = [32, 64], strides = [1, 1]} : vector<32x256xbf16> to vector<32x64xbf16>
    %cst_55 = arith.constant dense<0.000000e+00> : vector<32x16xf32>
    %155 = tpu.matmul %154, %147, %cst_55 {dimension_numbers = #tpu.dot_dimension_numbers<[1], [0], [0], [1], [0, 0, 1, 1], [], []>} : vector<32x64xbf16>, vector<64x16xbf16>, vector<32x16xf32> -> vector<32x16xf32>
    %156 = tpu.concatenate %149, %151, %153, %155 in 1 : vector<32x16xf32>, vector<32x16xf32>, vector<32x16xf32>, vector<32x16xf32> -> vector<32x64xf32>
    %c0_56 = arith.constant 0 : index
    %c0_57 = arith.constant 0 : index
    %157 = vector.load %arg13[%c0_56, %c0_57] : memref<32x32xbf16, #tpu.memory_space<vmem>>, vector<32x32xbf16>
    %158 = arith.truncf %156 : vector<32x64xf32> to vector<32x64xbf16>
    %cst_58 = arith.constant dense<0.000000e+00> : vector<32x64xf32>
    %159 = tpu.matmul %157, %158, %cst_58 {dimension_numbers = #tpu.dot_dimension_numbers<[1], [0], [0], [1], [0, 0, 1, 1], [], []>} : vector<32x32xbf16>, vector<32x64xbf16>, vector<32x64xf32> -> vector<32x64xf32>
    %c0_59 = arith.constant 0 : index
    %c0_60 = arith.constant 0 : index
    %160 = vector.load %arg14[%c0_59, %c0_60] : memref<32x1xf32, #tpu.memory_space<vmem>>, vector<32x1xf32>
    %161 = vector.broadcast %160 : vector<32x1xf32> to vector<32x64xf32>
    %162 = arith.addf %159, %161 : vector<32x64xf32>
    %cst_61 = arith.constant 0.000000e+00 : f32
    %163 = vector.broadcast %cst_61 : f32 to vector<32x64xf32>
    %164 = arith.maximumf %162, %163 : vector<32x64xf32>
    %165 = vector.extract_strided_slice %164 {offsets = [0, 0], sizes = [32, 16], strides = [1, 1]} : vector<32x64xf32> to vector<32x16xf32>
    %166 = arith.truncf %165 : vector<32x16xf32> to vector<32x16xbf16>
    %c0_62 = arith.constant 0 : index
    %c0_63 = arith.constant 0 : index
    %167 = vector.load %arg15[%c0_62, %c0_63] : memref<32x32xbf16, #tpu.memory_space<vmem>>, vector<32x32xbf16>
    %cst_64 = arith.constant dense<0.000000e+00> : vector<32x16xf32>
    %168 = tpu.matmul %167, %166, %cst_64 {dimension_numbers = #tpu.dot_dimension_numbers<[1], [0], [0], [1], [0, 0, 1, 1], [], []>} : vector<32x32xbf16>, vector<32x16xbf16>, vector<32x16xf32> -> vector<32x16xf32>
    %c0_65 = arith.constant 0 : index
    %c0_66 = arith.constant 0 : index
    %169 = vector.load %arg16[%c0_65, %c0_66] : memref<32x1xf32, #tpu.memory_space<vmem>>, vector<32x1xf32>
    %170 = vector.broadcast %169 : vector<32x1xf32> to vector<32x16xf32>
    %171 = arith.addf %168, %170 : vector<32x16xf32>
    %cst_67 = arith.constant 0.000000e+00 : f32
    %172 = vector.broadcast %cst_67 : f32 to vector<32x16xf32>
    %173 = arith.maximumf %171, %172 : vector<32x16xf32>
    %174 = arith.truncf %173 : vector<32x16xf32> to vector<32x16xbf16>
    %175 = vector.extract_strided_slice %164 {offsets = [0, 16], sizes = [32, 16], strides = [1, 1]} : vector<32x64xf32> to vector<32x16xf32>
    %c0_68 = arith.constant 0 : index
    %c0_69 = arith.constant 0 : index
    %176 = vector.load %arg15[%c0_68, %c0_69] : memref<32x32xbf16, #tpu.memory_space<vmem>>, vector<32x32xbf16>
    %cst_70 = arith.constant dense<0.000000e+00> : vector<32x16xf32>
    %177 = tpu.matmul %176, %174, %cst_70 {dimension_numbers = #tpu.dot_dimension_numbers<[1], [0], [0], [1], [0, 0, 1, 1], [], []>} : vector<32x32xbf16>, vector<32x16xbf16>, vector<32x16xf32> -> vector<32x16xf32>
    %c0_71 = arith.constant 0 : index
    %c0_72 = arith.constant 0 : index
    %178 = vector.load %arg16[%c0_71, %c0_72] : memref<32x1xf32, #tpu.memory_space<vmem>>, vector<32x1xf32>
    %179 = vector.broadcast %178 : vector<32x1xf32> to vector<32x16xf32>
    %180 = arith.addf %177, %179 : vector<32x16xf32>
    %181 = arith.addf %180, %175 : vector<32x16xf32>
    %cst_73 = arith.constant 0.000000e+00 : f32
    %182 = vector.broadcast %cst_73 : f32 to vector<32x16xf32>
    %183 = arith.maximumf %181, %182 : vector<32x16xf32>
    %184 = arith.truncf %183 : vector<32x16xf32> to vector<32x16xbf16>
    %185 = vector.extract_strided_slice %164 {offsets = [0, 32], sizes = [32, 16], strides = [1, 1]} : vector<32x64xf32> to vector<32x16xf32>
    %c0_74 = arith.constant 0 : index
    %c0_75 = arith.constant 0 : index
    %186 = vector.load %arg15[%c0_74, %c0_75] : memref<32x32xbf16, #tpu.memory_space<vmem>>, vector<32x32xbf16>
    %cst_76 = arith.constant dense<0.000000e+00> : vector<32x16xf32>
    %187 = tpu.matmul %186, %184, %cst_76 {dimension_numbers = #tpu.dot_dimension_numbers<[1], [0], [0], [1], [0, 0, 1, 1], [], []>} : vector<32x32xbf16>, vector<32x16xbf16>, vector<32x16xf32> -> vector<32x16xf32>
    %c0_77 = arith.constant 0 : index
    %c0_78 = arith.constant 0 : index
    %188 = vector.load %arg16[%c0_77, %c0_78] : memref<32x1xf32, #tpu.memory_space<vmem>>, vector<32x1xf32>
    %189 = vector.broadcast %188 : vector<32x1xf32> to vector<32x16xf32>
    %190 = arith.addf %187, %189 : vector<32x16xf32>
    %191 = arith.addf %190, %185 : vector<32x16xf32>
    %cst_79 = arith.constant 0.000000e+00 : f32
    %192 = vector.broadcast %cst_79 : f32 to vector<32x16xf32>
    %193 = arith.maximumf %191, %192 : vector<32x16xf32>
    %194 = arith.truncf %193 : vector<32x16xf32> to vector<32x16xbf16>
    %195 = vector.extract_strided_slice %164 {offsets = [0, 48], sizes = [32, 16], strides = [1, 1]} : vector<32x64xf32> to vector<32x16xf32>
    %c0_80 = arith.constant 0 : index
    %c0_81 = arith.constant 0 : index
    %196 = vector.load %arg15[%c0_80, %c0_81] : memref<32x32xbf16, #tpu.memory_space<vmem>>, vector<32x32xbf16>
    %cst_82 = arith.constant dense<0.000000e+00> : vector<32x16xf32>
    %197 = tpu.matmul %196, %194, %cst_82 {dimension_numbers = #tpu.dot_dimension_numbers<[1], [0], [0], [1], [0, 0, 1, 1], [], []>} : vector<32x32xbf16>, vector<32x16xbf16>, vector<32x16xf32> -> vector<32x16xf32>
    %c0_83 = arith.constant 0 : index
    %c0_84 = arith.constant 0 : index
    %198 = vector.load %arg16[%c0_83, %c0_84] : memref<32x1xf32, #tpu.memory_space<vmem>>, vector<32x1xf32>
    %199 = vector.broadcast %198 : vector<32x1xf32> to vector<32x16xf32>
    %200 = arith.addf %197, %199 : vector<32x16xf32>
    %201 = arith.addf %200, %195 : vector<32x16xf32>
    %cst_85 = arith.constant 0.000000e+00 : f32
    %202 = vector.broadcast %cst_85 : f32 to vector<32x16xf32>
    %203 = arith.maximumf %201, %202 : vector<32x16xf32>
    %204 = tpu.concatenate %173, %183, %193, %203 in 1 : vector<32x16xf32>, vector<32x16xf32>, vector<32x16xf32>, vector<32x16xf32> -> vector<32x64xf32>
    %c0_86 = arith.constant 0 : index
    %c0_87 = arith.constant 0 : index
    %c0_88 = arith.constant 0 : index
    %205 = vector.load %arg21[%c0_86, %c0_87, %c0_88] : memref<1x32x64xf32, #tpu.memory_space<vmem>>, vector<1x32x64xf32>
    %206 = vector.shape_cast %205 : vector<1x32x64xf32> to vector<32x64xf32>
    %207 = vector.shape_cast %204 : vector<32x64xf32> to vector<1x32x64xf32>
    tpu.vector_store %arg21[%c0_86, %c0_87, %c0_88], %207 {strides = array<i32>} : memref<1x32x64xf32, #tpu.memory_space<vmem>>, vector<1x32x64xf32>,
    %cst_89 = arith.constant dense<0.000000e+00> : vector<32xf32>
    %208 = vector.multi_reduction <add>, %173, %cst_89 [1] : vector<32x16xf32> to vector<32xf32>
    %209 = vector.shape_cast %208 : vector<32xf32> to vector<32x1xf32>
    %cst_90 = arith.constant 6.250000e-02 : f32
    %210 = vector.broadcast %cst_90 : f32 to vector<32x1xf32>
    %211 = arith.mulf %209, %210 : vector<32x1xf32>
    %cst_91 = arith.constant dense<0.000000e+00> : vector<32xf32>
    %212 = vector.multi_reduction <add>, %183, %cst_91 [1] : vector<32x16xf32> to vector<32xf32>
    %213 = vector.shape_cast %212 : vector<32xf32> to vector<32x1xf32>
    %cst_92 = arith.constant 6.250000e-02 : f32
    %214 = vector.broadcast %cst_92 : f32 to vector<32x1xf32>
    %215 = arith.mulf %213, %214 : vector<32x1xf32>
    %cst_93 = arith.constant dense<0.000000e+00> : vector<32xf32>
    %216 = vector.multi_reduction <add>, %193, %cst_93 [1] : vector<32x16xf32> to vector<32xf32>
    %217 = vector.shape_cast %216 : vector<32xf32> to vector<32x1xf32>
    %cst_94 = arith.constant 6.250000e-02 : f32
    %218 = vector.broadcast %cst_94 : f32 to vector<32x1xf32>
    %219 = arith.mulf %217, %218 : vector<32x1xf32>
    %cst_95 = arith.constant dense<0.000000e+00> : vector<32xf32>
    %220 = vector.multi_reduction <add>, %203, %cst_95 [1] : vector<32x16xf32> to vector<32xf32>
    %221 = vector.shape_cast %220 : vector<32xf32> to vector<32x1xf32>
    %cst_96 = arith.constant 6.250000e-02 : f32
    %222 = vector.broadcast %cst_96 : f32 to vector<32x1xf32>
    %223 = arith.mulf %221, %222 : vector<32x1xf32>
    %224 = tpu.concatenate %211, %215, %219, %223 in 0 : vector<32x1xf32>, vector<32x1xf32>, vector<32x1xf32>, vector<32x1xf32> -> vector<128x1xf32>
    %225 = tpu.transpose %224, [1, 0] : vector<128x1xf32> -> vector<1x128xf32>
    %226 = arith.truncf %225 : vector<1x128xf32> to vector<1x128xbf16>
    %c0_97 = arith.constant 0 : index
    %c0_98 = arith.constant 0 : index
    %227 = vector.load %arg17[%c0_97, %c0_98] : memref<128x64xbf16, #tpu.memory_space<vmem>>, vector<128x64xbf16>
    %cst_99 = arith.constant dense<0.000000e+00> : vector<1x64xf32>
    %228 = tpu.matmul %226, %227, %cst_99 {dimension_numbers = #tpu.dot_dimension_numbers<[1], [0], [0], [1], [0, 0, 1, 1], [], []>} : vector<1x128xbf16>, vector<128x64xbf16>, vector<1x64xf32> -> vector<1x64xf32>
    %c0_100 = arith.constant 0 : index
    %c0_101 = arith.constant 0 : index
    %229 = vector.load %arg18[%c0_100, %c0_101] : memref<1x64xf32, #tpu.memory_space<vmem>>, vector<1x64xf32>
    %230 = arith.addf %228, %229 : vector<1x64xf32>
    %cst_102 = arith.constant 0.000000e+00 : f32
    %231 = vector.broadcast %cst_102 : f32 to vector<1x64xf32>
    %232 = arith.maximumf %230, %231 : vector<1x64xf32>
    %c0_103 = arith.constant 0 : index
    %c0_104 = arith.constant 0 : index
    %c0_105 = arith.constant 0 : index
    %233 = vector.load %arg22[%c0_103, %c0_104, %c0_105] : memref<1x1x64xf32, #tpu.memory_space<vmem>>, vector<1x1x64xf32>
    %234 = vector.shape_cast %233 : vector<1x1x64xf32> to vector<1x64xf32>
    %235 = vector.shape_cast %232 : vector<1x64xf32> to vector<1x1x64xf32>
    tpu.vector_store %arg22[%c0_103, %c0_104, %c0_105], %235 {strides = array<i32>} : memref<1x1x64xf32, #tpu.memory_space<vmem>>, vector<1x1x64xf32>,
    %236 = arith.truncf %232 : vector<1x64xf32> to vector<1x64xbf16>
    %c0_106 = arith.constant 0 : index
    %c0_107 = arith.constant 0 : index
    %237 = vector.load %arg19[%c0_106, %c0_107] : memref<64x10xbf16, #tpu.memory_space<vmem>>, vector<64x10xbf16>
    %cst_108 = arith.constant dense<0.000000e+00> : vector<1x10xf32>
    %238 = tpu.matmul %236, %237, %cst_108 {dimension_numbers = #tpu.dot_dimension_numbers<[1], [0], [0], [1], [0, 0, 1, 1], [], []>} : vector<1x64xbf16>, vector<64x10xbf16>, vector<1x10xf32> -> vector<1x10xf32>
    %c0_109 = arith.constant 0 : index
    %c0_110 = arith.constant 0 : index
    %239 = vector.load %arg20[%c0_109, %c0_110] : memref<1x10xf32, #tpu.memory_space<vmem>>, vector<1x10xf32>
    %240 = arith.addf %238, %239 : vector<1x10xf32>
    %c0_111 = arith.constant 0 : index
    %c0_112 = arith.constant 0 : index
    %c0_113 = arith.constant 0 : index
    %241 = vector.load %arg23[%c0_111, %c0_112, %c0_113] : memref<1x1x10xf32, #tpu.memory_space<vmem>>, vector<1x1x10xf32>
    %242 = vector.shape_cast %241 : vector<1x1x10xf32> to vector<1x10xf32>
    %243 = vector.shape_cast %240 : vector<1x10xf32> to vector<1x1x10xf32>
    tpu.vector_store %arg23[%c0_111, %c0_112, %c0_113], %243 {strides = array<i32>} : memref<1x1x10xf32, #tpu.memory_space<vmem>>, vector<1x1x10xf32>,
    return
  }
  func.func @transform_0(%arg0: i32) -> (i32, i32, i32, i32) {
    %c0_i32 = arith.constant 0 : i32
    %c0_i32_0 = arith.constant 0 : i32
    %c0_i32_1 = arith.constant 0 : i32
    %c0_i32_2 = arith.constant 0 : i32
    return %arg0, %c0_i32, %c0_i32_0, %c0_i32_1 : i32, i32, i32, i32
  }
  func.func @transform_1(%arg0: i32) -> (i32, i32) {
    %c0_i32 = arith.constant 0 : i32
    %c0_i32_0 = arith.constant 0 : i32
    %c0_i32_1 = arith.constant 0 : i32
    return %c0_i32, %c0_i32_0 : i32, i32
  }
  func.func @transform_2(%arg0: i32) -> (i32, i32) {
    %c0_i32 = arith.constant 0 : i32
    %c0_i32_0 = arith.constant 0 : i32
    %c0_i32_1 = arith.constant 0 : i32
    return %c0_i32, %c0_i32_0 : i32, i32
  }
  func.func @transform_3(%arg0: i32) -> (i32, i32) {
    %c0_i32 = arith.constant 0 : i32
    %c0_i32_0 = arith.constant 0 : i32
    %c0_i32_1 = arith.constant 0 : i32
    return %c0_i32, %c0_i32_0 : i32, i32
  }
  func.func @transform_4(%arg0: i32) -> (i32, i32) {
    %c0_i32 = arith.constant 0 : i32
    %c0_i32_0 = arith.constant 0 : i32
    %c0_i32_1 = arith.constant 0 : i32
    return %c0_i32, %c0_i32_0 : i32, i32
  }
  func.func @transform_5(%arg0: i32) -> (i32, i32) {
    %c0_i32 = arith.constant 0 : i32
    %c0_i32_0 = arith.constant 0 : i32
    %c0_i32_1 = arith.constant 0 : i32
    return %c0_i32, %c0_i32_0 : i32, i32
  }
  func.func @transform_6(%arg0: i32) -> (i32, i32) {
    %c0_i32 = arith.constant 0 : i32
    %c0_i32_0 = arith.constant 0 : i32
    %c0_i32_1 = arith.constant 0 : i32
    return %c0_i32, %c0_i32_0 : i32, i32
  }
  func.func @transform_7(%arg0: i32) -> (i32, i32) {
    %c0_i32 = arith.constant 0 : i32
    %c0_i32_0 = arith.constant 0 : i32
    %c0_i32_1 = arith.constant 0 : i32
    return %c0_i32, %c0_i32_0 : i32, i32
  }
  func.func @transform_8(%arg0: i32) -> (i32, i32) {
    %c0_i32 = arith.constant 0 : i32
    %c0_i32_0 = arith.constant 0 : i32
    %c0_i32_1 = arith.constant 0 : i32
    return %c0_i32, %c0_i32_0 : i32, i32
  }
  func.func @transform_9(%arg0: i32) -> (i32, i32) {
    %c0_i32 = arith.constant 0 : i32
    %c0_i32_0 = arith.constant 0 : i32
    %c0_i32_1 = arith.constant 0 : i32
    return %c0_i32, %c0_i32_0 : i32, i32
  }
  func.func @transform_10(%arg0: i32) -> (i32, i32) {
    %c0_i32 = arith.constant 0 : i32
    %c0_i32_0 = arith.constant 0 : i32
    %c0_i32_1 = arith.constant 0 : i32
    return %c0_i32, %c0_i32_0 : i32, i32
  }
  func.func @transform_11(%arg0: i32) -> (i32, i32) {
    %c0_i32 = arith.constant 0 : i32
    %c0_i32_0 = arith.constant 0 : i32
    %c0_i32_1 = arith.constant 0 : i32
    return %c0_i32, %c0_i32_0 : i32, i32
  }
  func.func @transform_12(%arg0: i32) -> (i32, i32) {
    %c0_i32 = arith.constant 0 : i32
    %c0_i32_0 = arith.constant 0 : i32
    %c0_i32_1 = arith.constant 0 : i32
    return %c0_i32, %c0_i32_0 : i32, i32
  }
  func.func @transform_13(%arg0: i32) -> (i32, i32) {
    %c0_i32 = arith.constant 0 : i32
    %c0_i32_0 = arith.constant 0 : i32
    %c0_i32_1 = arith.constant 0 : i32
    return %c0_i32, %c0_i32_0 : i32, i32
  }
  func.func @transform_14(%arg0: i32) -> (i32, i32) {
    %c0_i32 = arith.constant 0 : i32
    %c0_i32_0 = arith.constant 0 : i32
    %c0_i32_1 = arith.constant 0 : i32
    return %c0_i32, %c0_i32_0 : i32, i32
  }
  func.func @transform_15(%arg0: i32) -> (i32, i32) {
    %c0_i32 = arith.constant 0 : i32
    %c0_i32_0 = arith.constant 0 : i32
    %c0_i32_1 = arith.constant 0 : i32
    return %c0_i32, %c0_i32_0 : i32, i32
  }
  func.func @transform_16(%arg0: i32) -> (i32, i32) {
    %c0_i32 = arith.constant 0 : i32
    %c0_i32_0 = arith.constant 0 : i32
    %c0_i32_1 = arith.constant 0 : i32
    return %c0_i32, %c0_i32_0 : i32, i32
  }
  func.func @transform_17(%arg0: i32) -> (i32, i32) {
    %c0_i32 = arith.constant 0 : i32
    %c0_i32_0 = arith.constant 0 : i32
    %c0_i32_1 = arith.constant 0 : i32
    return %c0_i32, %c0_i32_0 : i32, i32
  }
  func.func @transform_18(%arg0: i32) -> (i32, i32) {
    %c0_i32 = arith.constant 0 : i32
    %c0_i32_0 = arith.constant 0 : i32
    %c0_i32_1 = arith.constant 0 : i32
    return %c0_i32, %c0_i32_0 : i32, i32
  }
  func.func @transform_19(%arg0: i32) -> (i32, i32) {
    %c0_i32 = arith.constant 0 : i32
    %c0_i32_0 = arith.constant 0 : i32
    %c0_i32_1 = arith.constant 0 : i32
    return %c0_i32, %c0_i32_0 : i32, i32
  }
  func.func @transform_20(%arg0: i32) -> (i32, i32, i32) {
    %c0_i32 = arith.constant 0 : i32
    %c0_i32_0 = arith.constant 0 : i32
    %c0_i32_1 = arith.constant 0 : i32
    return %arg0, %c0_i32, %c0_i32_0 : i32, i32, i32
  }
  func.func @transform_21(%arg0: i32) -> (i32, i32, i32) {
    %c0_i32 = arith.constant 0 : i32
    %c0_i32_0 = arith.constant 0 : i32
    %c0_i32_1 = arith.constant 0 : i32
    return %arg0, %c0_i32, %c0_i32_0 : i32, i32, i32
  }
  func.func @transform_22(%arg0: i32) -> (i32, i32, i32) {
    %c0_i32 = arith.constant 0 : i32
    %c0_i32_0 = arith.constant 0 : i32
    %c0_i32_1 = arith.constant 0 : i32
    return %arg0, %c0_i32, %c0_i32_0 : i32, i32, i32
  }
}

</mosaic_0001>

<llo_original>
// kernel: time_aligned_resnet_forward.1
$region0: #{time_aligned_resnet_forward.1}
  #allocation0 [shape = 'u32[]', space=smem, size = 0x4, offset = 0x4, fixed_abs, tag = 'smem constant byte address 0x4 - core index']
  #allocation1 [shape = 'u32[72,128]{1,0:T(1,128)}', space=vmem, size = 0x9000, scoped, tag = 'internal scratch']
  %s0 = inlined_call_operand.vmem [shape: f32[2,4,3,256], index: 0, kind: input, shape index: {}]
  %s1 = inlined_call_operand.vmem [shape: f32[9,1024], index: 1, kind: input, shape index: {}, may-alias: {1,4}]
  %s2 = inlined_call_operand.vmem [shape: bf16[8,27], index: 2, kind: input, shape index: {}]
  %s3 = inlined_call_operand.vmem [shape: f32[8,1], index: 3, kind: input, shape index: {}]
  %s4 = inlined_call_operand.vmem [shape: f32[9,1024], index: 4, kind: input, shape index: {}, may-alias: {1,4}]
  %s5 = inlined_call_operand.vmem [shape: bf16[16,72], index: 5, kind: input, shape index: {}]
  %s6 = inlined_call_operand.vmem [shape: f32[16,1], index: 6, kind: input, shape index: {}]
  %s7 = inlined_call_operand.vmem [shape: bf16[256,64], index: 7, kind: input, shape index: {}]
  %s8 = inlined_call_operand.vmem [shape: f32[9,256], index: 8, kind: input, shape index: {}]
  %s9 = inlined_call_operand.vmem [shape: bf16[32,144], index: 9, kind: input, shape index: {}]
  %s10 = inlined_call_operand.vmem [shape: f32[32,1], index: 10, kind: input, shape index: {}]
  %s11 = inlined_call_operand.vmem [shape: bf16[64,16], index: 11, kind: input, shape index: {}]
  %s12 = inlined_call_operand.vmem [shape: bf16[32,32], index: 12, kind: input, shape index: {}]
  %s13 = inlined_call_operand.vmem [shape: f32[32,1], index: 13, kind: input, shape index: {}]
  %s14 = inlined_call_operand.vmem [shape: bf16[32,32], index: 14, kind: input, shape index: {}]
  %s15 = inlined_call_operand.vmem [shape: f32[32,1], index: 15, kind: input, shape index: {}]
  %s16 = inlined_call_operand.vmem [shape: bf16[128,64], index: 16, kind: input, shape index: {}]
  %s17 = inlined_call_operand.vmem [shape: f32[1,64], index: 17, kind: input, shape index: {}]
  %s18 = inlined_call_operand.vmem [shape: bf16[64,10], index: 18, kind: input, shape index: {}]
  %s19 = inlined_call_operand.vmem [shape: f32[1,10], index: 19, kind: input, shape index: {}]
  %s20 = inlined_call_operand.vmem [shape: f32[2,32,64], index: 20, kind: output, shape index: {0}]
  %s21 = inlined_call_operand.hbm [shape: f32[2,1,64], index: 21, kind: output, shape index: {1}]
  %s22 = inlined_call_operand.hbm [shape: f32[2,1,10], index: 22, kind: output, shape index: {2}]
  %23 = xla_tuple %s20, %s21, %s22
  %s24 = sld [smem:[#allocation0]]
  $region129: #{time_aligned_resnet_forward.1} parent=0
    _
  %s26 = ssub.s32 1, %s24
  %s27 = scalar_select 0, %s26, %s24
  $region1: #{time_aligned_resnet_forward.1} parent=0
    #allocation2 [shape = 'u8[1024]{0}', space=vmem, size = 0x400, scoped, tag = 'output window, operand 1']
    #allocation3 [shape = 's32[2]{0}', space=sflag, size = 0x8, scoped, tag = 'scoped memory for time_aligned_resnet_forward.1']
    #allocation4 [shape = 'u8[1024]{0}', space=vmem, size = 0x400, scoped, tag = 'output window, operand 2']
    #allocation5 [shape = 's32[2]{0}', space=sflag, size = 0x8, scoped, tag = 'scoped memory for time_aligned_resnet_forward.1']
    %28 = vsyncpa [#allocation3], 0
    %s29 = scalar_lea.sflag [#allocation3], 1
    %30 = vsyncpa %s29, 0
    %31 = vsyncpa [#allocation5], 0
    %s32 = scalar_lea.sflag [#allocation5], 1
    %33 = vsyncpa %s32, 0
    loop: start=0, step=1, limit=4
    $region2: #{time_aligned_resnet_forward.1} parent=1 // loop_pre_header
      _
    $region3: #{time_aligned_resnet_forward.1} parent=1 // loop_header
      %s35 = sphi 0, %s39
      %p36 = scmp.ge.s32.totalorder %s35, 4
      %s45 = sphi 0, %s47
      %s48 = sphi 0, %s45
      %s49 = sphi 0, %s48
      %s65 = sphi 0, %s49
      %s69 = sphi 0, %s69
      %s71 = sphi 0, %s69
      %s72 = sphi 0, %s71
      %s86 = sphi 0, %s72
      %s90 = sphi 0, %s90
      %s92 = sphi 0, %s90
      %s93 = sphi 0, %s92
      %s107 = sphi 0, %s93
      %s111 = sphi 0, %s111
      %s113 = sphi 0, %s111
      %s114 = sphi 0, %s113
      %s128 = sphi 0, %s114
      %s132 = sphi 0, %s132
      %s134 = sphi 0, %s132
      %s135 = sphi 0, %s134
      %s149 = sphi 0, %s135
      %s153 = sphi 0, %s153
      %s155 = sphi 0, %s153
      %s156 = sphi 0, %s155
      %s170 = sphi 0, %s156
      %s174 = sphi 0, %s174
      %s176 = sphi 0, %s174
      %s177 = sphi 0, %s176
      %s191 = sphi 0, %s177
      %s195 = sphi 0, %s195
      %s197 = sphi 0, %s195
      %s198 = sphi 0, %s197
      %s212 = sphi 0, %s198
      %s216 = sphi 0, %s216
      %s218 = sphi 0, %s216
      %s219 = sphi 0, %s218
      %s233 = sphi 0, %s219
      %s237 = sphi 0, %s237
      %s239 = sphi 0, %s237
      %s240 = sphi 0, %s239
      %s254 = sphi 0, %s240
      %s258 = sphi 0, %s258
      %s260 = sphi 0, %s258
      %s261 = sphi 0, %s260
      %s275 = sphi 0, %s261
      %s279 = sphi 0, %s279
      %s281 = sphi 0, %s279
      %s282 = sphi 0, %s281
      %s296 = sphi 0, %s282
      %s300 = sphi 0, %s300
      %s302 = sphi 0, %s300
      %s303 = sphi 0, %s302
      %s317 = sphi 0, %s303
      %s321 = sphi 0, %s321
      %s323 = sphi 0, %s321
      %s324 = sphi 0, %s323
      %s338 = sphi 0, %s324
      %s342 = sphi 0, %s342
      %s344 = sphi 0, %s342
      %s345 = sphi 0, %s344
      %s359 = sphi 0, %s345
      %s363 = sphi 0, %s363
      %s365 = sphi 0, %s363
      %s366 = sphi 0, %s365
      %s380 = sphi 0, %s366
      %s384 = sphi 0, %s384
      %s386 = sphi 0, %s384
      %s387 = sphi 0, %s386
      %s401 = sphi 0, %s387
      %s405 = sphi 0, %s405
      %s407 = sphi 0, %s405
      %s408 = sphi 0, %s407
      %s422 = sphi 0, %s408
      %s426 = sphi 0, %s426
      %s428 = sphi 0, %s426
      %s429 = sphi 0, %s428
      %s443 = sphi 0, %s429
      %s447 = sphi 0, %s447
      %s449 = sphi 0, %s447
      %s450 = sphi 0, %s449
      %s464 = sphi 0, %s450
      %s470 = sphi 0, %s472
      %s473 = sphi 0, %s470
      %s474 = sphi 0, %s473
      %s490 = sphi 0, %s474
      %s496 = sphi 0, %s498
      %s499 = sphi 0, %s496
      %s500 = sphi 0, %s499
      %s516 = sphi 0, %s500
      %s522 = sphi 0, %s524
      %s525 = sphi 0, %s522
      %s526 = sphi 0, %s525
      %s542 = sphi 0, %s526
    $region4: #{time_aligned_resnet_forward.1} parent=1 // loop_header_branch
      %38 = sbr.rel (%p36) target = $region8
    $region5: #{time_aligned_resnet_forward.1} parent=1 // loop_body
      %s40 = ssub.s32 %s35, 1
      %s41 = ssub.s32 %s35, 2
      %s42 = sadd.s32 %s35, 1
      %s43 = ssub.s32 %s35, %s42
      %p44 = scmp.eq.s32.totalorder %s43, 0
      %s46 = sadd.s32 %s45, 1
      %s47 = scalar_select %p44, %s45, %s46
      %p50 = pneg %p44
      %p51 = scmp.eq.s32.totalorder %s35, 1
      %p52 = por %p50, %p51
      %p53 = scmp.ne.s32.totalorder %s45, %s48
      %p54 = scmp.eq.s32.totalorder %s35, 0
      %p55 = por %p53, %p54
      %p56 = scmp.ne.s32.totalorder %s45, %s48
      %p57 = scmp.eq.s32.totalorder %s40, 1
      %p58 = por %p56, %p57
      %p59 = scmp.ne.s32.totalorder %s48, %s49
      %p60 = scmp.eq.s32.totalorder %s40, 0
      %p61 = por %p59, %p60
      %p62 = scmp.ne.s32.totalorder %s48, %s49
      %p63 = scmp.eq.s32.totalorder %s41, 1
      %p64 = por %p62, %p63
      %p66 = scmp.ne.s32.totalorder %s49, %s65
      %p67 = scmp.eq.s32.totalorder %s41, 0
      %p68 = por %p66, %p67
      %s70 = sadd.s32 %s69, 1
      %p73 = scmp.eq.s32.totalorder %s35, 1
      %p74 = scmp.ne.s32.totalorder %s69, %s71
      %p75 = scmp.eq.s32.totalorder %s35, 0
      %p76 = por %p74, %p75
      %p77 = scmp.ne.s32.totalorder %s69, %s71
      %p78 = scmp.eq.s32.totalorder %s40, 1
      %p79 = por %p77, %p78
      %p80 = scmp.ne.s32.totalorder %s71, %s72
      %p81 = scmp.eq.s32.totalorder %s40, 0
      %p82 = por %p80, %p81
      %p83 = scmp.ne.s32.totalorder %s71, %s72
      %p84 = scmp.eq.s32.totalorder %s41, 1
      %p85 = por %p83, %p84
      %p87 = scmp.ne.s32.totalorder %s72, %s86
      %p88 = scmp.eq.s32.totalorder %s41, 0
      %p89 = por %p87, %p88
      %s91 = sadd.s32 %s90, 1
      %p94 = scmp.eq.s32.totalorder %s35, 1
      %p95 = scmp.ne.s32.totalorder %s90, %s92
      %p96 = scmp.eq.s32.totalorder %s35, 0
      %p97 = por %p95, %p96
      %p98 = scmp.ne.s32.totalorder %s90, %s92
      %p99 = scmp.eq.s32.totalorder %s40, 1
      %p100 = por %p98, %p99
      %p101 = scmp.ne.s32.totalorder %s92, %s93
      %p102 = scmp.eq.s32.totalorder %s40, 0
      %p103 = por %p101, %p102
      %p104 = scmp.ne.s32.totalorder %s92, %s93
      %p105 = scmp.eq.s32.totalorder %s41, 1
      %p106 = por %p104, %p105
      %p108 = scmp.ne.s32.totalorder %s93, %s107
      %p109 = scmp.eq.s32.totalorder %s41, 0
      %p110 = por %p108, %p109
      %s112 = sadd.s32 %s111, 1
      %p115 = scmp.eq.s32.totalorder %s35, 1
      %p116 = scmp.ne.s32.totalorder %s111, %s113
      %p117 = scmp.eq.s32.totalorder %s35, 0
      %p118 = por %p116, %p117
      %p119 = scmp.ne.s32.totalorder %s111, %s113
      %p120 = scmp.eq.s32.totalorder %s40, 1
      %p121 = por %p119, %p120
      %p122 = scmp.ne.s32.totalorder %s113, %s114
      %p123 = scmp.eq.s32.totalorder %s40, 0
      %p124 = por %p122, %p123
      %p125 = scmp.ne.s32.totalorder %s113, %s114
      %p126 = scmp.eq.s32.totalorder %s41, 1
      %p127 = por %p125, %p126
      %p129 = scmp.ne.s32.totalorder %s114, %s128
      %p130 = scmp.eq.s32.totalorder %s41, 0
      %p131 = por %p129, %p130
      %s133 = sadd.s32 %s132, 1
      %p136 = scmp.eq.s32.totalorder %s35, 1
      %p137 = scmp.ne.s32.totalorder %s132, %s134
      %p138 = scmp.eq.s32.totalorder %s35, 0
      %p139 = por %p137, %p138
      %p140 = scmp.ne.s32.totalorder %s132, %s134
      %p141 = scmp.eq.s32.totalorder %s40, 1
      %p142 = por %p140, %p141
      %p143 = scmp.ne.s32.totalorder %s134, %s135
      %p144 = scmp.eq.s32.totalorder %s40, 0
      %p145 = por %p143, %p144
      %p146 = scmp.ne.s32.totalorder %s134, %s135
      %p147 = scmp.eq.s32.totalorder %s41, 1
      %p148 = por %p146, %p147
      %p150 = scmp.ne.s32.totalorder %s135, %s149
      %p151 = scmp.eq.s32.totalorder %s41, 0
      %p152 = por %p150, %p151
      %s154 = sadd.s32 %s153, 1
      %p157 = scmp.eq.s32.totalorder %s35, 1
      %p158 = scmp.ne.s32.totalorder %s153, %s155
      %p159 = scmp.eq.s32.totalorder %s35, 0
      %p160 = por %p158, %p159
      %p161 = scmp.ne.s32.totalorder %s153, %s155
      %p162 = scmp.eq.s32.totalorder %s40, 1
      %p163 = por %p161, %p162
      %p164 = scmp.ne.s32.totalorder %s155, %s156
      %p165 = scmp.eq.s32.totalorder %s40, 0
      %p166 = por %p164, %p165
      %p167 = scmp.ne.s32.totalorder %s155, %s156
      %p168 = scmp.eq.s32.totalorder %s41, 1
      %p169 = por %p167, %p168
      %p171 = scmp.ne.s32.totalorder %s156, %s170
      %p172 = scmp.eq.s32.totalorder %s41, 0
      %p173 = por %p171, %p172
      %s175 = sadd.s32 %s174, 1
      %p178 = scmp.eq.s32.totalorder %s35, 1
      %p179 = scmp.ne.s32.totalorder %s174, %s176
      %p180 = scmp.eq.s32.totalorder %s35, 0
      %p181 = por %p179, %p180
      %p182 = scmp.ne.s32.totalorder %s174, %s176
      %p183 = scmp.eq.s32.totalorder %s40, 1
      %p184 = por %p182, %p183
      %p185 = scmp.ne.s32.totalorder %s176, %s177
      %p186 = scmp.eq.s32.totalorder %s40, 0
      %p187 = por %p185, %p186
      %p188 = scmp.ne.s32.totalorder %s176, %s177
      %p189 = scmp.eq.s32.totalorder %s41, 1
      %p190 = por %p188, %p189
      %p192 = scmp.ne.s32.totalorder %s177, %s191
      %p193 = scmp.eq.s32.totalorder %s41, 0
      %p194 = por %p192, %p193
      %s196 = sadd.s32 %s195, 1
      %p199 = scmp.eq.s32.totalorder %s35, 1
      %p200 = scmp.ne.s32.totalorder %s195, %s197
      %p201 = scmp.eq.s32.totalorder %s35, 0
      %p202 = por %p200, %p201
      %p203 = scmp.ne.s32.totalorder %s195, %s197
      %p204 = scmp.eq.s32.totalorder %s40, 1
      %p205 = por %p203, %p204
      %p206 = scmp.ne.s32.totalorder %s197, %s198
      %p207 = scmp.eq.s32.totalorder %s40, 0
      %p208 = por %p206, %p207
      %p209 = scmp.ne.s32.totalorder %s197, %s198
      %p210 = scmp.eq.s32.totalorder %s41, 1
      %p211 = por %p209, %p210
      %p213 = scmp.ne.s32.totalorder %s198, %s212
      %p214 = scmp.eq.s32.totalorder %s41, 0
      %p215 = por %p213, %p214
      %s217 = sadd.s32 %s216, 1
      %p220 = scmp.eq.s32.totalorder %s35, 1
      %p221 = scmp.ne.s32.totalorder %s216, %s218
      %p222 = scmp.eq.s32.totalorder %s35, 0
      %p223 = por %p221, %p222
      %p224 = scmp.ne.s32.totalorder %s216, %s218
      %p225 = scmp.eq.s32.totalorder %s40, 1
      %p226 = por %p224, %p225
      %p227 = scmp.ne.s32.totalorder %s218, %s219
      %p228 = scmp.eq.s32.totalorder %s40, 0
      %p229 = por %p227, %p228
      %p230 = scmp.ne.s32.totalorder %s218, %s219
      %p231 = scmp.eq.s32.totalorder %s41, 1
      %p232 = por %p230, %p231
      %p234 = scmp.ne.s32.totalorder %s219, %s233
      %p235 = scmp.eq.s32.totalorder %s41, 0
      %p236 = por %p234, %p235
      %s238 = sadd.s32 %s237, 1
      %p241 = scmp.eq.s32.totalorder %s35, 1
      %p242 = scmp.ne.s32.totalorder %s237, %s239
      %p243 = scmp.eq.s32.totalorder %s35, 0
      %p244 = por %p242, %p243
      %p245 = scmp.ne.s32.totalorder %s237, %s239
      %p246 = scmp.eq.s32.totalorder %s40, 1
      %p247 = por %p245, %p246
      %p248 = scmp.ne.s32.totalorder %s239, %s240
      %p249 = scmp.eq.s32.totalorder %s40, 0
      %p250 = por %p248, %p249
      %p251 = scmp.ne.s32.totalorder %s239, %s240
      %p252 = scmp.eq.s32.totalorder %s41, 1
      %p253 = por %p251, %p252
      %p255 = scmp.ne.s32.totalorder %s240, %s254
      %p256 = scmp.eq.s32.totalorder %s41, 0
      %p257 = por %p255, %p256
      %s259 = sadd.s32 %s258, 1
      %p262 = scmp.eq.s32.totalorder %s35, 1
      %p263 = scmp.ne.s32.totalorder %s258, %s260
      %p264 = scmp.eq.s32.totalorder %s35, 0
      %p265 = por %p263, %p264
      %p266 = scmp.ne.s32.totalorder %s258, %s260
      %p267 = scmp.eq.s32.totalorder %s40, 1
      %p268 = por %p266, %p267
      %p269 = scmp.ne.s32.totalorder %s260, %s261
      %p270 = scmp.eq.s32.totalorder %s40, 0
      %p271 = por %p269, %p270
      %p272 = scmp.ne.s32.totalorder %s260, %s261
      %p273 = scmp.eq.s32.totalorder %s41, 1
      %p274 = por %p272, %p273
      %p276 = scmp.ne.s32.totalorder %s261, %s275
      %p277 = scmp.eq.s32.totalorder %s41, 0
      %p278 = por %p276, %p277
      %s280 = sadd.s32 %s279, 1
      %p283 = scmp.eq.s32.totalorder %s35, 1
      %p284 = scmp.ne.s32.totalorder %s279, %s281
      %p285 = scmp.eq.s32.totalorder %s35, 0
      %p286 = por %p284, %p285
      %p287 = scmp.ne.s32.totalorder %s279, %s281
      %p288 = scmp.eq.s32.totalorder %s40, 1
      %p289 = por %p287, %p288
      %p290 = scmp.ne.s32.totalorder %s281, %s282
      %p291 = scmp.eq.s32.totalorder %s40, 0
      %p292 = por %p290, %p291
      %p293 = scmp.ne.s32.totalorder %s281, %s282
      %p294 = scmp.eq.s32.totalorder %s41, 1
      %p295 = por %p293, %p294
      %p297 = scmp.ne.s32.totalorder %s282, %s296
      %p298 = scmp.eq.s32.totalorder %s41, 0
      %p299 = por %p297, %p298
      %s301 = sadd.s32 %s300, 1
      %p304 = scmp.eq.s32.totalorder %s35, 1
      %p305 = scmp.ne.s32.totalorder %s300, %s302
      %p306 = scmp.eq.s32.totalorder %s35, 0
      %p307 = por %p305, %p306
      %p308 = scmp.ne.s32.totalorder %s300, %s302
      %p309 = scmp.eq.s32.totalorder %s40, 1
      %p310 = por %p308, %p309
      %p311 = scmp.ne.s32.totalorder %s302, %s303
      %p312 = scmp.eq.s32.totalorder %s40, 0
      %p313 = por %p311, %p312
      %p314 = scmp.ne.s32.totalorder %s302, %s303
      %p315 = scmp.eq.s32.totalorder %s41, 1
      %p316 = por %p314, %p315
      %p318 = scmp.ne.s32.totalorder %s303, %s317
      %p319 = scmp.eq.s32.totalorder %s41, 0
      %p320 = por %p318, %p319
      %s322 = sadd.s32 %s321, 1
      %p325 = scmp.eq.s32.totalorder %s35, 1
      %p326 = scmp.ne.s32.totalorder %s321, %s323
      %p327 = scmp.eq.s32.totalorder %s35, 0
      %p328 = por %p326, %p327
      %p329 = scmp.ne.s32.totalorder %s321, %s323
      %p330 = scmp.eq.s32.totalorder %s40, 1
      %p331 = por %p329, %p330
      %p332 = scmp.ne.s32.totalorder %s323, %s324
      %p333 = scmp.eq.s32.totalorder %s40, 0
      %p334 = por %p332, %p333
      %p335 = scmp.ne.s32.totalorder %s323, %s324
      %p336 = scmp.eq.s32.totalorder %s41, 1
      %p337 = por %p335, %p336
      %p339 = scmp.ne.s32.totalorder %s324, %s338
      %p340 = scmp.eq.s32.totalorder %s41, 0
      %p341 = por %p339, %p340
      %s343 = sadd.s32 %s342, 1
      %p346 = scmp.eq.s32.totalorder %s35, 1
      %p347 = scmp.ne.s32.totalorder %s342, %s344
      %p348 = scmp.eq.s32.totalorder %s35, 0
      %p349 = por %p347, %p348
      %p350 = scmp.ne.s32.totalorder %s342, %s344
      %p351 = scmp.eq.s32.totalorder %s40, 1
      %p352 = por %p350, %p351
      %p353 = scmp.ne.s32.totalorder %s344, %s345
      %p354 = scmp.eq.s32.totalorder %s40, 0
      %p355 = por %p353, %p354
      %p356 = scmp.ne.s32.totalorder %s344, %s345
      %p357 = scmp.eq.s32.totalorder %s41, 1
      %p358 = por %p356, %p357
      %p360 = scmp.ne.s32.totalorder %s345, %s359
      %p361 = scmp.eq.s32.totalorder %s41, 0
      %p362 = por %p360, %p361
      %s364 = sadd.s32 %s363, 1
      %p367 = scmp.eq.s32.totalorder %s35, 1
      %p368 = scmp.ne.s32.totalorder %s363, %s365
      %p369 = scmp.eq.s32.totalorder %s35, 0
      %p370 = por %p368, %p369
      %p371 = scmp.ne.s32.totalorder %s363, %s365
      %p372 = scmp.eq.s32.totalorder %s40, 1
      %p373 = por %p371, %p372
      %p374 = scmp.ne.s32.totalorder %s365, %s366
      %p375 = scmp.eq.s32.totalorder %s40, 0
      %p376 = por %p374, %p375
      %p377 = scmp.ne.s32.totalorder %s365, %s366
      %p378 = scmp.eq.s32.totalorder %s41, 1
      %p379 = por %p377, %p378
      %p381 = scmp.ne.s32.totalorder %s366, %s380
      %p382 = scmp.eq.s32.totalorder %s41, 0
      %p383 = por %p381, %p382
      %s385 = sadd.s32 %s384, 1
      %p388 = scmp.eq.s32.totalorder %s35, 1
      %p389 = scmp.ne.s32.totalorder %s384, %s386
      %p390 = scmp.eq.s32.totalorder %s35, 0
      %p391 = por %p389, %p390
      %p392 = scmp.ne.s32.totalorder %s384, %s386
      %p393 = scmp.eq.s32.totalorder %s40, 1
      %p394 = por %p392, %p393
      %p395 = scmp.ne.s32.totalorder %s386, %s387
      %p396 = scmp.eq.s32.totalorder %s40, 0
      %p397 = por %p395, %p396
      %p398 = scmp.ne.s32.totalorder %s386, %s387
      %p399 = scmp.eq.s32.totalorder %s41, 1
      %p400 = por %p398, %p399
      %p402 = scmp.ne.s32.totalorder %s387, %s401
      %p403 = scmp.eq.s32.totalorder %s41, 0
      %p404 = por %p402, %p403
      %s406 = sadd.s32 %s405, 1
      %p409 = scmp.eq.s32.totalorder %s35, 1
      %p410 = scmp.ne.s32.totalorder %s405, %s407
      %p411 = scmp.eq.s32.totalorder %s35, 0
      %p412 = por %p410, %p411
      %p413 = scmp.ne.s32.totalorder %s405, %s407
      %p414 = scmp.eq.s32.totalorder %s40, 1
      %p415 = por %p413, %p414
      %p416 = scmp.ne.s32.totalorder %s407, %s408
      %p417 = scmp.eq.s32.totalorder %s40, 0
      %p418 = por %p416, %p417
      %p419 = scmp.ne.s32.totalorder %s407, %s408
      %p420 = scmp.eq.s32.totalorder %s41, 1
      %p421 = por %p419, %p420
      %p423 = scmp.ne.s32.totalorder %s408, %s422
      %p424 = scmp.eq.s32.totalorder %s41, 0
      %p425 = por %p423, %p424
      %s427 = sadd.s32 %s426, 1
      %p430 = scmp.eq.s32.totalorder %s35, 1
      %p431 = scmp.ne.s32.totalorder %s426, %s428
      %p432 = scmp.eq.s32.totalorder %s35, 0
      %p433 = por %p431, %p432
      %p434 = scmp.ne.s32.totalorder %s426, %s428
      %p435 = scmp.eq.s32.totalorder %s40, 1
      %p436 = por %p434, %p435
      %p437 = scmp.ne.s32.totalorder %s428, %s429
      %p438 = scmp.eq.s32.totalorder %s40, 0
      %p439 = por %p437, %p438
      %p440 = scmp.ne.s32.totalorder %s428, %s429
      %p441 = scmp.eq.s32.totalorder %s41, 1
      %p442 = por %p440, %p441
      %p444 = scmp.ne.s32.totalorder %s429, %s443
      %p445 = scmp.eq.s32.totalorder %s41, 0
      %p446 = por %p444, %p445
      %s448 = sadd.s32 %s447, 1
      %p451 = scmp.eq.s32.totalorder %s35, 1
      %p452 = scmp.ne.s32.totalorder %s447, %s449
      %p453 = scmp.eq.s32.totalorder %s35, 0
      %p454 = por %p452, %p453
      %p455 = scmp.ne.s32.totalorder %s447, %s449
      %p456 = scmp.eq.s32.totalorder %s40, 1
      %p457 = por %p455, %p456
      %p458 = scmp.ne.s32.totalorder %s449, %s450
      %p459 = scmp.eq.s32.totalorder %s40, 0
      %p460 = por %p458, %p459
      %p461 = scmp.ne.s32.totalorder %s449, %s450
      %p462 = scmp.eq.s32.totalorder %s41, 1
      %p463 = por %p461, %p462
      %p465 = scmp.ne.s32.totalorder %s450, %s464
      %p466 = scmp.eq.s32.totalorder %s41, 0
      %p467 = por %p465, %p466
      %s468 = ssub.s32 %s35, %s42
      %p469 = scmp.eq.s32.totalorder %s468, 0
      %s471 = sadd.s32 %s470, 1
      %s472 = scalar_select %p469, %s470, %s471
      %p475 = pneg %p469
      %p476 = scmp.eq.s32.totalorder %s35, 1
      %p477 = por %p475, %p476
      %p478 = scmp.ne.s32.totalorder %s470, %s473
      %p479 = scmp.eq.s32.totalorder %s35, 0
      %p480 = por %p478, %p479
      %p481 = scmp.ne.s32.totalorder %s470, %s473
      %p482 = scmp.eq.s32.totalorder %s40, 1
      %p483 = por %p481, %p482
      %p484 = scmp.ne.s32.totalorder %s473, %s474
      %p485 = scmp.eq.s32.totalorder %s40, 0
      %p486 = por %p484, %p485
      %p487 = scmp.ne.s32.totalorder %s473, %s474
      %p488 = scmp.eq.s32.totalorder %s41, 1
      %p489 = por %p487, %p488
      %p491 = scmp.ne.s32.totalorder %s474, %s490
      %p492 = scmp.eq.s32.totalorder %s41, 0
      %p493 = por %p491, %p492
      %s494 = ssub.s32 %s35, %s42
      %p495 = scmp.eq.s32.totalorder %s494, 0
      %s497 = sadd.s32 %s496, 1
      %s498 = scalar_select %p495, %s496, %s497
      %p501 = pneg %p495
      %p502 = scmp.eq.s32.totalorder %s35, 1
      %p503 = por %p501, %p502
      %p504 = scmp.ne.s32.totalorder %s496, %s499
      %p505 = scmp.eq.s32.totalorder %s35, 0
      %p506 = por %p504, %p505
      %p507 = scmp.ne.s32.totalorder %s496, %s499
      %p508 = scmp.eq.s32.totalorder %s40, 1
      %p509 = por %p507, %p508
      %p510 = scmp.ne.s32.totalorder %s499, %s500
      %p511 = scmp.eq.s32.totalorder %s40, 0
      %p512 = por %p510, %p511
      %p513 = scmp.ne.s32.totalorder %s499, %s500
      %p514 = scmp.eq.s32.totalorder %s41, 1
      %p515 = por %p513, %p514
      %p517 = scmp.ne.s32.totalorder %s500, %s516
      %p518 = scmp.eq.s32.totalorder %s41, 0
      %p519 = por %p517, %p518
      %s520 = ssub.s32 %s35, %s42
      %p521 = scmp.eq.s32.totalorder %s520, 0
      %s523 = sadd.s32 %s522, 1
      %s524 = scalar_select %p521, %s522, %s523
      %p527 = pneg %p521
      %p528 = scmp.eq.s32.totalorder %s35, 1
      %p529 = por %p527, %p528
      %p530 = scmp.ne.s32.totalorder %s522, %s525
      %p531 = scmp.eq.s32.totalorder %s35, 0
      %p532 = por %p530, %p531
      %p533 = scmp.ne.s32.totalorder %s522, %s525
      %p534 = scmp.eq.s32.totalorder %s40, 1
      %p535 = por %p533, %p534
      %p536 = scmp.ne.s32.totalorder %s525, %s526
      %p537 = scmp.eq.s32.totalorder %s40, 0
      %p538 = por %p536, %p537
      %p539 = scmp.ne.s32.totalorder %s525, %s526
      %p540 = scmp.eq.s32.totalorder %s41, 1
      %p541 = por %p539, %p540
      %p543 = scmp.ne.s32.totalorder %s526, %s542
      %p544 = scmp.eq.s32.totalorder %s41, 0
      %p545 = por %p543, %p544
      %p546 = scmp.le.s32.totalorder 1, %s35
      %p547 = scmp.lt.s32.totalorder %s35, 3
      %p548 = pnand %p546, %p547
      %p549 = pneg %p548
      // Predicated region
      $region9: #{time_aligned_resnet_forward.1} parent=5 // pred_check
        _
      $region10: #{time_aligned_resnet_forward.1} parent=5 // pred_check_branch
        %551 = sbr.rel (%p548) target = $region12
      $region11: #{time_aligned_resnet_forward.1} parent=5 // pred_region
        %s552 = ssub.s32 %s35, 1
        // Predicated region
        $region13: #{time_aligned_resnet_forward.1} parent=11 // pred_check
          %p553 = pneg %p82
        $region14: #{time_aligned_resnet_forward.1} parent=11 // pred_check_branch
          %555 = sbr.rel (%p553) target = $region16
        $region15: #{time_aligned_resnet_forward.1} parent=11 // pred_region
          _
        $region16: #{time_aligned_resnet_forward.1} parent=11 // pred_fallthru
          _
        // Predicated region
        $region17: #{time_aligned_resnet_forward.1} parent=11 // pred_check
          %p556 = pneg %p103
        $region18: #{time_aligned_resnet_forward.1} parent=11 // pred_check_branch
          %558 = sbr.rel (%p556) target = $region20
        $region19: #{time_aligned_resnet_forward.1} parent=11 // pred_region
          _
        $region20: #{time_aligned_resnet_forward.1} parent=11 // pred_fallthru
          _
        // Predicated region
        $region21: #{time_aligned_resnet_forward.1} parent=11 // pred_check
          %p559 = pneg %p124
        $region22: #{time_aligned_resnet_forward.1} parent=11 // pred_check_branch
          %561 = sbr.rel (%p559) target = $region24
        $region23: #{time_aligned_resnet_forward.1} parent=11 // pred_region
          _
        $region24: #{time_aligned_resnet_forward.1} parent=11 // pred_fallthru
          _
        // Predicated region
        $region25: #{time_aligned_resnet_forward.1} parent=11 // pred_check
          %p562 = pneg %p145
        $region26: #{time_aligned_resnet_forward.1} parent=11 // pred_check_branch
          %564 = sbr.rel (%p562) target = $region28
        $region27: #{time_aligned_resnet_forward.1} parent=11 // pred_region
          _
        $region28: #{time_aligned_resnet_forward.1} parent=11 // pred_fallthru
          _
        // Predicated region
        $region29: #{time_aligned_resnet_forward.1} parent=11 // pred_check
          %p565 = pneg %p166
        $region30: #{time_aligned_resnet_forward.1} parent=11 // pred_check_branch
          %567 = sbr.rel (%p565) target = $region32
        $region31: #{time_aligned_resnet_forward.1} parent=11 // pred_region
          _
        $region32: #{time_aligned_resnet_forward.1} parent=11 // pred_fallthru
          _
        // Predicated region
        $region33: #{time_aligned_resnet_forward.1} parent=11 // pred_check
          %p568 = pneg %p187
        $region34: #{time_aligned_resnet_forward.1} parent=11 // pred_check_branch
          %570 = sbr.rel (%p568) target = $region36
        $region35: #{time_aligned_resnet_forward.1} parent=11 // pred_region
          _
        $region36: #{time_aligned_resnet_forward.1} parent=11 // pred_fallthru
          _
        // Predicated region
        $region37: #{time_aligned_resnet_forward.1} parent=11 // pred_check
          %p571 = pneg %p208
        $region38: #{time_aligned_resnet_forward.1} parent=11 // pred_check_branch
          %573 = sbr.rel (%p571) target = $region40
        $region39: #{time_aligned_resnet_forward.1} parent=11 // pred_region
          _
        $region40: #{time_aligned_resnet_forward.1} parent=11 // pred_fallthru
          _
        // Predicated region
        $region41: #{time_aligned_resnet_forward.1} parent=11 // pred_check
          %p574 = pneg %p229
        $region42: #{time_aligned_resnet_forward.1} parent=11 // pred_check_branch
          %576 = sbr.rel (%p574) target = $region44
        $region43: #{time_aligned_resnet_forward.1} parent=11 // pred_region
          _
        $region44: #{time_aligned_resnet_forward.1} parent=11 // pred_fallthru
          _
        // Predicated region
        $region45: #{time_aligned_resnet_forward.1} parent=11 // pred_check
          %p577 = pneg %p250
        $region46: #{time_aligned_resnet_forward.1} parent=11 // pred_check_branch
          %579 = sbr.rel (%p577) target = $region48
        $region47: #{time_aligned_resnet_forward.1} parent=11 // pred_region
          _
        $region48: #{time_aligned_resnet_forward.1} parent=11 // pred_fallthru
          _
        // Predicated region
        $region49: #{time_aligned_resnet_forward.1} parent=11 // pred_check
          %p580 = pneg %p271
        $region50: #{time_aligned_resnet_forward.1} parent=11 // pred_check_branch
          %582 = sbr.rel (%p580) target = $region52
        $region51: #{time_aligned_resnet_forward.1} parent=11 // pred_region
          _
        $region52: #{time_aligned_resnet_forward.1} parent=11 // pred_fallthru
          _
        // Predicated region
        $region53: #{time_aligned_resnet_forward.1} parent=11 // pred_check
          %p583 = pneg %p292
        $region54: #{time_aligned_resnet_forward.1} parent=11 // pred_check_branch
          %585 = sbr.rel (%p583) target = $region56
        $region55: #{time_aligned_resnet_forward.1} parent=11 // pred_region
          _
        $region56: #{time_aligned_resnet_forward.1} parent=11 // pred_fallthru
          _
        // Predicated region
        $region57: #{time_aligned_resnet_forward.1} parent=11 // pred_check
          %p586 = pneg %p313
        $region58: #{time_aligned_resnet_forward.1} parent=11 // pred_check_branch
          %588 = sbr.rel (%p586) target = $region60
        $region59: #{time_aligned_resnet_forward.1} parent=11 // pred_region
          _
        $region60: #{time_aligned_resnet_forward.1} parent=11 // pred_fallthru
          _
        // Predicated region
        $region61: #{time_aligned_resnet_forward.1} parent=11 // pred_check
          %p589 = pneg %p334
        $region62: #{time_aligned_resnet_forward.1} parent=11 // pred_check_branch
          %591 = sbr.rel (%p589) target = $region64
        $region63: #{time_aligned_resnet_forward.1} parent=11 // pred_region
          _
        $region64: #{time_aligned_resnet_forward.1} parent=11 // pred_fallthru
          _
        // Predicated region
        $region65: #{time_aligned_resnet_forward.1} parent=11 // pred_check
          %p592 = pneg %p355
        $region66: #{time_aligned_resnet_forward.1} parent=11 // pred_check_branch
          %594 = sbr.rel (%p592) target = $region68
        $region67: #{time_aligned_resnet_forward.1} parent=11 // pred_region
          _
        $region68: #{time_aligned_resnet_forward.1} parent=11 // pred_fallthru
          _
        // Predicated region
        $region69: #{time_aligned_resnet_forward.1} parent=11 // pred_check
          %p595 = pneg %p376
        $region70: #{time_aligned_resnet_forward.1} parent=11 // pred_check_branch
          %597 = sbr.rel (%p595) target = $region72
        $region71: #{time_aligned_resnet_forward.1} parent=11 // pred_region
          _
        $region72: #{time_aligned_resnet_forward.1} parent=11 // pred_fallthru
          _
        // Predicated region
        $region73: #{time_aligned_resnet_forward.1} parent=11 // pred_check
          %p598 = pneg %p397
        $region74: #{time_aligned_resnet_forward.1} parent=11 // pred_check_branch
          %600 = sbr.rel (%p598) target = $region76
        $region75: #{time_aligned_resnet_forward.1} parent=11 // pred_region
          _
        $region76: #{time_aligned_resnet_forward.1} parent=11 // pred_fallthru
          _
        // Predicated region
        $region77: #{time_aligned_resnet_forward.1} parent=11 // pred_check
          %p601 = pneg %p418
        $region78: #{time_aligned_resnet_forward.1} parent=11 // pred_check_branch
          %603 = sbr.rel (%p601) target = $region80
        $region79: #{time_aligned_resnet_forward.1} parent=11 // pred_region
          _
        $region80: #{time_aligned_resnet_forward.1} parent=11 // pred_fallthru
          _
        // Predicated region
        $region81: #{time_aligned_resnet_forward.1} parent=11 // pred_check
          %p604 = pneg %p439
        $region82: #{time_aligned_resnet_forward.1} parent=11 // pred_check_branch
          %606 = sbr.rel (%p604) target = $region84
        $region83: #{time_aligned_resnet_forward.1} parent=11 // pred_region
          _
        $region84: #{time_aligned_resnet_forward.1} parent=11 // pred_fallthru
          _
        // Predicated region
        $region85: #{time_aligned_resnet_forward.1} parent=11 // pred_check
          %p607 = pneg %p460
        $region86: #{time_aligned_resnet_forward.1} parent=11 // pred_check_branch
          %609 = sbr.rel (%p607) target = $region88
        $region87: #{time_aligned_resnet_forward.1} parent=11 // pred_region
          _
        $region88: #{time_aligned_resnet_forward.1} parent=11 // pred_fallthru
          _
      $region12: #{time_aligned_resnet_forward.1} parent=5 // pred_fallthru
        _
      %p610 = scmp.lt.s32.totalorder %s35, 2
      // Predicated region
      $region89: #{time_aligned_resnet_forward.1} parent=5 // pred_check
        %p611 = pneg %p610
      $region90: #{time_aligned_resnet_forward.1} parent=5 // pred_check_branch
        %613 = sbr.rel (%p611) target = $region92
      $region91: #{time_aligned_resnet_forward.1} parent=5 // pred_region
        // Predicated region
        $region93: #{time_aligned_resnet_forward.1} parent=91 // pred_check
          %p614 = pneg %p55
        $region94: #{time_aligned_resnet_forward.1} parent=91 // pred_check_branch
          %616 = sbr.rel (%p614) target = $region96
        $region95: #{time_aligned_resnet_forward.1} parent=91 // pred_region
          %p617 = scmp.lt.s32.totalorder %s35, 1
          %s618 = scalar_select %p617, %s35, 1
          %s619 = smul.addr %s618, 8
          %s620 = smul.addr %s619, 4
          %s621 = scalar_lea.vmem %s0, %s620
        $region96: #{time_aligned_resnet_forward.1} parent=91 // pred_fallthru
          _
      $region92: #{time_aligned_resnet_forward.1} parent=5 // pred_fallthru
        _
      %p622 = scmp.le.s32.totalorder 1, %s35
      %p623 = scmp.lt.s32.totalorder %s35, 3
      %p624 = pnand %p622, %p623
      %p625 = pneg %p624
      // Predicated region
      $region97: #{time_aligned_resnet_forward.1} parent=5 // pred_check
        _
      $region98: #{time_aligned_resnet_forward.1} parent=5 // pred_check_branch
        %627 = sbr.rel (%p624) target = $region100
      $region99: #{time_aligned_resnet_forward.1} parent=5 // pred_region
        %s628 = ssub.s32 %s35, 1
        %p629 = scmp.lt.s32.totalorder %s40, 1
        %s630 = scalar_select %p629, %s40, 1
        %s631 = smul.addr %s630, 8
        %s632 = smul.addr %s631, 4
        %s633 = scalar_lea.vmem %s0, %s632
        %p634 = pneg %p61
        %p635 = pneg %p58
        %p636 = pneg %p82
        %p637 = pneg %p79
        %p638 = pneg %p103
        %p639 = pneg %p100
        %p640 = pneg %p124
        %p641 = pneg %p121
        %p642 = pneg %p145
        %p643 = pneg %p142
        %p644 = pneg %p166
        %p645 = pneg %p163
        %p646 = pneg %p187
        %p647 = pneg %p184
        %p648 = pneg %p208
        %p649 = pneg %p205
        %p650 = pneg %p229
        %p651 = pneg %p226
        %p652 = pneg %p250
        %p653 = pneg %p247
        %p654 = pneg %p271
        %p655 = pneg %p268
        %p656 = pneg %p292
        %p657 = pneg %p289
        %p658 = pneg %p313
        %p659 = pneg %p310
        %p660 = pneg %p334
        %p661 = pneg %p331
        %p662 = pneg %p355
        %p663 = pneg %p352
        %p664 = pneg %p376
        %p665 = pneg %p373
        %p666 = pneg %p397
        %p667 = pneg %p394
        %p668 = pneg %p418
        %p669 = pneg %p415
        %p670 = pneg %p439
        %p671 = pneg %p436
        %p672 = pneg %p460
        %p673 = pneg %p457
        %p674 = pneg %p486
        %p675 = pneg %p483
        %p676 = scmp.lt.s32.totalorder %s40, 1
        %s677 = scalar_select %p676, %s40, 1
        %s678 = smul.addr %s677, 4
        %s679 = smul.addr %s678, 8
        %s680 = scalar_lea.vmem %s20, %s679
        %p681 = pneg %p512
        %p682 = pneg %p509
        %s683 = sand.u32 %s499, 1
        %s684 = scalar_lea.sflag [#allocation3], %s683
        %s685 = sand.u32 %s499, 1
        %s686 = scalar_lea.vmem [#allocation2], %s685
        %p687 = pneg %p538
        %p688 = pneg %p535
        %s689 = sand.u32 %s525, 1
        %s690 = scalar_lea.sflag [#allocation5], %s689
        %s691 = sand.u32 %s525, 1
        %s692 = scalar_lea.vmem [#allocation4], %s691
        %p693 = scmp.lt.s32.totalorder %s40, 1
        %s694 = scalar_select %p693, %s40, 1
        %s695 = smul.addr %s694, 8
        %s696 = smul.addr %s695, 4
        %s697 = scalar_lea.vmem %s0, %s696
        %p698 = scmp.lt.s32.totalorder %s40, 1
        %s699 = scalar_select %p698, %s40, 1
        %s700 = smul.addr %s699, 4
        %s701 = smul.addr %s700, 8
        %s702 = scalar_lea.vmem %s20, %s701
        %v704 = vld [vmem:[%s697] sm:$0x77]
        %s705 = scalar_lea.vmem %s697, 8
        %v706 = vld [vmem:[%s705] sm:$0x77]
        %s707 = scalar_lea.vmem %s697, 16
        %v708 = vld [vmem:[%s707] sm:$0x77]
        %s709 = scalar_lea.vmem %s697, 24
        %v710 = vld [vmem:[%s709] sm:$0x77]
        %712 = vst [vmem:[#allocation1] ss:$2 sm:$0xff] %v704
        %v713 = vld.sshfl [vmem:[#allocation1] sm:$0xff pattern:$0x75316420]
        %v714 = vld.sshfl [vmem:[#allocation1 + $0x8] sm:$0xff pattern:$0x75316420]
        %718 = vst [vmem:[#allocation1] ss:$2 sm:$0xff] %v706
        %v719 = vld.sshfl [vmem:[#allocation1] sm:$0xff pattern:$0x75316420]
        %v720 = vld.sshfl [vmem:[#allocation1 + $0x8] sm:$0xff pattern:$0x75316420]
        %724 = vst [vmem:[#allocation1] ss:$2 sm:$0xff] %v708
        %v725 = vld.sshfl [vmem:[#allocation1] sm:$0xff pattern:$0x75316420]
        %v726 = vld.sshfl [vmem:[#allocation1 + $0x8] sm:$0xff pattern:$0x75316420]
        %730 = vst [vmem:[#allocation1] ss:$2 sm:$0xff] %v710
        %v731 = vld.sshfl [vmem:[#allocation1] sm:$0xff pattern:$0x75316420]
        %v732 = vld.sshfl [vmem:[#allocation1 + $0x8] sm:$0xff pattern:$0x75316420]
        %v735 = vld [vmem:[%s1] sm:$0xff]
        %v736 = vld [vmem:[%s1 + $0x8] sm:$0xff]
        %v737 = vld [vmem:[%s1 + $0x10] sm:$0xff]
        %v738 = vld [vmem:[%s1 + $0x18] sm:$0xff]
        %v739 = vld [vmem:[%s1 + $0x20] sm:$0xff]
        %v740 = vld [vmem:[%s1 + $0x28] sm:$0xff]
        %v741 = vld [vmem:[%s1 + $0x30] sm:$0xff]
        %v742 = vld [vmem:[%s1 + $0x38] sm:$0xff]
        %v743 = vld [vmem:[%s1 + $0x40] sm:$0x1]
        %v744 = vld [vmem:[%s1 + $0x48] sm:$0x1]
        %v745 = vld [vmem:[%s1 + $0x50] sm:$0x1]
        %v746 = vld [vmem:[%s1 + $0x58] sm:$0x1]
        %v747 = vld [vmem:[%s1 + $0x60] sm:$0x1]
        %v748 = vld [vmem:[%s1 + $0x68] sm:$0x1]
        %v749 = vld [vmem:[%s1 + $0x70] sm:$0x1]
        %v750 = vld [vmem:[%s1 + $0x78] sm:$0x1]
        %751 = vrot.lane.b32.xlu0 %v713, 17
        %v752 = vpop.permute.xlu0 %751
        %753 = vrot.lane.b32.xlu0 %v714, 17
        %v754 = vpop.permute.xlu0 %753
        %755 = vrot.lane.b32.xlu0 %v719, 17
        %v756 = vpop.permute.xlu0 %755
        %757 = vrot.lane.b32.xlu0 %v720, 17
        %v758 = vpop.permute.xlu0 %757
        %759 = vrot.lane.b32.xlu0 %v725, 17
        %v760 = vpop.permute.xlu0 %759
        %761 = vrot.lane.b32.xlu0 %v726, 17
        %v762 = vpop.permute.xlu0 %761
        %763 = vrot.lane.b32.xlu0 %v731, 17
        %v764 = vpop.permute.xlu0 %763
        %765 = vrot.lane.b32.xlu0 %v732, 17
        %v766 = vpop.permute.xlu0 %765
        %v767 = vlaneseq
        %v768 = vand.u32 %v767, 127
        %vm769 = vcmp.lt.s32.totalorder %v768, 17
        %v770 = vsel %vm769, %v764, %v766
        %v771 = vsel %vm769, %v762, %v764
        %v772 = vsel %vm769, %v760, %v762
        %v773 = vsel %vm769, %v758, %v760
        %v774 = vsel %vm769, %v756, %v758
        %v775 = vsel %vm769, %v754, %v756
        %v776 = vsel %vm769, %v752, %v754
        %v777 = vsel %vm769, %v766, %v752
        %v778 = vperm.slane %v735, 0
        %v779 = vperm.slane %v736, 0
        %v780 = vperm.slane %v737, 0
        %v781 = vperm.slane %v738, 0
        %v782 = vperm.slane %v739, 0
        %v783 = vperm.slane %v740, 0
        %v784 = vperm.slane %v741, 0
        %v785 = vperm.slane %v742, 0
        %v786 = vmul.f32 %v777, %v778
        %v787 = vmul.f32 %v776, %v779
        %v788 = vmul.f32 %v775, %v780
        %v789 = vmul.f32 %v774, %v781
        %v790 = vmul.f32 %v773, %v782
        %v791 = vmul.f32 %v772, %v783
        %v792 = vmul.f32 %v771, %v784
        %v793 = vmul.f32 %v770, %v785
        %794 = vrot.lane.b32.xlu0 %v713, 16
        %v795 = vpop.permute.xlu0 %794
        %796 = vrot.lane.b32.xlu0 %v714, 16
        %v797 = vpop.permute.xlu0 %796
        %798 = vrot.lane.b32.xlu0 %v719, 16
        %v799 = vpop.permute.xlu0 %798
        %800 = vrot.lane.b32.xlu0 %v720, 16
        %v801 = vpop.permute.xlu0 %800
        %802 = vrot.lane.b32.xlu0 %v725, 16
        %v803 = vpop.permute.xlu0 %802
        %804 = vrot.lane.b32.xlu0 %v726, 16
        %v805 = vpop.permute.xlu0 %804
        %806 = vrot.lane.b32.xlu0 %v731, 16
        %v807 = vpop.permute.xlu0 %806
        %808 = vrot.lane.b32.xlu0 %v732, 16
        %v809 = vpop.permute.xlu0 %808
        %vm810 = vcmp.lt.s32.totalorder %v768, 16
        %v811 = vsel %vm810, %v807, %v809
        %v812 = vsel %vm810, %v805, %v807
        %v813 = vsel %vm810, %v803, %v805
        %v814 = vsel %vm810, %v801, %v803
        %v815 = vsel %vm810, %v799, %v801
        %v816 = vsel %vm810, %v797, %v799
        %v817 = vsel %vm810, %v795, %v797
        %v818 = vsel %vm810, %v809, %v795
        %v819 = vperm.slane %v735, 1
        %v820 = vperm.slane %v736, 1
        %v821 = vperm.slane %v737, 1
        %v822 = vperm.slane %v738, 1
        %v823 = vperm.slane %v739, 1
        %v824 = vperm.slane %v740, 1
        %v825 = vperm.slane %v741, 1
        %v826 = vperm.slane %v742, 1
        %v827 = vmul.f32 %v818, %v819
        %v828 = vmul.f32 %v817, %v820
        %v829 = vmul.f32 %v816, %v821
        %v830 = vmul.f32 %v815, %v822
        %v831 = vmul.f32 %v814, %v823
        %v832 = vmul.f32 %v813, %v824
        %v833 = vmul.f32 %v812, %v825
        %v834 = vmul.f32 %v811, %v826
        %835 = vrot.lane.b32.xlu0 %v713, 15
        %v836 = vpop.permute.xlu0 %835
        %837 = vrot.lane.b32.xlu0 %v714, 15
        %v838 = vpop.permute.xlu0 %837
        %839 = vrot.lane.b32.xlu0 %v719, 15
        %v840 = vpop.permute.xlu0 %839
        %841 = vrot.lane.b32.xlu0 %v720, 15
        %v842 = vpop.permute.xlu0 %841
        %843 = vrot.lane.b32.xlu0 %v725, 15
        %v844 = vpop.permute.xlu0 %843
        %845 = vrot.lane.b32.xlu0 %v726, 15
        %v846 = vpop.permute.xlu0 %845
        %847 = vrot.lane.b32.xlu0 %v731, 15
        %v848 = vpop.permute.xlu0 %847
        %849 = vrot.lane.b32.xlu0 %v732, 15
        %v850 = vpop.permute.xlu0 %849
        %vm851 = vcmp.lt.s32.totalorder %v768, 15
        %v852 = vsel %vm851, %v848, %v850
        %v853 = vsel %vm851, %v846, %v848
        %v854 = vsel %vm851, %v844, %v846
        %v855 = vsel %vm851, %v842, %v844
        %v856 = vsel %vm851, %v840, %v842
        %v857 = vsel %vm851, %v838, %v840
        %v858 = vsel %vm851, %v836, %v838
        %v859 = vsel %vm851, %v850, %v836
        %v860 = vperm.slane %v735, 2
        %v861 = vperm.slane %v736, 2
        %v862 = vperm.slane %v737, 2
        %v863 = vperm.slane %v738, 2
        %v864 = vperm.slane %v739, 2
        %v865 = vperm.slane %v740, 2
        %v866 = vperm.slane %v741, 2
        %v867 = vperm.slane %v742, 2
        %v868 = vmul.f32 %v859, %v860
        %v869 = vmul.f32 %v858, %v861
        %v870 = vmul.f32 %v857, %v862
        %v871 = vmul.f32 %v856, %v863
        %v872 = vmul.f32 %v855, %v864
        %v873 = vmul.f32 %v854, %v865
        %v874 = vmul.f32 %v853, %v866
        %v875 = vmul.f32 %v852, %v867
        %876 = vrot.lane.b32.xlu0 %v713, 1
        %v877 = vpop.permute.xlu0 %876
        %878 = vrot.lane.b32.xlu0 %v714, 1
        %v879 = vpop.permute.xlu0 %878
        %880 = vrot.lane.b32.xlu0 %v719, 1
        %v881 = vpop.permute.xlu0 %880
        %882 = vrot.lane.b32.xlu0 %v720, 1
        %v883 = vpop.permute.xlu0 %882
        %884 = vrot.lane.b32.xlu0 %v725, 1
        %v885 = vpop.permute.xlu0 %884
        %886 = vrot.lane.b32.xlu0 %v726, 1
        %v887 = vpop.permute.xlu0 %886
        %888 = vrot.lane.b32.xlu0 %v731, 1
        %v889 = vpop.permute.xlu0 %888
        %890 = vrot.lane.b32.xlu0 %v732, 1
        %v891 = vpop.permute.xlu0 %890
        %vm892 = vcmp.lt.s32.totalorder %v768, 1
        %v893 = vsel %vm892, %v889, %v891
        %v894 = vsel %vm892, %v887, %v889
        %v895 = vsel %vm892, %v885, %v887
        %v896 = vsel %vm892, %v883, %v885
        %v897 = vsel %vm892, %v881, %v883
        %v898 = vsel %vm892, %v879, %v881
        %v899 = vsel %vm892, %v877, %v879
        %v900 = vsel %vm892, %v891, %v877
        %v901 = vperm.slane %v735, 3
        %v902 = vperm.slane %v736, 3
        %v903 = vperm.slane %v737, 3
        %v904 = vperm.slane %v738, 3
        %v905 = vperm.slane %v739, 3
        %v906 = vperm.slane %v740, 3
        %v907 = vperm.slane %v741, 3
        %v908 = vperm.slane %v742, 3
        %v909 = vmul.f32 %v900, %v901
        %v910 = vmul.f32 %v899, %v902
        %v911 = vmul.f32 %v898, %v903
        %v912 = vmul.f32 %v897, %v904
        %v913 = vmul.f32 %v896, %v905
        %v914 = vmul.f32 %v895, %v906
        %v915 = vmul.f32 %v894, %v907
        %v916 = vmul.f32 %v893, %v908
        %917 = vrot.lane.b32.xlu0 %v713, 127
        %v918 = vpop.permute.xlu0 %917
        %919 = vrot.lane.b32.xlu0 %v714, 127
        %v920 = vpop.permute.xlu0 %919
        %921 = vrot.lane.b32.xlu0 %v719, 127
        %v922 = vpop.permute.xlu0 %921
        %923 = vrot.lane.b32.xlu0 %v720, 127
        %v924 = vpop.permute.xlu0 %923
        %925 = vrot.lane.b32.xlu0 %v725, 127
        %v926 = vpop.permute.xlu0 %925
        %927 = vrot.lane.b32.xlu0 %v726, 127
        %v928 = vpop.permute.xlu0 %927
        %929 = vrot.lane.b32.xlu0 %v731, 127
        %v930 = vpop.permute.xlu0 %929
        %931 = vrot.lane.b32.xlu0 %v732, 127
        %v932 = vpop.permute.xlu0 %931
        %vm933 = vcmp.lt.s32.totalorder %v768, 127
        %v934 = vsel %vm933, %v930, %v932
        %v935 = vsel %vm933, %v928, %v930
        %v936 = vsel %vm933, %v926, %v928
        %v937 = vsel %vm933, %v924, %v926
        %v938 = vsel %vm933, %v922, %v924
        %v939 = vsel %vm933, %v920, %v922
        %v940 = vsel %vm933, %v918, %v920
        %v941 = vsel %vm933, %v932, %v918
        %v942 = vperm.slane %v735, 5
        %v943 = vperm.slane %v736, 5
        %v944 = vperm.slane %v737, 5
        %v945 = vperm.slane %v738, 5
        %v946 = vperm.slane %v739, 5
        %v947 = vperm.slane %v740, 5
        %v948 = vperm.slane %v741, 5
        %v949 = vperm.slane %v742, 5
        %v950 = vmul.f32 %v940, %v942
        %v951 = vmul.f32 %v939, %v943
        %v952 = vmul.f32 %v938, %v944
        %v953 = vmul.f32 %v937, %v945
        %v954 = vmul.f32 %v936, %v946
        %v955 = vmul.f32 %v935, %v947
        %v956 = vmul.f32 %v934, %v948
        %v957 = vmul.f32 %v941, %v949
        %958 = vrot.lane.b32.xlu0 %v713, 113
        %v959 = vpop.permute.xlu0 %958
        %960 = vrot.lane.b32.xlu0 %v714, 113
        %v961 = vpop.permute.xlu0 %960
        %962 = vrot.lane.b32.xlu0 %v719, 113
        %v963 = vpop.permute.xlu0 %962
        %964 = vrot.lane.b32.xlu0 %v720, 113
        %v965 = vpop.permute.xlu0 %964
        %966 = vrot.lane.b32.xlu0 %v725, 113
        %v967 = vpop.permute.xlu0 %966
        %968 = vrot.lane.b32.xlu0 %v726, 113
        %v969 = vpop.permute.xlu0 %968
        %970 = vrot.lane.b32.xlu0 %v731, 113
        %v971 = vpop.permute.xlu0 %970
        %972 = vrot.lane.b32.xlu0 %v732, 113
        %v973 = vpop.permute.xlu0 %972
        %vm974 = vcmp.lt.s32.totalorder %v768, 113
        %v975 = vsel %vm974, %v971, %v973
        %v976 = vsel %vm974, %v969, %v971
        %v977 = vsel %vm974, %v967, %v969
        %v978 = vsel %vm974, %v965, %v967
        %v979 = vsel %vm974, %v963, %v965
        %v980 = vsel %vm974, %v961, %v963
        %v981 = vsel %vm974, %v959, %v961
        %v982 = vsel %vm974, %v973, %v959
        %v983 = vperm.slane %v735, 6
        %v984 = vperm.slane %v736, 6
        %v985 = vperm.slane %v737, 6
        %v986 = vperm.slane %v738, 6
        %v987 = vperm.slane %v739, 6
        %v988 = vperm.slane %v740, 6
        %v989 = vperm.slane %v741, 6
        %v990 = vperm.slane %v742, 6
        %v991 = vmul.f32 %v981, %v983
        %v992 = vmul.f32 %v980, %v984
        %v993 = vmul.f32 %v979, %v985
        %v994 = vmul.f32 %v978, %v986
        %v995 = vmul.f32 %v977, %v987
        %v996 = vmul.f32 %v976, %v988
        %v997 = vmul.f32 %v975, %v989
        %v998 = vmul.f32 %v982, %v990
        %999 = vrot.lane.b32.xlu0 %v713, 112
        %v1000 = vpop.permute.xlu0 %999
        %1001 = vrot.lane.b32.xlu0 %v714, 112
        %v1002 = vpop.permute.xlu0 %1001
        %1003 = vrot.lane.b32.xlu0 %v719, 112
        %v1004 = vpop.permute.xlu0 %1003
        %1005 = vrot.lane.b32.xlu0 %v720, 112
        %v1006 = vpop.permute.xlu0 %1005
        %1007 = vrot.lane.b32.xlu0 %v725, 112
        %v1008 = vpop.permute.xlu0 %1007
        %1009 = vrot.lane.b32.xlu0 %v726, 112
        %v1010 = vpop.permute.xlu0 %1009
        %1011 = vrot.lane.b32.xlu0 %v731, 112
        %v1012 = vpop.permute.xlu0 %1011
        %1013 = vrot.lane.b32.xlu0 %v732, 112
        %v1014 = vpop.permute.xlu0 %1013
        %vm1015 = vcmp.lt.s32.totalorder %v768, 112
        %v1016 = vsel %vm1015, %v1012, %v1014
        %v1017 = vsel %vm1015, %v1010, %v1012
        %v1018 = vsel %vm1015, %v1008, %v1010
        %v1019 = vsel %vm1015, %v1006, %v1008
        %v1020 = vsel %vm1015, %v1004, %v1006
        %v1021 = vsel %vm1015, %v1002, %v1004
        %v1022 = vsel %vm1015, %v1000, %v1002
        %v1023 = vsel %vm1015, %v1014, %v1000
        %v1024 = vperm.slane %v735, 7
        %v1025 = vperm.slane %v736, 7
        %v1026 = vperm.slane %v737, 7
        %v1027 = vperm.slane %v738, 7
        %v1028 = vperm.slane %v739, 7
        %v1029 = vperm.slane %v740, 7
        %v1030 = vperm.slane %v741, 7
        %v1031 = vperm.slane %v742, 7
        %v1032 = vmul.f32 %v1022, %v1024
        %v1033 = vmul.f32 %v1021, %v1025
        %v1034 = vmul.f32 %v1020, %v1026
        %v1035 = vmul.f32 %v1019, %v1027
        %v1036 = vmul.f32 %v1018, %v1028
        %v1037 = vmul.f32 %v1017, %v1029
        %v1038 = vmul.f32 %v1016, %v1030
        %v1039 = vmul.f32 %v1023, %v1031
        %1040 = vrot.lane.b32.xlu0 %v713, 111
        %v1041 = vpop.permute.xlu0 %1040
        %1042 = vrot.lane.b32.xlu0 %v714, 111
        %v1043 = vpop.permute.xlu0 %1042
        %1044 = vrot.lane.b32.xlu0 %v719, 111
        %v1045 = vpop.permute.xlu0 %1044
        %1046 = vrot.lane.b32.xlu0 %v720, 111
        %v1047 = vpop.permute.xlu0 %1046
        %1048 = vrot.lane.b32.xlu0 %v725, 111
        %v1049 = vpop.permute.xlu0 %1048
        %1050 = vrot.lane.b32.xlu0 %v726, 111
        %v1051 = vpop.permute.xlu0 %1050
        %1052 = vrot.lane.b32.xlu0 %v731, 111
        %v1053 = vpop.permute.xlu0 %1052
        %1054 = vrot.lane.b32.xlu0 %v732, 111
        %v1055 = vpop.permute.xlu0 %1054
        %vm1056 = vcmp.lt.s32.totalorder %v768, 111
        %v1057 = vsel %vm1056, %v1053, %v1055
        %v1058 = vsel %vm1056, %v1051, %v1053
        %v1059 = vsel %vm1056, %v1049, %v1051
        %v1060 = vsel %vm1056, %v1047, %v1049
        %v1061 = vsel %vm1056, %v1045, %v1047
        %v1062 = vsel %vm1056, %v1043, %v1045
        %v1063 = vsel %vm1056, %v1041, %v1043
        %v1064 = vsel %vm1056, %v1055, %v1041
        %v1065 = vperm.slane %v743, 0
        %v1066 = vperm.slane %v744, 0
        %v1067 = vperm.slane %v745, 0
        %v1068 = vperm.slane %v746, 0
        %v1069 = vperm.slane %v747, 0
        %v1070 = vperm.slane %v748, 0
        %v1071 = vperm.slane %v749, 0
        %v1072 = vperm.slane %v750, 0
        %v1073 = vmul.f32 %v1063, %v1065
        %v1074 = vmul.f32 %v1062, %v1066
        %v1075 = vmul.f32 %v1061, %v1067
        %v1076 = vmul.f32 %v1060, %v1068
        %v1077 = vmul.f32 %v1059, %v1069
        %v1078 = vmul.f32 %v1058, %v1070
        %v1079 = vmul.f32 %v1057, %v1071
        %v1080 = vmul.f32 %v1064, %v1072
        %v1089 = vrot.slane %v827, 5
        %v1090 = vrot.slane %v828, 5
        %v1091 = vrot.slane %v829, 5
        %v1092 = vrot.slane %v830, 5
        %v1093 = vrot.slane %v831, 5
        %v1094 = vrot.slane %v832, 5
        %v1095 = vrot.slane %v833, 5
        %v1096 = vrot.slane %v834, 5
        %v1113 = vrot.slane %v868, 2
        %v1114 = vrot.slane %v869, 2
        %v1115 = vrot.slane %v870, 2
        %v1116 = vrot.slane %v871, 2
        %v1117 = vrot.slane %v872, 2
        %v1118 = vrot.slane %v873, 2
        %v1119 = vrot.slane %v874, 2
        %v1120 = vrot.slane %v875, 2
        %v1137 = vrot.slane %v909, 7
        %v1138 = vrot.slane %v910, 7
        %v1139 = vrot.slane %v911, 7
        %v1140 = vrot.slane %v912, 7
        %v1141 = vrot.slane %v913, 7
        %v1142 = vrot.slane %v914, 7
        %v1143 = vrot.slane %v915, 7
        %v1144 = vrot.slane %v916, 7
        %v1153 = vrot.slane %v713, 4
        %v1154 = vrot.slane %v714, 4
        %v1155 = vrot.slane %v719, 4
        %v1156 = vrot.slane %v720, 4
        %v1157 = vrot.slane %v725, 4
        %v1158 = vrot.slane %v726, 4
        %v1159 = vrot.slane %v731, 4
        %v1160 = vrot.slane %v732, 4
        %v1177 = vrot.slane %v950, 1
        %v1178 = vrot.slane %v951, 1
        %v1179 = vrot.slane %v952, 1
        %v1180 = vrot.slane %v953, 1
        %v1181 = vrot.slane %v954, 1
        %v1182 = vrot.slane %v955, 1
        %v1183 = vrot.slane %v956, 1
        %v1184 = vrot.slane %v957, 1
        %v1201 = vrot.slane %v991, 6
        %v1202 = vrot.slane %v992, 6
        %v1203 = vrot.slane %v993, 6
        %v1204 = vrot.slane %v994, 6
        %v1205 = vrot.slane %v995, 6
        %v1206 = vrot.slane %v996, 6
        %v1207 = vrot.slane %v997, 6
        %v1208 = vrot.slane %v998, 6
        %v1225 = vrot.slane %v1032, 3
        %v1226 = vrot.slane %v1033, 3
        %v1227 = vrot.slane %v1034, 3
        %v1228 = vrot.slane %v1035, 3
        %v1229 = vrot.slane %v1036, 3
        %v1230 = vrot.slane %v1037, 3
        %v1231 = vrot.slane %v1038, 3
        %v1232 = vrot.slane %v1039, 3
        %vm1241 = vcmask 1042432
        %v1242 = vsel %vm1241, %v786, %v1089
        %v1243 = vsel %vm1241, %v787, %v1090
        %v1244 = vsel %vm1241, %v788, %v1091
        %v1245 = vsel %vm1241, %v789, %v1092
        %v1246 = vsel %vm1241, %v790, %v1093
        %v1247 = vsel %vm1241, %v791, %v1094
        %v1248 = vsel %vm1241, %v792, %v1095
        %v1249 = vsel %vm1241, %v793, %v1096
        %vm1250 = vcmask 1045504
        %v1251 = vsel %vm1250, %v1242, %v1113
        %v1252 = vsel %vm1250, %v1243, %v1114
        %v1253 = vsel %vm1250, %v1244, %v1115
        %v1254 = vsel %vm1250, %v1245, %v1116
        %v1255 = vsel %vm1250, %v1246, %v1117
        %v1256 = vsel %vm1250, %v1247, %v1118
        %v1257 = vsel %vm1250, %v1248, %v1119
        %v1258 = vsel %vm1250, %v1249, %v1120
        %vm1259 = vcmask 1040384
        %v1260 = vsel %vm1259, %v1113, %v1137
        %v1261 = vsel %vm1259, %v1114, %v1138
        %v1262 = vsel %vm1259, %v1115, %v1139
        %v1263 = vsel %vm1259, %v1116, %v1140
        %v1264 = vsel %vm1259, %v1117, %v1141
        %v1265 = vsel %vm1259, %v1118, %v1142
        %v1266 = vsel %vm1259, %v1119, %v1143
        %v1267 = vsel %vm1259, %v1120, %v1144
        %vm1268 = vcmask 1043456
        %v1269 = vsel %vm1268, %v1260, %v1153
        %v1270 = vsel %vm1268, %v1261, %v1154
        %v1271 = vsel %vm1268, %v1262, %v1155
        %v1272 = vsel %vm1268, %v1263, %v1156
        %v1273 = vsel %vm1268, %v1264, %v1157
        %v1274 = vsel %vm1268, %v1265, %v1158
        %v1275 = vsel %vm1268, %v1266, %v1159
        %v1276 = vsel %vm1268, %v1267, %v1160
        %vm1277 = vcmask 1046528
        %v1278 = vsel %vm1277, %v1269, %v1177
        %v1279 = vsel %vm1277, %v1270, %v1178
        %v1280 = vsel %vm1277, %v1271, %v1179
        %v1281 = vsel %vm1277, %v1272, %v1180
        %v1282 = vsel %vm1277, %v1273, %v1181
        %v1283 = vsel %vm1277, %v1274, %v1182
        %v1284 = vsel %vm1277, %v1275, %v1183
        %v1285 = vsel %vm1277, %v1276, %v1184
        %vm1286 = vcmask 1041408
        %v1287 = vsel %vm1286, %v1177, %v1201
        %v1288 = vsel %vm1286, %v1178, %v1202
        %v1289 = vsel %vm1286, %v1179, %v1203
        %v1290 = vsel %vm1286, %v1180, %v1204
        %v1291 = vsel %vm1286, %v1181, %v1205
        %v1292 = vsel %vm1286, %v1182, %v1206
        %v1293 = vsel %vm1286, %v1183, %v1207
        %v1294 = vsel %vm1286, %v1184, %v1208
        %vm1295 = vcmask 1044480
        %v1296 = vsel %vm1295, %v1287, %v1225
        %v1297 = vsel %vm1295, %v1288, %v1226
        %v1298 = vsel %vm1295, %v1289, %v1227
        %v1299 = vsel %vm1295, %v1290, %v1228
        %v1300 = vsel %vm1295, %v1291, %v1229
        %v1301 = vsel %vm1295, %v1292, %v1230
        %v1302 = vsel %vm1295, %v1293, %v1231
        %v1303 = vsel %vm1295, %v1294, %v1232
        %v1304 = vpack.c.bf16 %v1278, %v1251
        %v1305 = vpack.c.bf16 %v1279, %v1252
        %v1306 = vpack.c.bf16 %v1280, %v1253
        %v1307 = vpack.c.bf16 %v1281, %v1254
        %v1308 = vpack.c.bf16 %v1282, %v1255
        %v1309 = vpack.c.bf16 %v1283, %v1256
        %v1310 = vpack.c.bf16 %v1284, %v1257
        %v1311 = vpack.c.bf16 %v1285, %v1258
        %v1312 = vpack.c.bf16 %v1073, %v1296
        %v1313 = vpack.c.bf16 %v1074, %v1297
        %v1314 = vpack.c.bf16 %v1075, %v1298
        %v1315 = vpack.c.bf16 %v1076, %v1299
        %v1316 = vpack.c.bf16 %v1077, %v1300
        %v1317 = vpack.c.bf16 %v1078, %v1301
        %v1318 = vpack.c.bf16 %v1079, %v1302
        %v1319 = vpack.c.bf16 %v1080, %v1303
        %v1320 = vld [vmem:[%s2] sm:$0xf]
        %v1321 = vld [vmem:[%s3] sm:$0xff]
        %1323 = vset.pattern.permute.xlu0 0
        %1324 = vperm.xlu0 %1323, %v1321
        %v1325 = vpop.permute.xlu0 %1324
        %vm1327 = vcmask 220160
        %v1329 = vsel %vm1327, %v1320, 0
        %v1331 = vsel %vm1295, 4294967295, 65535
        %v1332 = vsel %vm1250, %v1331, 0
        %v1334 = vand.u32 %v1312, %v1332
        %v1337 = vand.u32 %v1313, %v1332
        %v1340 = vand.u32 %v1314, %v1332
        %v1343 = vand.u32 %v1315, %v1332
        %v1346 = vand.u32 %v1316, %v1332
        %v1349 = vand.u32 %v1317, %v1332
        %v1352 = vand.u32 %v1318, %v1332
        %v1355 = vand.u32 %v1319, %v1332
        %1357 = vmatpush.bf16.msra.mxu0 0
        %1358 = vmatpush.bf16.msra.mxu0 0
        %1359 = vmatpush.bf16.msra.mxu0 0
        %1360 = vmatpush.bf16.msra.mxu0 0
        %1361 = vmatpush.bf16.msra.mxu0 0
        %1362 = vmatpush.bf16.msra.mxu0 0
        %1363 = vmatpush.bf16.msra.mxu0 %v1334
        %1364 = vmatpush.bf16.msra.mxu0 %v1304
        %1365 = vmatmul.bf16.gmra.mxu0 %v1329
        %v1366 = vpop.f32.mrf.mxu0
        %v1367 = vadd.f32 %v1325, %v1366
        %v1368 = vpop.f32.mrf.mxu0
        %1369 = vdwg.mxu0
        %1370 = vmatpush.bf16.msra.mxu0 0
        %1371 = vmatpush.bf16.msra.mxu0 0
        %1372 = vmatpush.bf16.msra.mxu0 0
        %1373 = vmatpush.bf16.msra.mxu0 0
        %1374 = vmatpush.bf16.msra.mxu0 0
        %1375 = vmatpush.bf16.msra.mxu0 0
        %1376 = vmatpush.bf16.msra.mxu0 %v1337
        %1377 = vmatpush.bf16.msra.mxu0 %v1305
        %1378 = vmatmul.bf16.gmra.mxu0 %v1329
        %v1379 = vpop.f32.mrf.mxu0
        %v1380 = vadd.f32 %v1325, %v1379
        %v1381 = vpop.f32.mrf.mxu0
        %1382 = vdwg.mxu0
        %1383 = vmatpush.bf16.msra.mxu0 0
        %1384 = vmatpush.bf16.msra.mxu0 0
        %1385 = vmatpush.bf16.msra.mxu0 0
        %1386 = vmatpush.bf16.msra.mxu0 0
        %1387 = vmatpush.bf16.msra.mxu0 0
        %1388 = vmatpush.bf16.msra.mxu0 0
        %1389 = vmatpush.bf16.msra.mxu0 %v1340
        %1390 = vmatpush.bf16.msra.mxu0 %v1306
        %1391 = vmatmul.bf16.gmra.mxu0 %v1329
        %v1392 = vpop.f32.mrf.mxu0
        %v1393 = vadd.f32 %v1325, %v1392
        %v1394 = vpop.f32.mrf.mxu0
        %1395 = vdwg.mxu0
        %1396 = vmatpush.bf16.msra.mxu0 0
        %1397 = vmatpush.bf16.msra.mxu0 0
        %1398 = vmatpush.bf16.msra.mxu0 0
        %1399 = vmatpush.bf16.msra.mxu0 0
        %1400 = vmatpush.bf16.msra.mxu0 0
        %1401 = vmatpush.bf16.msra.mxu0 0
        %1402 = vmatpush.bf16.msra.mxu0 %v1343
        %1403 = vmatpush.bf16.msra.mxu0 %v1307
        %1404 = vmatmul.bf16.gmra.mxu0 %v1329
        %v1405 = vpop.f32.mrf.mxu0
        %v1406 = vadd.f32 %v1325, %v1405
        %v1407 = vpop.f32.mrf.mxu0
        %1408 = vdwg.mxu0
        %1409 = vmatpush.bf16.msra.mxu0 0
        %1410 = vmatpush.bf16.msra.mxu0 0
        %1411 = vmatpush.bf16.msra.mxu0 0
        %1412 = vmatpush.bf16.msra.mxu0 0
        %1413 = vmatpush.bf16.msra.mxu0 0
        %1414 = vmatpush.bf16.msra.mxu0 0
        %1415 = vmatpush.bf16.msra.mxu0 %v1346
        %1416 = vmatpush.bf16.msra.mxu0 %v1308
        %1417 = vmatmul.bf16.gmra.mxu0 %v1329
        %v1418 = vpop.f32.mrf.mxu0
        %v1419 = vadd.f32 %v1325, %v1418
        %v1420 = vpop.f32.mrf.mxu0
        %1421 = vdwg.mxu0
        %1422 = vmatpush.bf16.msra.mxu0 0
        %1423 = vmatpush.bf16.msra.mxu0 0
        %1424 = vmatpush.bf16.msra.mxu0 0
        %1425 = vmatpush.bf16.msra.mxu0 0
        %1426 = vmatpush.bf16.msra.mxu0 0
        %1427 = vmatpush.bf16.msra.mxu0 0
        %1428 = vmatpush.bf16.msra.mxu0 %v1349
        %1429 = vmatpush.bf16.msra.mxu0 %v1309
        %1430 = vmatmul.bf16.gmra.mxu0 %v1329
        %v1431 = vpop.f32.mrf.mxu0
        %v1432 = vadd.f32 %v1325, %v1431
        %v1433 = vpop.f32.mrf.mxu0
        %1434 = vdwg.mxu0
        %1435 = vmatpush.bf16.msra.mxu0 0
        %1436 = vmatpush.bf16.msra.mxu0 0
        %1437 = vmatpush.bf16.msra.mxu0 0
        %1438 = vmatpush.bf16.msra.mxu0 0
        %1439 = vmatpush.bf16.msra.mxu0 0
        %1440 = vmatpush.bf16.msra.mxu0 0
        %1441 = vmatpush.bf16.msra.mxu0 %v1352
        %1442 = vmatpush.bf16.msra.mxu0 %v1310
        %1443 = vmatmul.bf16.gmra.mxu0 %v1329
        %v1444 = vpop.f32.mrf.mxu0
        %v1445 = vadd.f32 %v1325, %v1444
        %v1446 = vpop.f32.mrf.mxu0
        %1447 = vdwg.mxu0
        %1448 = vmatpush.bf16.msra.mxu0 0
        %1449 = vmatpush.bf16.msra.mxu0 0
        %1450 = vmatpush.bf16.msra.mxu0 0
        %1451 = vmatpush.bf16.msra.mxu0 0
        %1452 = vmatpush.bf16.msra.mxu0 0
        %1453 = vmatpush.bf16.msra.mxu0 0
        %1454 = vmatpush.bf16.msra.mxu0 %v1355
        %1455 = vmatpush.bf16.msra.mxu0 %v1311
        %1456 = vmatmul.bf16.gmra.mxu0 %v1329
        %v1457 = vpop.f32.mrf.mxu0
        %v1458 = vadd.f32 %v1325, %v1457
        %v1459 = vpop.f32.mrf.mxu0
        %1460 = vdwg.mxu0
        %v1461 = vmax.f32 %v1367, 0.0
        %v1462 = vmax.f32 %v1380, 0.0
        %v1463 = vmax.f32 %v1393, 0.0
        %v1464 = vmax.f32 %v1406, 0.0
        %v1465 = vmax.f32 %v1419, 0.0
        %v1466 = vmax.f32 %v1432, 0.0
        %v1467 = vmax.f32 %v1445, 0.0
        %v1468 = vmax.f32 %v1458, 0.0
        %v1469 = vld [vmem:[%s4] sm:$0xff]
        %v1470 = vld [vmem:[%s4 + $0x8] sm:$0xff]
        %v1471 = vld [vmem:[%s4 + $0x10] sm:$0xff]
        %v1472 = vld [vmem:[%s4 + $0x18] sm:$0xff]
        %v1473 = vld [vmem:[%s4 + $0x20] sm:$0xff]
        %v1474 = vld [vmem:[%s4 + $0x28] sm:$0xff]
        %v1475 = vld [vmem:[%s4 + $0x30] sm:$0xff]
        %v1476 = vld [vmem:[%s4 + $0x38] sm:$0xff]
        %v1477 = vld [vmem:[%s4 + $0x40] sm:$0x1]
        %v1478 = vld [vmem:[%s4 + $0x48] sm:$0x1]
        %v1479 = vld [vmem:[%s4 + $0x50] sm:$0x1]
        %v1480 = vld [vmem:[%s4 + $0x58] sm:$0x1]
        %v1481 = vld [vmem:[%s4 + $0x60] sm:$0x1]
        %v1482 = vld [vmem:[%s4 + $0x68] sm:$0x1]
        %v1483 = vld [vmem:[%s4 + $0x70] sm:$0x1]
        %v1484 = vld [vmem:[%s4 + $0x78] sm:$0x1]
        %1485 = vrot.lane.b32.xlu0 %v1461, 17
        %v1486 = vpop.permute.xlu0 %1485
        %1487 = vrot.lane.b32.xlu0 %v1462, 17
        %v1488 = vpop.permute.xlu0 %1487
        %1489 = vrot.lane.b32.xlu0 %v1463, 17
        %v1490 = vpop.permute.xlu0 %1489
        %1491 = vrot.lane.b32.xlu0 %v1464, 17
        %v1492 = vpop.permute.xlu0 %1491
        %1493 = vrot.lane.b32.xlu0 %v1465, 17
        %v1494 = vpop.permute.xlu0 %1493
        %1495 = vrot.lane.b32.xlu0 %v1466, 17
        %v1496 = vpop.permute.xlu0 %1495
        %1497 = vrot.lane.b32.xlu0 %v1467, 17
        %v1498 = vpop.permute.xlu0 %1497
        %1499 = vrot.lane.b32.xlu0 %v1468, 17
        %v1500 = vpop.permute.xlu0 %1499
        %v1501 = vsel %vm769, %v1498, %v1500
        %v1502 = vsel %vm769, %v1496, %v1498
        %v1503 = vsel %vm769, %v1494, %v1496
        %v1504 = vsel %vm769, %v1492, %v1494
        %v1505 = vsel %vm769, %v1490, %v1492
        %v1506 = vsel %vm769, %v1488, %v1490
        %v1507 = vsel %vm769, %v1486, %v1488
        %v1508 = vsel %vm769, %v1500, %v1486
        %v1509 = vperm.slane %v1469, 0
        %v1510 = vperm.slane %v1470, 0
        %v1511 = vperm.slane %v1471, 0
        %v1512 = vperm.slane %v1472, 0
        %v1513 = vperm.slane %v1473, 0
        %v1514 = vperm.slane %v1474, 0
        %v1515 = vperm.slane %v1475, 0
        %v1516 = vperm.slane %v1476, 0
        %v1517 = vmul.f32 %v1508, %v1509
        %v1518 = vmul.f32 %v1507, %v1510
        %v1519 = vmul.f32 %v1506, %v1511
        %v1520 = vmul.f32 %v1505, %v1512
        %v1521 = vmul.f32 %v1504, %v1513
        %v1522 = vmul.f32 %v1503, %v1514
        %v1523 = vmul.f32 %v1502, %v1515
        %v1524 = vmul.f32 %v1501, %v1516
        %1525 = vrot.lane.b32.xlu0 %v1461, 16
        %v1526 = vpop.permute.xlu0 %1525
        %1527 = vrot.lane.b32.xlu0 %v1462, 16
        %v1528 = vpop.permute.xlu0 %1527
        %1529 = vrot.lane.b32.xlu0 %v1463, 16
        %v1530 = vpop.permute.xlu0 %1529
        %1531 = vrot.lane.b32.xlu0 %v1464, 16
        %v1532 = vpop.permute.xlu0 %1531
        %1533 = vrot.lane.b32.xlu0 %v1465, 16
        %v1534 = vpop.permute.xlu0 %1533
        %1535 = vrot.lane.b32.xlu0 %v1466, 16
        %v1536 = vpop.permute.xlu0 %1535
        %1537 = vrot.lane.b32.xlu0 %v1467, 16
        %v1538 = vpop.permute.xlu0 %1537
        %1539 = vrot.lane.b32.xlu0 %v1468, 16
        %v1540 = vpop.permute.xlu0 %1539
        %v1541 = vsel %vm810, %v1538, %v1540
        %v1542 = vsel %vm810, %v1536, %v1538
        %v1543 = vsel %vm810, %v1534, %v1536
        %v1544 = vsel %vm810, %v1532, %v1534
        %v1545 = vsel %vm810, %v1530, %v1532
        %v1546 = vsel %vm810, %v1528, %v1530
        %v1547 = vsel %vm810, %v1526, %v1528
        %v1548 = vsel %vm810, %v1540, %v1526
        %v1549 = vperm.slane %v1469, 1
        %v1550 = vperm.slane %v1470, 1
        %v1551 = vperm.slane %v1471, 1
        %v1552 = vperm.slane %v1472, 1
        %v1553 = vperm.slane %v1473, 1
        %v1554 = vperm.slane %v1474, 1
        %v1555 = vperm.slane %v1475, 1
        %v1556 = vperm.slane %v1476, 1
        %v1557 = vmul.f32 %v1548, %v1549
        %v1558 = vmul.f32 %v1547, %v1550
        %v1559 = vmul.f32 %v1546, %v1551
        %v1560 = vmul.f32 %v1545, %v1552
        %v1561 = vmul.f32 %v1544, %v1553
        %v1562 = vmul.f32 %v1543, %v1554
        %v1563 = vmul.f32 %v1542, %v1555
        %v1564 = vmul.f32 %v1541, %v1556
        %1565 = vrot.lane.b32.xlu0 %v1461, 15
        %v1566 = vpop.permute.xlu0 %1565
        %1567 = vrot.lane.b32.xlu0 %v1462, 15
        %v1568 = vpop.permute.xlu0 %1567
        %1569 = vrot.lane.b32.xlu0 %v1463, 15
        %v1570 = vpop.permute.xlu0 %1569
        %1571 = vrot.lane.b32.xlu0 %v1464, 15
        %v1572 = vpop.permute.xlu0 %1571
        %1573 = vrot.lane.b32.xlu0 %v1465, 15
        %v1574 = vpop.permute.xlu0 %1573
        %1575 = vrot.lane.b32.xlu0 %v1466, 15
        %v1576 = vpop.permute.xlu0 %1575
        %1577 = vrot.lane.b32.xlu0 %v1467, 15
        %v1578 = vpop.permute.xlu0 %1577
        %1579 = vrot.lane.b32.xlu0 %v1468, 15
        %v1580 = vpop.permute.xlu0 %1579
        %v1581 = vsel %vm851, %v1578, %v1580
        %v1582 = vsel %vm851, %v1576, %v1578
        %v1583 = vsel %vm851, %v1574, %v1576
        %v1584 = vsel %vm851, %v1572, %v1574
        %v1585 = vsel %vm851, %v1570, %v1572
        %v1586 = vsel %vm851, %v1568, %v1570
        %v1587 = vsel %vm851, %v1566, %v1568
        %v1588 = vsel %vm851, %v1580, %v1566
        %v1589 = vperm.slane %v1469, 2
        %v1590 = vperm.slane %v1470, 2
        %v1591 = vperm.slane %v1471, 2
        %v1592 = vperm.slane %v1472, 2
        %v1593 = vperm.slane %v1473, 2
        %v1594 = vperm.slane %v1474, 2
        %v1595 = vperm.slane %v1475, 2
        %v1596 = vperm.slane %v1476, 2
        %v1597 = vmul.f32 %v1588, %v1589
        %v1598 = vmul.f32 %v1587, %v1590
        %v1599 = vmul.f32 %v1586, %v1591
        %v1600 = vmul.f32 %v1585, %v1592
        %v1601 = vmul.f32 %v1584, %v1593
        %v1602 = vmul.f32 %v1583, %v1594
        %v1603 = vmul.f32 %v1582, %v1595
        %v1604 = vmul.f32 %v1581, %v1596
        %1605 = vrot.lane.b32.xlu0 %v1461, 1
        %v1606 = vpop.permute.xlu0 %1605
        %1607 = vrot.lane.b32.xlu0 %v1462, 1
        %v1608 = vpop.permute.xlu0 %1607
        %1609 = vrot.lane.b32.xlu0 %v1463, 1
        %v1610 = vpop.permute.xlu0 %1609
        %1611 = vrot.lane.b32.xlu0 %v1464, 1
        %v1612 = vpop.permute.xlu0 %1611
        %1613 = vrot.lane.b32.xlu0 %v1465, 1
        %v1614 = vpop.permute.xlu0 %1613
        %1615 = vrot.lane.b32.xlu0 %v1466, 1
        %v1616 = vpop.permute.xlu0 %1615
        %1617 = vrot.lane.b32.xlu0 %v1467, 1
        %v1618 = vpop.permute.xlu0 %1617
        %1619 = vrot.lane.b32.xlu0 %v1468, 1
        %v1620 = vpop.permute.xlu0 %1619
        %v1621 = vsel %vm892, %v1618, %v1620
        %v1622 = vsel %vm892, %v1616, %v1618
        %v1623 = vsel %vm892, %v1614, %v1616
        %v1624 = vsel %vm892, %v1612, %v1614
        %v1625 = vsel %vm892, %v1610, %v1612
        %v1626 = vsel %vm892, %v1608, %v1610
        %v1627 = vsel %vm892, %v1606, %v1608
        %v1628 = vsel %vm892, %v1620, %v1606
        %v1629 = vperm.slane %v1469, 3
        %v1630 = vperm.slane %v1470, 3
        %v1631 = vperm.slane %v1471, 3
        %v1632 = vperm.slane %v1472, 3
        %v1633 = vperm.slane %v1473, 3
        %v1634 = vperm.slane %v1474, 3
        %v1635 = vperm.slane %v1475, 3
        %v1636 = vperm.slane %v1476, 3
        %v1637 = vmul.f32 %v1628, %v1629
        %v1638 = vmul.f32 %v1627, %v1630
        %v1639 = vmul.f32 %v1626, %v1631
        %v1640 = vmul.f32 %v1625, %v1632
        %v1641 = vmul.f32 %v1624, %v1633
        %v1642 = vmul.f32 %v1623, %v1634
        %v1643 = vmul.f32 %v1622, %v1635
        %v1644 = vmul.f32 %v1621, %v1636
        %1645 = vrot.lane.b32.xlu0 %v1461, 127
        %v1646 = vpop.permute.xlu0 %1645
        %1647 = vrot.lane.b32.xlu0 %v1462, 127
        %v1648 = vpop.permute.xlu0 %1647
        %1649 = vrot.lane.b32.xlu0 %v1463, 127
        %v1650 = vpop.permute.xlu0 %1649
        %1651 = vrot.lane.b32.xlu0 %v1464, 127
        %v1652 = vpop.permute.xlu0 %1651
        %1653 = vrot.lane.b32.xlu0 %v1465, 127
        %v1654 = vpop.permute.xlu0 %1653
        %1655 = vrot.lane.b32.xlu0 %v1466, 127
        %v1656 = vpop.permute.xlu0 %1655
        %1657 = vrot.lane.b32.xlu0 %v1467, 127
        %v1658 = vpop.permute.xlu0 %1657
        %1659 = vrot.lane.b32.xlu0 %v1468, 127
        %v1660 = vpop.permute.xlu0 %1659
        %v1661 = vsel %vm933, %v1658, %v1660
        %v1662 = vsel %vm933, %v1656, %v1658
        %v1663 = vsel %vm933, %v1654, %v1656
        %v1664 = vsel %vm933, %v1652, %v1654
        %v1665 = vsel %vm933, %v1650, %v1652
        %v1666 = vsel %vm933, %v1648, %v1650
        %v1667 = vsel %vm933, %v1646, %v1648
        %v1668 = vsel %vm933, %v1660, %v1646
        %v1669 = vperm.slane %v1469, 5
        %v1670 = vperm.slane %v1470, 5
        %v1671 = vperm.slane %v1471, 5
        %v1672 = vperm.slane %v1472, 5
        %v1673 = vperm.slane %v1473, 5
        %v1674 = vperm.slane %v1474, 5
        %v1675 = vperm.slane %v1475, 5
        %v1676 = vperm.slane %v1476, 5
        %v1677 = vmul.f32 %v1667, %v1669
        %v1678 = vmul.f32 %v1666, %v1670
        %v1679 = vmul.f32 %v1665, %v1671
        %v1680 = vmul.f32 %v1664, %v1672
        %v1681 = vmul.f32 %v1663, %v1673
        %v1682 = vmul.f32 %v1662, %v1674
        %v1683 = vmul.f32 %v1661, %v1675
        %v1684 = vmul.f32 %v1668, %v1676
        %1685 = vrot.lane.b32.xlu0 %v1461, 113
        %v1686 = vpop.permute.xlu0 %1685
        %1687 = vrot.lane.b32.xlu0 %v1462, 113
        %v1688 = vpop.permute.xlu0 %1687
        %1689 = vrot.lane.b32.xlu0 %v1463, 113
        %v1690 = vpop.permute.xlu0 %1689
        %1691 = vrot.lane.b32.xlu0 %v1464, 113
        %v1692 = vpop.permute.xlu0 %1691
        %1693 = vrot.lane.b32.xlu0 %v1465, 113
        %v1694 = vpop.permute.xlu0 %1693
        %1695 = vrot.lane.b32.xlu0 %v1466, 113
        %v1696 = vpop.permute.xlu0 %1695
        %1697 = vrot.lane.b32.xlu0 %v1467, 113
        %v1698 = vpop.permute.xlu0 %1697
        %1699 = vrot.lane.b32.xlu0 %v1468, 113
        %v1700 = vpop.permute.xlu0 %1699
        %v1701 = vsel %vm974, %v1698, %v1700
        %v1702 = vsel %vm974, %v1696, %v1698
        %v1703 = vsel %vm974, %v1694, %v1696
        %v1704 = vsel %vm974, %v1692, %v1694
        %v1705 = vsel %vm974, %v1690, %v1692
        %v1706 = vsel %vm974, %v1688, %v1690
        %v1707 = vsel %vm974, %v1686, %v1688
        %v1708 = vsel %vm974, %v1700, %v1686
        %v1709 = vperm.slane %v1469, 6
        %v1710 = vperm.slane %v1470, 6
        %v1711 = vperm.slane %v1471, 6
        %v1712 = vperm.slane %v1472, 6
        %v1713 = vperm.slane %v1473, 6
        %v1714 = vperm.slane %v1474, 6
        %v1715 = vperm.slane %v1475, 6
        %v1716 = vperm.slane %v1476, 6
        %v1717 = vmul.f32 %v1707, %v1709
        %v1718 = vmul.f32 %v1706, %v1710
        %v1719 = vmul.f32 %v1705, %v1711
        %v1720 = vmul.f32 %v1704, %v1712
        %v1721 = vmul.f32 %v1703, %v1713
        %v1722 = vmul.f32 %v1702, %v1714
        %v1723 = vmul.f32 %v1701, %v1715
        %v1724 = vmul.f32 %v1708, %v1716
        %1725 = vrot.lane.b32.xlu0 %v1461, 112
        %v1726 = vpop.permute.xlu0 %1725
        %1727 = vrot.lane.b32.xlu0 %v1462, 112
        %v1728 = vpop.permute.xlu0 %1727
        %1729 = vrot.lane.b32.xlu0 %v1463, 112
        %v1730 = vpop.permute.xlu0 %1729
        %1731 = vrot.lane.b32.xlu0 %v1464, 112
        %v1732 = vpop.permute.xlu0 %1731
        %1733 = vrot.lane.b32.xlu0 %v1465, 112
        %v1734 = vpop.permute.xlu0 %1733
        %1735 = vrot.lane.b32.xlu0 %v1466, 112
        %v1736 = vpop.permute.xlu0 %1735
        %1737 = vrot.lane.b32.xlu0 %v1467, 112
        %v1738 = vpop.permute.xlu0 %1737
        %1739 = vrot.lane.b32.xlu0 %v1468, 112
        %v1740 = vpop.permute.xlu0 %1739
        %v1741 = vsel %vm1015, %v1738, %v1740
        %v1742 = vsel %vm1015, %v1736, %v1738
        %v1743 = vsel %vm1015, %v1734, %v1736
        %v1744 = vsel %vm1015, %v1732, %v1734
        %v1745 = vsel %vm1015, %v1730, %v1732
        %v1746 = vsel %vm1015, %v1728, %v1730
        %v1747 = vsel %vm1015, %v1726, %v1728
        %v1748 = vsel %vm1015, %v1740, %v1726
        %v1749 = vperm.slane %v1469, 7
        %v1750 = vperm.slane %v1470, 7
        %v1751 = vperm.slane %v1471, 7
        %v1752 = vperm.slane %v1472, 7
        %v1753 = vperm.slane %v1473, 7
        %v1754 = vperm.slane %v1474, 7
        %v1755 = vperm.slane %v1475, 7
        %v1756 = vperm.slane %v1476, 7
        %v1757 = vmul.f32 %v1747, %v1749
        %v1758 = vmul.f32 %v1746, %v1750
        %v1759 = vmul.f32 %v1745, %v1751
        %v1760 = vmul.f32 %v1744, %v1752
        %v1761 = vmul.f32 %v1743, %v1753
        %v1762 = vmul.f32 %v1742, %v1754
        %v1763 = vmul.f32 %v1741, %v1755
        %v1764 = vmul.f32 %v1748, %v1756
        %1765 = vrot.lane.b32.xlu0 %v1461, 111
        %v1766 = vpop.permute.xlu0 %1765
        %1767 = vrot.lane.b32.xlu0 %v1462, 111
        %v1768 = vpop.permute.xlu0 %1767
        %1769 = vrot.lane.b32.xlu0 %v1463, 111
        %v1770 = vpop.permute.xlu0 %1769
        %1771 = vrot.lane.b32.xlu0 %v1464, 111
        %v1772 = vpop.permute.xlu0 %1771
        %1773 = vrot.lane.b32.xlu0 %v1465, 111
        %v1774 = vpop.permute.xlu0 %1773
        %1775 = vrot.lane.b32.xlu0 %v1466, 111
        %v1776 = vpop.permute.xlu0 %1775
        %1777 = vrot.lane.b32.xlu0 %v1467, 111
        %v1778 = vpop.permute.xlu0 %1777
        %1779 = vrot.lane.b32.xlu0 %v1468, 111
        %v1780 = vpop.permute.xlu0 %1779
        %v1781 = vsel %vm1056, %v1778, %v1780
        %v1782 = vsel %vm1056, %v1776, %v1778
        %v1783 = vsel %vm1056, %v1774, %v1776
        %v1784 = vsel %vm1056, %v1772, %v1774
        %v1785 = vsel %vm1056, %v1770, %v1772
        %v1786 = vsel %vm1056, %v1768, %v1770
        %v1787 = vsel %vm1056, %v1766, %v1768
        %v1788 = vsel %vm1056, %v1780, %v1766
        %v1789 = vperm.slane %v1477, 0
        %v1790 = vperm.slane %v1478, 0
        %v1791 = vperm.slane %v1479, 0
        %v1792 = vperm.slane %v1480, 0
        %v1793 = vperm.slane %v1481, 0
        %v1794 = vperm.slane %v1482, 0
        %v1795 = vperm.slane %v1483, 0
        %v1796 = vperm.slane %v1484, 0
        %v1797 = vmul.f32 %v1787, %v1789
        %v1798 = vmul.f32 %v1786, %v1790
        %v1799 = vmul.f32 %v1785, %v1791
        %v1800 = vmul.f32 %v1784, %v1792
        %v1801 = vmul.f32 %v1783, %v1793
        %v1802 = vmul.f32 %v1782, %v1794
        %v1803 = vmul.f32 %v1781, %v1795
        %v1804 = vmul.f32 %v1788, %v1796
        %v1805 = vpack.c.bf16 %v1557, %v1517
        %v1806 = vpack.c.bf16 %v1558, %v1518
        %v1807 = vpack.c.bf16 %v1559, %v1519
        %v1808 = vpack.c.bf16 %v1560, %v1520
        %v1809 = vpack.c.bf16 %v1561, %v1521
        %v1810 = vpack.c.bf16 %v1562, %v1522
        %v1811 = vpack.c.bf16 %v1563, %v1523
        %v1812 = vpack.c.bf16 %v1564, %v1524
        %v1813 = vpack.c.bf16 %v1637, %v1597
        %v1814 = vpack.c.bf16 %v1638, %v1598
        %v1815 = vpack.c.bf16 %v1639, %v1599
        %v1816 = vpack.c.bf16 %v1640, %v1600
        %v1817 = vpack.c.bf16 %v1641, %v1601
        %v1818 = vpack.c.bf16 %v1642, %v1602
        %v1819 = vpack.c.bf16 %v1643, %v1603
        %v1820 = vpack.c.bf16 %v1644, %v1604
        %v1821 = vpack.c.bf16 %v1677, %v1461
        %v1822 = vpack.c.bf16 %v1678, %v1462
        %v1823 = vpack.c.bf16 %v1679, %v1463
        %v1824 = vpack.c.bf16 %v1680, %v1464
        %v1825 = vpack.c.bf16 %v1681, %v1465
        %v1826 = vpack.c.bf16 %v1682, %v1466
        %v1827 = vpack.c.bf16 %v1683, %v1467
        %v1828 = vpack.c.bf16 %v1684, %v1468
        %v1829 = vpack.c.bf16 %v1757, %v1717
        %v1830 = vpack.c.bf16 %v1758, %v1718
        %v1831 = vpack.c.bf16 %v1759, %v1719
        %v1832 = vpack.c.bf16 %v1760, %v1720
        %v1833 = vpack.c.bf16 %v1761, %v1721
        %v1834 = vpack.c.bf16 %v1762, %v1722
        %v1835 = vpack.c.bf16 %v1763, %v1723
        %v1836 = vpack.c.bf16 %v1764, %v1724
        %v1837 = vpack.c.bf16 %v1797, %v1797
        %v1838 = vpack.c.bf16 %v1798, %v1798
        %v1839 = vpack.c.bf16 %v1799, %v1799
        %v1840 = vpack.c.bf16 %v1800, %v1800
        %v1841 = vpack.c.bf16 %v1801, %v1801
        %v1842 = vpack.c.bf16 %v1802, %v1802
        %v1843 = vpack.c.bf16 %v1803, %v1803
        %v1844 = vpack.c.bf16 %v1804, %v1804
        %v1845 = vld [vmem:[%s5] sm:$0xf]
        %v1846 = vld [vmem:[%s5 + $0x4] sm:$0xf]
        %v1847 = vld [vmem:[%s6] sm:$0xff]
        %v1848 = vld [vmem:[%s6 + $0x8] sm:$0xff]
        %1850 = vset.pattern.permute.xlu0 0
        %1851 = vperm.xlu0 %1850, %v1847
        %v1852 = vpop.permute.xlu0 %1851
        %1855 = vset.pattern.permute.xlu0 0
        %1856 = vperm.xlu0 %1855, %v1848
        %v1857 = vpop.permute.xlu0 %1856
        %v1861 = vunpack.c.l.b16 %v1845
        %v1862 = vunpack.c.l.b16 %v1846
        %v1863 = vpack.c.b16 %v1862, %v1861
        %vm1864 = vcmask 588800
        %v1866 = vsel %vm1864, %v1863, 0
        %v1869 = vsel %vm1268, %v1837, 0
        %v1872 = vsel %vm1268, %v1838, 0
        %v1875 = vsel %vm1268, %v1839, 0
        %v1878 = vsel %vm1268, %v1840, 0
        %v1881 = vsel %vm1268, %v1841, 0
        %v1884 = vsel %vm1268, %v1842, 0
        %v1887 = vsel %vm1268, %v1843, 0
        %v1890 = vsel %vm1268, %v1844, 0
        %1892 = vmatpush.bf16.msra.mxu0 0
        %1893 = vmatpush.bf16.msra.mxu0 0
        %1894 = vmatpush.bf16.msra.mxu0 0
        %1895 = vmatpush.bf16.msra.mxu0 %v1869
        %1896 = vmatpush.bf16.msra.mxu0 %v1829
        %1897 = vmatpush.bf16.msra.mxu0 %v1821
        %1898 = vmatpush.bf16.msra.mxu0 %v1813
        %1899 = vmatpush.bf16.msra.mxu0 %v1805
        %1900 = vmatmul.bf16.gmra.mxu0 %v1866
        %v1901 = vpop.f32.mrf.mxu0
        %v1902 = vadd.f32 %v1852, %v1901
        %v1903 = vpop.f32.mrf.mxu0
        %v1904 = vadd.f32 %v1857, %v1903
        %1905 = vdwg.mxu0
        %1906 = vmatpush.bf16.msra.mxu0 0
        %1907 = vmatpush.bf16.msra.mxu0 0
        %1908 = vmatpush.bf16.msra.mxu0 0
        %1909 = vmatpush.bf16.msra.mxu0 %v1872
        %1910 = vmatpush.bf16.msra.mxu0 %v1830
        %1911 = vmatpush.bf16.msra.mxu0 %v1822
        %1912 = vmatpush.bf16.msra.mxu0 %v1814
        %1913 = vmatpush.bf16.msra.mxu0 %v1806
        %1914 = vmatmul.bf16.gmra.mxu0 %v1866
        %v1915 = vpop.f32.mrf.mxu0
        %v1916 = vadd.f32 %v1852, %v1915
        %v1917 = vpop.f32.mrf.mxu0
        %v1918 = vadd.f32 %v1857, %v1917
        %1919 = vdwg.mxu0
        %1920 = vmatpush.bf16.msra.mxu0 0
        %1921 = vmatpush.bf16.msra.mxu0 0
        %1922 = vmatpush.bf16.msra.mxu0 0
        %1923 = vmatpush.bf16.msra.mxu0 %v1875
        %1924 = vmatpush.bf16.msra.mxu0 %v1831
        %1925 = vmatpush.bf16.msra.mxu0 %v1823
        %1926 = vmatpush.bf16.msra.mxu0 %v1815
        %1927 = vmatpush.bf16.msra.mxu0 %v1807
        %1928 = vmatmul.bf16.gmra.mxu0 %v1866
        %v1929 = vpop.f32.mrf.mxu0
        %v1930 = vadd.f32 %v1852, %v1929
        %v1931 = vpop.f32.mrf.mxu0
        %v1932 = vadd.f32 %v1857, %v1931
        %1933 = vdwg.mxu0
        %1934 = vmatpush.bf16.msra.mxu0 0
        %1935 = vmatpush.bf16.msra.mxu0 0
        %1936 = vmatpush.bf16.msra.mxu0 0
        %1937 = vmatpush.bf16.msra.mxu0 %v1878
        %1938 = vmatpush.bf16.msra.mxu0 %v1832
        %1939 = vmatpush.bf16.msra.mxu0 %v1824
        %1940 = vmatpush.bf16.msra.mxu0 %v1816
        %1941 = vmatpush.bf16.msra.mxu0 %v1808
        %1942 = vmatmul.bf16.gmra.mxu0 %v1866
        %v1943 = vpop.f32.mrf.mxu0
        %v1944 = vadd.f32 %v1852, %v1943
        %v1945 = vpop.f32.mrf.mxu0
        %v1946 = vadd.f32 %v1857, %v1945
        %1947 = vdwg.mxu0
        %1948 = vmatpush.bf16.msra.mxu0 0
        %1949 = vmatpush.bf16.msra.mxu0 0
        %1950 = vmatpush.bf16.msra.mxu0 0
        %1951 = vmatpush.bf16.msra.mxu0 %v1881
        %1952 = vmatpush.bf16.msra.mxu0 %v1833
        %1953 = vmatpush.bf16.msra.mxu0 %v1825
        %1954 = vmatpush.bf16.msra.mxu0 %v1817
        %1955 = vmatpush.bf16.msra.mxu0 %v1809
        %1956 = vmatmul.bf16.gmra.mxu0 %v1866
        %v1957 = vpop.f32.mrf.mxu0
        %v1958 = vadd.f32 %v1852, %v1957
        %v1959 = vpop.f32.mrf.mxu0
        %v1960 = vadd.f32 %v1857, %v1959
        %1961 = vdwg.mxu0
        %1962 = vmatpush.bf16.msra.mxu0 0
        %1963 = vmatpush.bf16.msra.mxu0 0
        %1964 = vmatpush.bf16.msra.mxu0 0
        %1965 = vmatpush.bf16.msra.mxu0 %v1884
        %1966 = vmatpush.bf16.msra.mxu0 %v1834
        %1967 = vmatpush.bf16.msra.mxu0 %v1826
        %1968 = vmatpush.bf16.msra.mxu0 %v1818
        %1969 = vmatpush.bf16.msra.mxu0 %v1810
        %1970 = vmatmul.bf16.gmra.mxu0 %v1866
        %v1971 = vpop.f32.mrf.mxu0
        %v1972 = vadd.f32 %v1852, %v1971
        %v1973 = vpop.f32.mrf.mxu0
        %v1974 = vadd.f32 %v1857, %v1973
        %1975 = vdwg.mxu0
        %1976 = vmatpush.bf16.msra.mxu0 0
        %1977 = vmatpush.bf16.msra.mxu0 0
        %1978 = vmatpush.bf16.msra.mxu0 0
        %1979 = vmatpush.bf16.msra.mxu0 %v1887
        %1980 = vmatpush.bf16.msra.mxu0 %v1835
        %1981 = vmatpush.bf16.msra.mxu0 %v1827
        %1982 = vmatpush.bf16.msra.mxu0 %v1819
        %1983 = vmatpush.bf16.msra.mxu0 %v1811
        %1984 = vmatmul.bf16.gmra.mxu0 %v1866
        %v1985 = vpop.f32.mrf.mxu0
        %v1986 = vadd.f32 %v1852, %v1985
        %v1987 = vpop.f32.mrf.mxu0
        %v1988 = vadd.f32 %v1857, %v1987
        %1989 = vdwg.mxu0
        %1990 = vmatpush.bf16.msra.mxu0 0
        %1991 = vmatpush.bf16.msra.mxu0 0
        %1992 = vmatpush.bf16.msra.mxu0 0
        %1993 = vmatpush.bf16.msra.mxu0 %v1890
        %1994 = vmatpush.bf16.msra.mxu0 %v1836
        %1995 = vmatpush.bf16.msra.mxu0 %v1828
        %1996 = vmatpush.bf16.msra.mxu0 %v1820
        %1997 = vmatpush.bf16.msra.mxu0 %v1812
        %1998 = vmatmul.bf16.gmra.mxu0 %v1866
        %v1999 = vpop.f32.mrf.mxu0
        %v2000 = vadd.f32 %v1852, %v1999
        %v2001 = vpop.f32.mrf.mxu0
        %v2002 = vadd.f32 %v1857, %v2001
        %2003 = vdwg.mxu0
        %v2004 = vmax.f32 %v1902, 0.0
        %v2005 = vmax.f32 %v1916, 0.0
        %v2006 = vmax.f32 %v1930, 0.0
        %v2007 = vmax.f32 %v1944, 0.0
        %v2008 = vmax.f32 %v1958, 0.0
        %v2009 = vmax.f32 %v1972, 0.0
        %v2010 = vmax.f32 %v1986, 0.0
        %v2011 = vmax.f32 %v2000, 0.0
        %v2012 = vmax.f32 %v1904, 0.0
        %v2013 = vmax.f32 %v1918, 0.0
        %v2014 = vmax.f32 %v1932, 0.0
        %v2015 = vmax.f32 %v1946, 0.0
        %v2016 = vmax.f32 %v1960, 0.0
        %v2017 = vmax.f32 %v1974, 0.0
        %v2018 = vmax.f32 %v1988, 0.0
        %v2019 = vmax.f32 %v2002, 0.0
        %v2020 = vpack.c.bf16 %v2005, %v2004
        %v2021 = vpack.c.bf16 %v2007, %v2006
        %v2022 = vpack.c.bf16 %v2009, %v2008
        %v2023 = vpack.c.bf16 %v2011, %v2010
        %v2024 = vpack.c.bf16 %v2013, %v2012
        %v2025 = vpack.c.bf16 %v2015, %v2014
        %v2026 = vpack.c.bf16 %v2017, %v2016
        %v2027 = vpack.c.bf16 %v2019, %v2018
        %v2028 = vld [vmem:[%s7] sm:$0xf]
        %v2029 = vld [vmem:[%s7 + $0x4] sm:$0xf]
        %v2030 = vld [vmem:[%s7 + $0x8] sm:$0xf]
        %v2031 = vld [vmem:[%s7 + $0xc] sm:$0xf]
        %v2032 = vld [vmem:[%s7 + $0x10] sm:$0xf]
        %v2033 = vld [vmem:[%s7 + $0x14] sm:$0xf]
        %v2034 = vld [vmem:[%s7 + $0x18] sm:$0xf]
        %v2035 = vld [vmem:[%s7 + $0x1c] sm:$0xf]
        %v2036 = vld [vmem:[%s7 + $0x20] sm:$0xf]
        %v2037 = vld [vmem:[%s7 + $0x24] sm:$0xf]
        %v2038 = vld [vmem:[%s7 + $0x28] sm:$0xf]
        %v2039 = vld [vmem:[%s7 + $0x2c] sm:$0xf]
        %v2040 = vld [vmem:[%s7 + $0x30] sm:$0xf]
        %v2041 = vld [vmem:[%s7 + $0x34] sm:$0xf]
        %v2042 = vld [vmem:[%s7 + $0x38] sm:$0xf]
        %v2043 = vld [vmem:[%s7 + $0x3c] sm:$0xf]
        %v2044 = vld [vmem:[%s7 + $0x40] sm:$0xf]
        %v2045 = vld [vmem:[%s7 + $0x44] sm:$0xf]
        %v2046 = vld [vmem:[%s7 + $0x48] sm:$0xf]
        %v2047 = vld [vmem:[%s7 + $0x4c] sm:$0xf]
        %v2048 = vld [vmem:[%s7 + $0x50] sm:$0xf]
        %v2049 = vld [vmem:[%s7 + $0x54] sm:$0xf]
        %v2050 = vld [vmem:[%s7 + $0x58] sm:$0xf]
        %v2051 = vld [vmem:[%s7 + $0x5c] sm:$0xf]
        %v2052 = vld [vmem:[%s7 + $0x60] sm:$0xf]
        %v2053 = vld [vmem:[%s7 + $0x64] sm:$0xf]
        %v2054 = vld [vmem:[%s7 + $0x68] sm:$0xf]
        %v2055 = vld [vmem:[%s7 + $0x6c] sm:$0xf]
        %v2056 = vld [vmem:[%s7 + $0x70] sm:$0xf]
        %v2057 = vld [vmem:[%s7 + $0x74] sm:$0xf]
        %v2058 = vld [vmem:[%s7 + $0x78] sm:$0xf]
        %v2059 = vld [vmem:[%s7 + $0x7c] sm:$0xf]
        %v2062 = vunpack.c.l.b16 %v2020
        %v2063 = vunpack.c.h.b16 %v2020
        %v2064 = vunpack.c.l.b16 %v2024
        %v2065 = vunpack.c.h.b16 %v2024
        %v2066 = vpack.c.b16 %v2064, %v2062
        %v2067 = vpack.c.b16 %v2065, %v2063
        %v2102 = vunpack.c.l.b16 %v2028
        %v2103 = vunpack.c.l.b16 %v2029
        %v2104 = vunpack.c.l.b16 %v2030
        %v2105 = vunpack.c.l.b16 %v2031
        %v2106 = vunpack.c.l.b16 %v2032
        %v2107 = vunpack.c.l.b16 %v2033
        %v2108 = vunpack.c.l.b16 %v2034
        %v2109 = vunpack.c.l.b16 %v2035
        %v2110 = vunpack.c.l.b16 %v2036
        %v2111 = vunpack.c.l.b16 %v2037
        %v2112 = vunpack.c.l.b16 %v2038
        %v2113 = vunpack.c.l.b16 %v2039
        %v2114 = vunpack.c.l.b16 %v2040
        %v2115 = vunpack.c.l.b16 %v2041
        %v2116 = vunpack.c.l.b16 %v2042
        %v2117 = vunpack.c.l.b16 %v2043
        %v2118 = vunpack.c.l.b16 %v2044
        %v2119 = vunpack.c.l.b16 %v2045
        %v2120 = vunpack.c.l.b16 %v2046
        %v2121 = vunpack.c.l.b16 %v2047
        %v2122 = vunpack.c.l.b16 %v2048
        %v2123 = vunpack.c.l.b16 %v2049
        %v2124 = vunpack.c.l.b16 %v2050
        %v2125 = vunpack.c.l.b16 %v2051
        %v2126 = vunpack.c.l.b16 %v2052
        %v2127 = vunpack.c.l.b16 %v2053
        %v2128 = vunpack.c.l.b16 %v2054
        %v2129 = vunpack.c.l.b16 %v2055
        %v2130 = vunpack.c.l.b16 %v2056
        %v2131 = vunpack.c.l.b16 %v2057
        %v2132 = vunpack.c.l.b16 %v2058
        %v2133 = vunpack.c.l.b16 %v2059
        %v2134 = vpack.c.b16 %v2103, %v2102
        %v2135 = vpack.c.b16 %v2105, %v2104
        %v2136 = vpack.c.b16 %v2107, %v2106
        %v2137 = vpack.c.b16 %v2109, %v2108
        %v2138 = vpack.c.b16 %v2111, %v2110
        %v2139 = vpack.c.b16 %v2113, %v2112
        %v2140 = vpack.c.b16 %v2115, %v2114
        %v2141 = vpack.c.b16 %v2117, %v2116
        %v2142 = vpack.c.b16 %v2119, %v2118
        %v2143 = vpack.c.b16 %v2121, %v2120
        %v2144 = vpack.c.b16 %v2123, %v2122
        %v2145 = vpack.c.b16 %v2125, %v2124
        %v2146 = vpack.c.b16 %v2127, %v2126
        %v2147 = vpack.c.b16 %v2129, %v2128
        %v2148 = vpack.c.b16 %v2131, %v2130
        %v2149 = vpack.c.b16 %v2133, %v2132
        %2166 = vmatpush.bf16.msra.mxu0 %v2141
        %2167 = vmatpush.bf16.msra.mxu0 %v2140
        %2168 = vmatpush.bf16.msra.mxu0 %v2139
        %2169 = vmatpush.bf16.msra.mxu0 %v2138
        %2170 = vmatpush.bf16.msra.mxu0 %v2137
        %2171 = vmatpush.bf16.msra.mxu0 %v2136
        %2172 = vmatpush.bf16.msra.mxu0 %v2135
        %2173 = vmatpush.bf16.msra.mxu0 %v2134
        %2174 = vmatmul.bf16.gmra.mxu0 %v2066
        %v2175 = vpop.f32.mrf.mxu0
        %v2176 = vadd.f32 0.0, %v2175
        %v2177 = vpop.f32.mrf.mxu0
        %v2178 = vadd.f32 0.0, %v2177
        %2179 = vdwg.mxu0
        %2180 = vmatpush.bf16.msra.mxu0 %v2149
        %2181 = vmatpush.bf16.msra.mxu0 %v2148
        %2182 = vmatpush.bf16.msra.mxu0 %v2147
        %2183 = vmatpush.bf16.msra.mxu0 %v2146
        %2184 = vmatpush.bf16.msra.mxu0 %v2145
        %2185 = vmatpush.bf16.msra.mxu0 %v2144
        %2186 = vmatpush.bf16.msra.mxu0 %v2143
        %2187 = vmatpush.bf16.msra.mxu0 %v2142
        %2188 = vmatmul.bf16.gmra.mxu0 %v2067
        %v2189 = vpop.f32.mrf.mxu0
        %v2190 = vadd.f32 %v2176, %v2189
        %v2191 = vpop.f32.mrf.mxu0
        %v2192 = vadd.f32 %v2178, %v2191
        %2193 = vdwg.mxu0
        %v2196 = vunpack.c.l.b16 %v2021
        %v2197 = vunpack.c.h.b16 %v2021
        %v2198 = vunpack.c.l.b16 %v2025
        %v2199 = vunpack.c.h.b16 %v2025
        %v2200 = vpack.c.b16 %v2198, %v2196
        %v2201 = vpack.c.b16 %v2199, %v2197
        %2204 = vmatpush.bf16.msra.mxu0 %v2141
        %2205 = vmatpush.bf16.msra.mxu0 %v2140
        %2206 = vmatpush.bf16.msra.mxu0 %v2139
        %2207 = vmatpush.bf16.msra.mxu0 %v2138
        %2208 = vmatpush.bf16.msra.mxu0 %v2137
        %2209 = vmatpush.bf16.msra.mxu0 %v2136
        %2210 = vmatpush.bf16.msra.mxu0 %v2135
        %2211 = vmatpush.bf16.msra.mxu0 %v2134
        %2212 = vmatmul.bf16.gmra.mxu0 %v2200
        %v2213 = vpop.f32.mrf.mxu0
        %v2214 = vadd.f32 0.0, %v2213
        %v2215 = vpop.f32.mrf.mxu0
        %v2216 = vadd.f32 0.0, %v2215
        %2217 = vdwg.mxu0
        %2218 = vmatpush.bf16.msra.mxu0 %v2149
        %2219 = vmatpush.bf16.msra.mxu0 %v2148
        %2220 = vmatpush.bf16.msra.mxu0 %v2147
        %2221 = vmatpush.bf16.msra.mxu0 %v2146
        %2222 = vmatpush.bf16.msra.mxu0 %v2145
        %2223 = vmatpush.bf16.msra.mxu0 %v2144
        %2224 = vmatpush.bf16.msra.mxu0 %v2143
        %2225 = vmatpush.bf16.msra.mxu0 %v2142
        %2226 = vmatmul.bf16.gmra.mxu0 %v2201
        %v2227 = vpop.f32.mrf.mxu0
        %v2228 = vadd.f32 %v2214, %v2227
        %v2229 = vpop.f32.mrf.mxu0
        %v2230 = vadd.f32 %v2216, %v2229
        %2231 = vdwg.mxu0
        %v2234 = vunpack.c.l.b16 %v2022
        %v2235 = vunpack.c.h.b16 %v2022
        %v2236 = vunpack.c.l.b16 %v2026
        %v2237 = vunpack.c.h.b16 %v2026
        %v2238 = vpack.c.b16 %v2236, %v2234
        %v2239 = vpack.c.b16 %v2237, %v2235
        %2242 = vmatpush.bf16.msra.mxu0 %v2141
        %2243 = vmatpush.bf16.msra.mxu0 %v2140
        %2244 = vmatpush.bf16.msra.mxu0 %v2139
        %2245 = vmatpush.bf16.msra.mxu0 %v2138
        %2246 = vmatpush.bf16.msra.mxu0 %v2137
        %2247 = vmatpush.bf16.msra.mxu0 %v2136
        %2248 = vmatpush.bf16.msra.mxu0 %v2135
        %2249 = vmatpush.bf16.msra.mxu0 %v2134
        %2250 = vmatmul.bf16.gmra.mxu0 %v2238
        %v2251 = vpop.f32.mrf.mxu0
        %v2252 = vadd.f32 0.0, %v2251
        %v2253 = vpop.f32.mrf.mxu0
        %v2254 = vadd.f32 0.0, %v2253
        %2255 = vdwg.mxu0
        %2256 = vmatpush.bf16.msra.mxu0 %v2149
        %2257 = vmatpush.bf16.msra.mxu0 %v2148
        %2258 = vmatpush.bf16.msra.mxu0 %v2147
        %2259 = vmatpush.bf16.msra.mxu0 %v2146
        %2260 = vmatpush.bf16.msra.mxu0 %v2145
        %2261 = vmatpush.bf16.msra.mxu0 %v2144
        %2262 = vmatpush.bf16.msra.mxu0 %v2143
        %2263 = vmatpush.bf16.msra.mxu0 %v2142
        %2264 = vmatmul.bf16.gmra.mxu0 %v2239
        %v2265 = vpop.f32.mrf.mxu0
        %v2266 = vadd.f32 %v2252, %v2265
        %v2267 = vpop.f32.mrf.mxu0
        %v2268 = vadd.f32 %v2254, %v2267
        %2269 = vdwg.mxu0
        %v2272 = vunpack.c.l.b16 %v2023
        %v2273 = vunpack.c.h.b16 %v2023
        %v2274 = vunpack.c.l.b16 %v2027
        %v2275 = vunpack.c.h.b16 %v2027
        %v2276 = vpack.c.b16 %v2274, %v2272
        %v2277 = vpack.c.b16 %v2275, %v2273
        %2280 = vmatpush.bf16.msra.mxu0 %v2141
        %2281 = vmatpush.bf16.msra.mxu0 %v2140
        %2282 = vmatpush.bf16.msra.mxu0 %v2139
        %2283 = vmatpush.bf16.msra.mxu0 %v2138
        %2284 = vmatpush.bf16.msra.mxu0 %v2137
        %2285 = vmatpush.bf16.msra.mxu0 %v2136
        %2286 = vmatpush.bf16.msra.mxu0 %v2135
        %2287 = vmatpush.bf16.msra.mxu0 %v2134
        %2288 = vmatmul.bf16.gmra.mxu0 %v2276
        %v2289 = vpop.f32.mrf.mxu0
        %v2290 = vadd.f32 0.0, %v2289
        %v2291 = vpop.f32.mrf.mxu0
        %v2292 = vadd.f32 0.0, %v2291
        %2293 = vdwg.mxu0
        %2294 = vmatpush.bf16.msra.mxu0 %v2149
        %2295 = vmatpush.bf16.msra.mxu0 %v2148
        %2296 = vmatpush.bf16.msra.mxu0 %v2147
        %2297 = vmatpush.bf16.msra.mxu0 %v2146
        %2298 = vmatpush.bf16.msra.mxu0 %v2145
        %2299 = vmatpush.bf16.msra.mxu0 %v2144
        %2300 = vmatpush.bf16.msra.mxu0 %v2143
        %2301 = vmatpush.bf16.msra.mxu0 %v2142
        %2302 = vmatmul.bf16.gmra.mxu0 %v2277
        %v2303 = vpop.f32.mrf.mxu0
        %v2304 = vadd.f32 %v2290, %v2303
        %v2305 = vpop.f32.mrf.mxu0
        %v2306 = vadd.f32 %v2292, %v2305
        %2307 = vdwg.mxu0
        %2310 = vrot.lane.b32.xlu0 %v2228, 64
        %v2311 = vpop.permute.xlu0 %2310
        %2312 = vrot.lane.b32.xlu0 %v2230, 64
        %v2313 = vpop.permute.xlu0 %2312
        %2318 = vrot.lane.b32.xlu0 %v2304, 64
        %v2319 = vpop.permute.xlu0 %2318
        %2320 = vrot.lane.b32.xlu0 %v2306, 64
        %v2321 = vpop.permute.xlu0 %2320
        %vm2324 = vcmask 523264
        %v2325 = vsel %vm2324, %v2190, %v2311
        %v2326 = vsel %vm2324, %v2192, %v2313
        %v2327 = vsel %vm2324, %v2266, %v2319
        %v2328 = vsel %vm2324, %v2268, %v2321
        %v2329 = vld [vmem:[%s8] sm:$0xff]
        %v2330 = vld [vmem:[%s8 + $0x8] sm:$0xff]
        %v2331 = vld [vmem:[%s8 + $0x10] sm:$0x1]
        %v2332 = vld [vmem:[%s8 + $0x18] sm:$0x1]
        %2333 = vrot.lane.b32.xlu0 %v2325, 9
        %v2334 = vpop.permute.xlu0 %2333
        %2335 = vrot.lane.b32.xlu0 %v2326, 9
        %v2336 = vpop.permute.xlu0 %2335
        %2337 = vrot.lane.b32.xlu0 %v2327, 9
        %v2338 = vpop.permute.xlu0 %2337
        %2339 = vrot.lane.b32.xlu0 %v2328, 9
        %v2340 = vpop.permute.xlu0 %2339
        %vm2341 = vcmp.lt.s32.totalorder %v768, 9
        %v2342 = vsel %vm2341, %v2334, %v2338
        %v2343 = vsel %vm2341, %v2336, %v2340
        %v2344 = vsel %vm2341, %v2338, %v2334
        %v2345 = vsel %vm2341, %v2340, %v2336
        %v2346 = vperm.slane %v2329, 0
        %v2347 = vperm.slane %v2330, 0
        %v2348 = vmul.f32 %v2344, %v2346
        %v2349 = vmul.f32 %v2342, %v2347
        %v2350 = vmul.f32 %v2345, %v2346
        %v2351 = vmul.f32 %v2343, %v2347
        %2352 = vrot.lane.b32.xlu0 %v2325, 8
        %v2353 = vpop.permute.xlu0 %2352
        %2354 = vrot.lane.b32.xlu0 %v2326, 8
        %v2355 = vpop.permute.xlu0 %2354
        %2356 = vrot.lane.b32.xlu0 %v2327, 8
        %v2357 = vpop.permute.xlu0 %2356
        %2358 = vrot.lane.b32.xlu0 %v2328, 8
        %v2359 = vpop.permute.xlu0 %2358
        %vm2360 = vcmp.lt.s32.totalorder %v768, 8
        %v2361 = vsel %vm2360, %v2353, %v2357
        %v2362 = vsel %vm2360, %v2355, %v2359
        %v2363 = vsel %vm2360, %v2357, %v2353
        %v2364 = vsel %vm2360, %v2359, %v2355
        %v2365 = vperm.slane %v2329, 1
        %v2366 = vperm.slane %v2330, 1
        %v2367 = vmul.f32 %v2363, %v2365
        %v2368 = vmul.f32 %v2361, %v2366
        %v2369 = vmul.f32 %v2364, %v2365
        %v2370 = vmul.f32 %v2362, %v2366
        %2371 = vrot.lane.b32.xlu0 %v2325, 7
        %v2372 = vpop.permute.xlu0 %2371
        %2373 = vrot.lane.b32.xlu0 %v2326, 7
        %v2374 = vpop.permute.xlu0 %2373
        %2375 = vrot.lane.b32.xlu0 %v2327, 7
        %v2376 = vpop.permute.xlu0 %2375
        %2377 = vrot.lane.b32.xlu0 %v2328, 7
        %v2378 = vpop.permute.xlu0 %2377
        %vm2379 = vcmp.lt.s32.totalorder %v768, 7
        %v2380 = vsel %vm2379, %v2372, %v2376
        %v2381 = vsel %vm2379, %v2374, %v2378
        %v2382 = vsel %vm2379, %v2376, %v2372
        %v2383 = vsel %vm2379, %v2378, %v2374
        %v2384 = vperm.slane %v2329, 2
        %v2385 = vperm.slane %v2330, 2
        %v2386 = vmul.f32 %v2382, %v2384
        %v2387 = vmul.f32 %v2380, %v2385
        %v2388 = vmul.f32 %v2383, %v2384
        %v2389 = vmul.f32 %v2381, %v2385
        %2390 = vrot.lane.b32.xlu0 %v2325, 1
        %v2391 = vpop.permute.xlu0 %2390
        %2392 = vrot.lane.b32.xlu0 %v2326, 1
        %v2393 = vpop.permute.xlu0 %2392
        %2394 = vrot.lane.b32.xlu0 %v2327, 1
        %v2395 = vpop.permute.xlu0 %2394
        %2396 = vrot.lane.b32.xlu0 %v2328, 1
        %v2397 = vpop.permute.xlu0 %2396
        %v2398 = vsel %vm892, %v2391, %v2395
        %v2399 = vsel %vm892, %v2393, %v2397
        %v2400 = vsel %vm892, %v2395, %v2391
        %v2401 = vsel %vm892, %v2397, %v2393
        %v2402 = vperm.slane %v2329, 3
        %v2403 = vperm.slane %v2330, 3
        %v2404 = vmul.f32 %v2400, %v2402
        %v2405 = vmul.f32 %v2398, %v2403
        %v2406 = vmul.f32 %v2401, %v2402
        %v2407 = vmul.f32 %v2399, %v2403
        %2408 = vrot.lane.b32.xlu0 %v2325, 127
        %v2409 = vpop.permute.xlu0 %2408
        %2410 = vrot.lane.b32.xlu0 %v2326, 127
        %v2411 = vpop.permute.xlu0 %2410
        %2412 = vrot.lane.b32.xlu0 %v2327, 127
        %v2413 = vpop.permute.xlu0 %2412
        %2414 = vrot.lane.b32.xlu0 %v2328, 127
        %v2415 = vpop.permute.xlu0 %2414
        %v2416 = vsel %vm933, %v2409, %v2413
        %v2417 = vsel %vm933, %v2411, %v2415
        %v2418 = vsel %vm933, %v2413, %v2409
        %v2419 = vsel %vm933, %v2415, %v2411
        %v2420 = vperm.slane %v2329, 5
        %v2421 = vperm.slane %v2330, 5
        %v2422 = vmul.f32 %v2416, %v2420
        %v2423 = vmul.f32 %v2418, %v2421
        %v2424 = vmul.f32 %v2417, %v2420
        %v2425 = vmul.f32 %v2419, %v2421
        %2426 = vrot.lane.b32.xlu0 %v2325, 121
        %v2427 = vpop.permute.xlu0 %2426
        %2428 = vrot.lane.b32.xlu0 %v2326, 121
        %v2429 = vpop.permute.xlu0 %2428
        %2430 = vrot.lane.b32.xlu0 %v2327, 121
        %v2431 = vpop.permute.xlu0 %2430
        %2432 = vrot.lane.b32.xlu0 %v2328, 121
        %v2433 = vpop.permute.xlu0 %2432
        %vm2434 = vcmp.lt.s32.totalorder %v768, 121
        %v2435 = vsel %vm2434, %v2427, %v2431
        %v2436 = vsel %vm2434, %v2429, %v2433
        %v2437 = vsel %vm2434, %v2431, %v2427
        %v2438 = vsel %vm2434, %v2433, %v2429
        %v2439 = vperm.slane %v2329, 6
        %v2440 = vperm.slane %v2330, 6
        %v2441 = vmul.f32 %v2435, %v2439
        %v2442 = vmul.f32 %v2437, %v2440
        %v2443 = vmul.f32 %v2436, %v2439
        %v2444 = vmul.f32 %v2438, %v2440
        %2445 = vrot.lane.b32.xlu0 %v2325, 120
        %v2446 = vpop.permute.xlu0 %2445
        %2447 = vrot.lane.b32.xlu0 %v2326, 120
        %v2448 = vpop.permute.xlu0 %2447
        %2449 = vrot.lane.b32.xlu0 %v2327, 120
        %v2450 = vpop.permute.xlu0 %2449
        %2451 = vrot.lane.b32.xlu0 %v2328, 120
        %v2452 = vpop.permute.xlu0 %2451
        %vm2453 = vcmp.lt.s32.totalorder %v768, 120
        %v2454 = vsel %vm2453, %v2446, %v2450
        %v2455 = vsel %vm2453, %v2448, %v2452
        %v2456 = vsel %vm2453, %v2450, %v2446
        %v2457 = vsel %vm2453, %v2452, %v2448
        %v2458 = vperm.slane %v2329, 7
        %v2459 = vperm.slane %v2330, 7
        %v2460 = vmul.f32 %v2454, %v2458
        %v2461 = vmul.f32 %v2456, %v2459
        %v2462 = vmul.f32 %v2455, %v2458
        %v2463 = vmul.f32 %v2457, %v2459
        %2464 = vrot.lane.b32.xlu0 %v2325, 119
        %v2465 = vpop.permute.xlu0 %2464
        %2466 = vrot.lane.b32.xlu0 %v2326, 119
        %v2467 = vpop.permute.xlu0 %2466
        %2468 = vrot.lane.b32.xlu0 %v2327, 119
        %v2469 = vpop.permute.xlu0 %2468
        %2470 = vrot.lane.b32.xlu0 %v2328, 119
        %v2471 = vpop.permute.xlu0 %2470
        %vm2472 = vcmp.lt.s32.totalorder %v768, 119
        %v2473 = vsel %vm2472, %v2465, %v2469
        %v2474 = vsel %vm2472, %v2467, %v2471
        %v2475 = vsel %vm2472, %v2469, %v2465
        %v2476 = vsel %vm2472, %v2471, %v2467
        %v2477 = vperm.slane %v2331, 0
        %v2478 = vperm.slane %v2332, 0
        %v2479 = vmul.f32 %v2473, %v2477
        %v2480 = vmul.f32 %v2475, %v2478
        %v2481 = vmul.f32 %v2474, %v2477
        %v2482 = vmul.f32 %v2476, %v2478
        %v2483 = vpack.c.bf16 %v2350, %v2348
        %v2484 = vpack.c.bf16 %v2351, %v2349
        %v2485 = vpack.c.bf16 %v2369, %v2367
        %v2486 = vpack.c.bf16 %v2370, %v2368
        %v2487 = vpack.c.bf16 %v2388, %v2386
        %v2488 = vpack.c.bf16 %v2389, %v2387
        %v2489 = vpack.c.bf16 %v2406, %v2404
        %v2490 = vpack.c.bf16 %v2407, %v2405
        %v2491 = vpack.c.bf16 %v2326, %v2325
        %v2492 = vpack.c.bf16 %v2328, %v2327
        %v2493 = vpack.c.bf16 %v2424, %v2422
        %v2494 = vpack.c.bf16 %v2425, %v2423
        %v2495 = vpack.c.bf16 %v2443, %v2441
        %v2496 = vpack.c.bf16 %v2444, %v2442
        %v2497 = vpack.c.bf16 %v2462, %v2460
        %v2498 = vpack.c.bf16 %v2463, %v2461
        %v2499 = vpack.c.bf16 %v2481, %v2479
        %v2500 = vpack.c.bf16 %v2482, %v2480
        %v2501 = vld [vmem:[%s9] sm:$0xff]
        %v2502 = vld [vmem:[%s9 + $0x8] sm:$0xff]
        %v2503 = vld [vmem:[%s9 + $0x10] sm:$0xff]
        %v2504 = vld [vmem:[%s9 + $0x18] sm:$0xff]
        %v2505 = vld [vmem:[%s10] sm:$0xff]
        %v2506 = vld [vmem:[%s10 + $0x8] sm:$0xff]
        %v2507 = vld [vmem:[%s10 + $0x10] sm:$0xff]
        %v2508 = vld [vmem:[%s10 + $0x18] sm:$0xff]
        %2510 = vset.pattern.permute.xlu0 0
        %2511 = vperm.xlu0 %2510, %v2505
        %v2512 = vpop.permute.xlu0 %2511
        %2515 = vset.pattern.permute.xlu0 0
        %2516 = vperm.xlu0 %2515, %v2506
        %v2517 = vpop.permute.xlu0 %2516
        %2520 = vset.pattern.permute.xlu0 0
        %2521 = vperm.xlu0 %2520, %v2507
        %v2522 = vpop.permute.xlu0 %2521
        %2525 = vset.pattern.permute.xlu0 0
        %2526 = vperm.xlu0 %2525, %v2508
        %v2527 = vpop.permute.xlu0 %2526
        %v2533 = vunpack.c.l.b16 %v2501
        %v2534 = vunpack.c.h.b16 %v2501
        %v2535 = vunpack.c.l.b16 %v2502
        %v2536 = vunpack.c.h.b16 %v2502
        %v2537 = vunpack.c.l.b16 %v2503
        %v2538 = vunpack.c.h.b16 %v2503
        %v2539 = vunpack.c.l.b16 %v2504
        %v2540 = vunpack.c.h.b16 %v2504
        %v2541 = vpack.c.b16 %v2535, %v2533
        %v2542 = vpack.c.b16 %v2536, %v2534
        %v2543 = vpack.c.b16 %v2539, %v2537
        %v2544 = vpack.c.b16 %v2540, %v2538
        %vm2547 = vcmask 130048
        %v2549 = vsel %vm2547, %v2542, 0
        %v2552 = vsel %vm2547, %v2544, 0
        %2554 = vmatpush.bf16.msra.mxu0 %v2497
        %2555 = vmatpush.bf16.msra.mxu0 %v2495
        %2556 = vmatpush.bf16.msra.mxu0 %v2493
        %2557 = vmatpush.bf16.msra.mxu0 %v2491
        %2558 = vmatpush.bf16.msra.mxu0 %v2489
        %2559 = vmatpush.bf16.msra.mxu0 %v2487
        %2560 = vmatpush.bf16.msra.mxu0 %v2485
        %2561 = vmatpush.bf16.msra.mxu0 %v2483
        %2562 = vmatmul.bf16.gmra.mxu0 %v2541
        %v2563 = vpop.f32.mrf.mxu0
        %v2564 = vadd.f32 %v2512, %v2563
        %v2565 = vpop.f32.mrf.mxu0
        %v2566 = vadd.f32 %v2517, %v2565
        %2567 = vmatmul.bf16.gmra.mxu0 %v2543
        %v2568 = vpop.f32.mrf.mxu0
        %v2569 = vadd.f32 %v2522, %v2568
        %v2570 = vpop.f32.mrf.mxu0
        %v2571 = vadd.f32 %v2527, %v2570
        %2572 = vdwg.mxu0
        %2573 = vmatpush.bf16.msra.mxu0 0
        %2574 = vmatpush.bf16.msra.mxu0 0
        %2575 = vmatpush.bf16.msra.mxu0 0
        %2576 = vmatpush.bf16.msra.mxu0 0
        %2577 = vmatpush.bf16.msra.mxu0 0
        %2578 = vmatpush.bf16.msra.mxu0 0
        %2579 = vmatpush.bf16.msra.mxu0 0
        %2580 = vmatpush.bf16.msra.mxu0 %v2499
        %2581 = vmatmul.bf16.gmra.mxu0 %v2549
        %v2582 = vpop.f32.mrf.mxu0
        %v2583 = vadd.f32 %v2564, %v2582
        %v2584 = vpop.f32.mrf.mxu0
        %v2585 = vadd.f32 %v2566, %v2584
        %2586 = vmatmul.bf16.gmra.mxu0 %v2552
        %v2587 = vpop.f32.mrf.mxu0
        %v2588 = vadd.f32 %v2569, %v2587
        %v2589 = vpop.f32.mrf.mxu0
        %v2590 = vadd.f32 %v2571, %v2589
        %2591 = vdwg.mxu0
        %2592 = vmatpush.bf16.msra.mxu0 %v2498
        %2593 = vmatpush.bf16.msra.mxu0 %v2496
        %2594 = vmatpush.bf16.msra.mxu0 %v2494
        %2595 = vmatpush.bf16.msra.mxu0 %v2492
        %2596 = vmatpush.bf16.msra.mxu0 %v2490
        %2597 = vmatpush.bf16.msra.mxu0 %v2488
        %2598 = vmatpush.bf16.msra.mxu0 %v2486
        %2599 = vmatpush.bf16.msra.mxu0 %v2484
        %2600 = vmatmul.bf16.gmra.mxu0 %v2541
        %v2601 = vpop.f32.mrf.mxu0
        %v2602 = vadd.f32 %v2512, %v2601
        %v2603 = vpop.f32.mrf.mxu0
        %v2604 = vadd.f32 %v2517, %v2603
        %2605 = vmatmul.bf16.gmra.mxu0 %v2543
        %v2606 = vpop.f32.mrf.mxu0
        %v2607 = vadd.f32 %v2522, %v2606
        %v2608 = vpop.f32.mrf.mxu0
        %v2609 = vadd.f32 %v2527, %v2608
        %2610 = vdwg.mxu0
        %2611 = vmatpush.bf16.msra.mxu0 0
        %2612 = vmatpush.bf16.msra.mxu0 0
        %2613 = vmatpush.bf16.msra.mxu0 0
        %2614 = vmatpush.bf16.msra.mxu0 0
        %2615 = vmatpush.bf16.msra.mxu0 0
        %2616 = vmatpush.bf16.msra.mxu0 0
        %2617 = vmatpush.bf16.msra.mxu0 0
        %2618 = vmatpush.bf16.msra.mxu0 %v2500
        %2619 = vmatmul.bf16.gmra.mxu0 %v2549
        %v2620 = vpop.f32.mrf.mxu0
        %v2621 = vadd.f32 %v2602, %v2620
        %v2622 = vpop.f32.mrf.mxu0
        %v2623 = vadd.f32 %v2604, %v2622
        %2624 = vmatmul.bf16.gmra.mxu0 %v2552
        %v2625 = vpop.f32.mrf.mxu0
        %v2626 = vadd.f32 %v2607, %v2625
        %v2627 = vpop.f32.mrf.mxu0
        %v2628 = vadd.f32 %v2609, %v2627
        %2629 = vdwg.mxu0
        %v2630 = vmax.f32 %v2583, 0.0
        %v2631 = vmax.f32 %v2621, 0.0
        %v2632 = vmax.f32 %v2585, 0.0
        %v2633 = vmax.f32 %v2623, 0.0
        %v2634 = vmax.f32 %v2588, 0.0
        %v2635 = vmax.f32 %v2626, 0.0
        %v2636 = vmax.f32 %v2590, 0.0
        %v2637 = vmax.f32 %v2628, 0.0
        %v2638 = vpack.c.bf16 %v2631, %v2630
        %v2639 = vpack.c.bf16 %v2633, %v2632
        %v2640 = vpack.c.bf16 %v2635, %v2634
        %v2641 = vpack.c.bf16 %v2637, %v2636
        %v2642 = vld [vmem:[%s11] sm:$0xf]
        %v2643 = vld [vmem:[%s11 + $0x4] sm:$0xf]
        %v2644 = vld [vmem:[%s11 + $0x8] sm:$0xf]
        %v2645 = vld [vmem:[%s11 + $0xc] sm:$0xf]
        %v2646 = vld [vmem:[%s11 + $0x10] sm:$0xf]
        %v2647 = vld [vmem:[%s11 + $0x14] sm:$0xf]
        %v2648 = vld [vmem:[%s11 + $0x18] sm:$0xf]
        %v2649 = vld [vmem:[%s11 + $0x1c] sm:$0xf]
        %v2654 = vunpack.c.l.b16 %v2638
        %v2655 = vunpack.c.l.b16 %v2639
        %v2656 = vunpack.c.l.b16 %v2640
        %v2657 = vunpack.c.l.b16 %v2641
        %v2658 = vpack.c.b16 %v2655, %v2654
        %v2659 = vpack.c.b16 %v2657, %v2656
        %v2668 = vunpack.c.l.b16 %v2642
        %v2669 = vunpack.c.l.b16 %v2643
        %v2670 = vunpack.c.l.b16 %v2644
        %v2671 = vunpack.c.l.b16 %v2645
        %v2672 = vunpack.c.l.b16 %v2646
        %v2673 = vunpack.c.l.b16 %v2647
        %v2674 = vunpack.c.l.b16 %v2648
        %v2675 = vunpack.c.l.b16 %v2649
        %v2676 = vpack.c.b16 %v2669, %v2668
        %v2677 = vpack.c.b16 %v2671, %v2670
        %v2678 = vpack.c.b16 %v2673, %v2672
        %v2679 = vpack.c.b16 %v2675, %v2674
        %v2685 = vsel %vm2324, %v2658, 0
        %v2688 = vsel %vm2324, %v2659, 0
        %2690 = vmatpush.bf16.msra.mxu0 0
        %2691 = vmatpush.bf16.msra.mxu0 0
        %2692 = vmatpush.bf16.msra.mxu0 0
        %2693 = vmatpush.bf16.msra.mxu0 0
        %2694 = vmatpush.bf16.msra.mxu0 %v2679
        %2695 = vmatpush.bf16.msra.mxu0 %v2678
        %2696 = vmatpush.bf16.msra.mxu0 %v2677
        %2697 = vmatpush.bf16.msra.mxu0 %v2676
        %2698 = vmatmul.bf16.gmra.mxu0 %v2685
        %v2699 = vpop.f32.mrf.mxu0
        %v2700 = vadd.f32 0.0, %v2699
        %v2701 = vpop.f32.mrf.mxu0
        %v2702 = vadd.f32 0.0, %v2701
        %2703 = vmatmul.bf16.gmra.mxu0 %v2688
        %v2704 = vpop.f32.mrf.mxu0
        %v2705 = vadd.f32 0.0, %v2704
        %v2706 = vpop.f32.mrf.mxu0
        %v2707 = vadd.f32 0.0, %v2706
        %2708 = vdwg.mxu0
        %2709 = vrot.lane.b32.xlu0 %v2658, 64
        %v2710 = vpop.permute.xlu0 %2709
        %2711 = vrot.lane.b32.xlu0 %v2659, 64
        %v2712 = vpop.permute.xlu0 %2711
        %v2714 = vsel %vm2324, %v2710, 0
        %v2717 = vsel %vm2324, %v2712, 0
        %2719 = vmatpush.bf16.msra.mxu0 0
        %2720 = vmatpush.bf16.msra.mxu0 0
        %2721 = vmatpush.bf16.msra.mxu0 0
        %2722 = vmatpush.bf16.msra.mxu0 0
        %2723 = vmatpush.bf16.msra.mxu0 %v2679
        %2724 = vmatpush.bf16.msra.mxu0 %v2678
        %2725 = vmatpush.bf16.msra.mxu0 %v2677
        %2726 = vmatpush.bf16.msra.mxu0 %v2676
        %2727 = vmatmul.bf16.gmra.mxu0 %v2714
        %v2728 = vpop.f32.mrf.mxu0
        %v2729 = vadd.f32 0.0, %v2728
        %v2730 = vpop.f32.mrf.mxu0
        %v2731 = vadd.f32 0.0, %v2730
        %2732 = vmatmul.bf16.gmra.mxu0 %v2717
        %v2733 = vpop.f32.mrf.mxu0
        %v2734 = vadd.f32 0.0, %v2733
        %v2735 = vpop.f32.mrf.mxu0
        %v2736 = vadd.f32 0.0, %v2735
        %2737 = vdwg.mxu0
        %v2738 = vunpack.c.h.b16 %v2638
        %v2739 = vunpack.c.h.b16 %v2639
        %v2740 = vunpack.c.h.b16 %v2640
        %v2741 = vunpack.c.h.b16 %v2641
        %v2742 = vpack.c.b16 %v2739, %v2738
        %v2743 = vpack.c.b16 %v2741, %v2740
        %v2745 = vsel %vm2324, %v2742, 0
        %v2748 = vsel %vm2324, %v2743, 0
        %2750 = vmatpush.bf16.msra.mxu0 0
        %2751 = vmatpush.bf16.msra.mxu0 0
        %2752 = vmatpush.bf16.msra.mxu0 0
        %2753 = vmatpush.bf16.msra.mxu0 0
        %2754 = vmatpush.bf16.msra.mxu0 %v2679
        %2755 = vmatpush.bf16.msra.mxu0 %v2678
        %2756 = vmatpush.bf16.msra.mxu0 %v2677
        %2757 = vmatpush.bf16.msra.mxu0 %v2676
        %2758 = vmatmul.bf16.gmra.mxu0 %v2745
        %v2759 = vpop.f32.mrf.mxu0
        %v2760 = vadd.f32 0.0, %v2759
        %v2761 = vpop.f32.mrf.mxu0
        %v2762 = vadd.f32 0.0, %v2761
        %2763 = vmatmul.bf16.gmra.mxu0 %v2748
        %v2764 = vpop.f32.mrf.mxu0
        %v2765 = vadd.f32 0.0, %v2764
        %v2766 = vpop.f32.mrf.mxu0
        %v2767 = vadd.f32 0.0, %v2766
        %2768 = vdwg.mxu0
        %2769 = vrot.lane.b32.xlu0 %v2742, 64
        %v2770 = vpop.permute.xlu0 %2769
        %2771 = vrot.lane.b32.xlu0 %v2743, 64
        %v2772 = vpop.permute.xlu0 %2771
        %v2774 = vsel %vm2324, %v2770, 0
        %v2777 = vsel %vm2324, %v2772, 0
        %2779 = vmatpush.bf16.msra.mxu0 0
        %2780 = vmatpush.bf16.msra.mxu0 0
        %2781 = vmatpush.bf16.msra.mxu0 0
        %2782 = vmatpush.bf16.msra.mxu0 0
        %2783 = vmatpush.bf16.msra.mxu0 %v2679
        %2784 = vmatpush.bf16.msra.mxu0 %v2678
        %2785 = vmatpush.bf16.msra.mxu0 %v2677
        %2786 = vmatpush.bf16.msra.mxu0 %v2676
        %2787 = vmatmul.bf16.gmra.mxu0 %v2774
        %v2788 = vpop.f32.mrf.mxu0
        %v2789 = vadd.f32 0.0, %v2788
        %v2790 = vpop.f32.mrf.mxu0
        %v2791 = vadd.f32 0.0, %v2790
        %2792 = vmatmul.bf16.gmra.mxu0 %v2777
        %v2793 = vpop.f32.mrf.mxu0
        %v2794 = vadd.f32 0.0, %v2793
        %v2795 = vpop.f32.mrf.mxu0
        %v2796 = vadd.f32 0.0, %v2795
        %2797 = vdwg.mxu0
        %2802 = vrot.lane.b32.xlu0 %v2729, 16
        %v2803 = vpop.permute.xlu0 %2802
        %2804 = vrot.lane.b32.xlu0 %v2731, 16
        %v2805 = vpop.permute.xlu0 %2804
        %2806 = vrot.lane.b32.xlu0 %v2734, 16
        %v2807 = vpop.permute.xlu0 %2806
        %2808 = vrot.lane.b32.xlu0 %v2736, 16
        %v2809 = vpop.permute.xlu0 %2808
        %2818 = vrot.lane.b32.xlu0 %v2760, 32
        %v2819 = vpop.permute.xlu0 %2818
        %2820 = vrot.lane.b32.xlu0 %v2762, 32
        %v2821 = vpop.permute.xlu0 %2820
        %2822 = vrot.lane.b32.xlu0 %v2765, 32
        %v2823 = vpop.permute.xlu0 %2822
        %2824 = vrot.lane.b32.xlu0 %v2767, 32
        %v2825 = vpop.permute.xlu0 %2824
        %2834 = vrot.lane.b32.xlu0 %v2789, 48
        %v2835 = vpop.permute.xlu0 %2834
        %2836 = vrot.lane.b32.xlu0 %v2791, 48
        %v2837 = vpop.permute.xlu0 %2836
        %2838 = vrot.lane.b32.xlu0 %v2794, 48
        %v2839 = vpop.permute.xlu0 %2838
        %2840 = vrot.lane.b32.xlu0 %v2796, 48
        %v2841 = vpop.permute.xlu0 %2840
        %v2846 = vsel %vm2547, %v2700, %v2803
        %v2847 = vsel %vm2547, %v2702, %v2805
        %v2848 = vsel %vm2547, %v2705, %v2807
        %v2849 = vsel %vm2547, %v2707, %v2809
        %vm2850 = vcmask 261120
        %v2851 = vsel %vm2850, %v2846, %v2819
        %v2852 = vsel %vm2850, %v2847, %v2821
        %v2853 = vsel %vm2850, %v2848, %v2823
        %v2854 = vsel %vm2850, %v2849, %v2825
        %vm2855 = vcmask 392192
        %v2856 = vsel %vm2855, %v2851, %v2835
        %v2857 = vsel %vm2855, %v2852, %v2837
        %v2858 = vsel %vm2855, %v2853, %v2839
        %v2859 = vsel %vm2855, %v2854, %v2841
        %v2860 = vld [vmem:[%s12] sm:$0xf]
        %v2861 = vld [vmem:[%s12 + $0x4] sm:$0xf]
        %v2862 = vld [vmem:[%s12 + $0x8] sm:$0xf]
        %v2863 = vld [vmem:[%s12 + $0xc] sm:$0xf]
        %v2864 = vpack.c.bf16 %v2857, %v2856
        %v2865 = vpack.c.bf16 %v2859, %v2858
        %v2866 = vld [vmem:[%s13] sm:$0xff]
        %v2867 = vld [vmem:[%s13 + $0x8] sm:$0xff]
        %v2868 = vld [vmem:[%s13 + $0x10] sm:$0xff]
        %v2869 = vld [vmem:[%s13 + $0x18] sm:$0xff]
        %2871 = vset.pattern.permute.xlu0 0
        %2872 = vperm.xlu0 %2871, %v2866
        %v2873 = vpop.permute.xlu0 %2872
        %2876 = vset.pattern.permute.xlu0 0
        %2877 = vperm.xlu0 %2876, %v2867
        %v2878 = vpop.permute.xlu0 %2877
        %2881 = vset.pattern.permute.xlu0 0
        %2882 = vperm.xlu0 %2881, %v2868
        %v2883 = vpop.permute.xlu0 %2882
        %2886 = vset.pattern.permute.xlu0 0
        %2887 = vperm.xlu0 %2886, %v2869
        %v2888 = vpop.permute.xlu0 %2887
        %v2894 = vunpack.c.l.b16 %v2860
        %v2895 = vunpack.c.l.b16 %v2861
        %v2896 = vunpack.c.l.b16 %v2862
        %v2897 = vunpack.c.l.b16 %v2863
        %v2898 = vpack.c.b16 %v2895, %v2894
        %v2899 = vpack.c.b16 %v2897, %v2896
        %v2901 = vsel %vm2850, %v2898, 0
        %v2904 = vsel %vm2850, %v2899, 0
        %2906 = vmatpush.bf16.msra.mxu0 0
        %2907 = vmatpush.bf16.msra.mxu0 0
        %2908 = vmatpush.bf16.msra.mxu0 0
        %2909 = vmatpush.bf16.msra.mxu0 0
        %2910 = vmatpush.bf16.msra.mxu0 0
        %2911 = vmatpush.bf16.msra.mxu0 0
        %2912 = vmatpush.bf16.msra.mxu0 %v2865
        %2913 = vmatpush.bf16.msra.mxu0 %v2864
        %2914 = vmatmul.bf16.gmra.mxu0 %v2901
        %v2915 = vpop.f32.mrf.mxu0
        %v2916 = vadd.f32 %v2873, %v2915
        %v2917 = vpop.f32.mrf.mxu0
        %v2918 = vadd.f32 %v2878, %v2917
        %2919 = vmatmul.bf16.gmra.mxu0 %v2904
        %v2920 = vpop.f32.mrf.mxu0
        %v2921 = vadd.f32 %v2883, %v2920
        %v2922 = vpop.f32.mrf.mxu0
        %v2923 = vadd.f32 %v2888, %v2922
        %2924 = vdwg.mxu0
        %v2925 = vmax.f32 %v2916, 0.0
        %v2926 = vmax.f32 %v2918, 0.0
        %v2927 = vmax.f32 %v2921, 0.0
        %v2928 = vmax.f32 %v2923, 0.0
        %v2929 = vpack.c.bf16 %v2926, %v2925
        %v2930 = vpack.c.bf16 %v2928, %v2927
        %v2931 = vld [vmem:[%s14] sm:$0xf]
        %v2932 = vld [vmem:[%s14 + $0x4] sm:$0xf]
        %v2933 = vld [vmem:[%s14 + $0x8] sm:$0xf]
        %v2934 = vld [vmem:[%s14 + $0xc] sm:$0xf]
        %v2935 = vld [vmem:[%s15] sm:$0xff]
        %v2936 = vld [vmem:[%s15 + $0x8] sm:$0xff]
        %v2937 = vld [vmem:[%s15 + $0x10] sm:$0xff]
        %v2938 = vld [vmem:[%s15 + $0x18] sm:$0xff]
        %2940 = vset.pattern.permute.xlu0 0
        %2941 = vperm.xlu0 %2940, %v2935
        %v2942 = vpop.permute.xlu0 %2941
        %2945 = vset.pattern.permute.xlu0 0
        %2946 = vperm.xlu0 %2945, %v2936
        %v2947 = vpop.permute.xlu0 %2946
        %2950 = vset.pattern.permute.xlu0 0
        %2951 = vperm.xlu0 %2950, %v2937
        %v2952 = vpop.permute.xlu0 %2951
        %2955 = vset.pattern.permute.xlu0 0
        %2956 = vperm.xlu0 %2955, %v2938
        %v2957 = vpop.permute.xlu0 %2956
        %v2963 = vunpack.c.l.b16 %v2931
        %v2964 = vunpack.c.l.b16 %v2932
        %v2965 = vunpack.c.l.b16 %v2933
        %v2966 = vunpack.c.l.b16 %v2934
        %v2967 = vpack.c.b16 %v2964, %v2963
        %v2968 = vpack.c.b16 %v2966, %v2965
        %v2970 = vsel %vm2850, %v2967, 0
        %v2973 = vsel %vm2850, %v2968, 0
        %2975 = vmatpush.bf16.msra.mxu0 0
        %2976 = vmatpush.bf16.msra.mxu0 0
        %2977 = vmatpush.bf16.msra.mxu0 0
        %2978 = vmatpush.bf16.msra.mxu0 0
        %2979 = vmatpush.bf16.msra.mxu0 0
        %2980 = vmatpush.bf16.msra.mxu0 0
        %2981 = vmatpush.bf16.msra.mxu0 %v2930
        %2982 = vmatpush.bf16.msra.mxu0 %v2929
        %2983 = vmatmul.bf16.gmra.mxu0 %v2970
        %v2984 = vpop.f32.mrf.mxu0
        %v2985 = vadd.f32 %v2942, %v2984
        %v2986 = vpop.f32.mrf.mxu0
        %v2987 = vadd.f32 %v2947, %v2986
        %2988 = vmatmul.bf16.gmra.mxu0 %v2973
        %v2989 = vpop.f32.mrf.mxu0
        %v2990 = vadd.f32 %v2952, %v2989
        %v2991 = vpop.f32.mrf.mxu0
        %v2992 = vadd.f32 %v2957, %v2991
        %2993 = vdwg.mxu0
        %v2994 = vmax.f32 %v2985, 0.0
        %v2995 = vmax.f32 %v2987, 0.0
        %v2996 = vmax.f32 %v2990, 0.0
        %v2997 = vmax.f32 %v2992, 0.0
        %v2998 = vpack.c.bf16 %v2995, %v2994
        %v2999 = vpack.c.bf16 %v2997, %v2996
        %3000 = vmatpush.bf16.msra.mxu0 0
        %3001 = vmatpush.bf16.msra.mxu0 0
        %3002 = vmatpush.bf16.msra.mxu0 0
        %3003 = vmatpush.bf16.msra.mxu0 0
        %3004 = vmatpush.bf16.msra.mxu0 0
        %3005 = vmatpush.bf16.msra.mxu0 0
        %3006 = vmatpush.bf16.msra.mxu0 %v2999
        %3007 = vmatpush.bf16.msra.mxu0 %v2998
        %3008 = vmatmul.bf16.gmra.mxu0 %v2970
        %v3009 = vpop.f32.mrf.mxu0
        %v3010 = vadd.f32 %v2942, %v3009
        %v3011 = vpop.f32.mrf.mxu0
        %v3012 = vadd.f32 %v2947, %v3011
        %3013 = vmatmul.bf16.gmra.mxu0 %v2973
        %v3014 = vpop.f32.mrf.mxu0
        %v3015 = vadd.f32 %v2952, %v3014
        %v3016 = vpop.f32.mrf.mxu0
        %v3017 = vadd.f32 %v2957, %v3016
        %3018 = vdwg.mxu0
        %3023 = vrot.lane.b32.xlu0 %v2925, 112
        %v3024 = vpop.permute.xlu0 %3023
        %3025 = vrot.lane.b32.xlu0 %v2926, 112
        %v3026 = vpop.permute.xlu0 %3025
        %3027 = vrot.lane.b32.xlu0 %v2927, 112
        %v3028 = vpop.permute.xlu0 %3027
        %3029 = vrot.lane.b32.xlu0 %v2928, 112
        %v3030 = vpop.permute.xlu0 %3029
        %v3035 = vadd.f32 %v3010, %v3024
        %v3036 = vadd.f32 %v3012, %v3026
        %v3037 = vadd.f32 %v3015, %v3028
        %v3038 = vadd.f32 %v3017, %v3030
        %v3039 = vmax.f32 %v3035, 0.0
        %v3040 = vmax.f32 %v3036, 0.0
        %v3041 = vmax.f32 %v3037, 0.0
        %v3042 = vmax.f32 %v3038, 0.0
        %v3043 = vpack.c.bf16 %v3040, %v3039
        %v3044 = vpack.c.bf16 %v3042, %v3041
        %3045 = vmatpush.bf16.msra.mxu0 0
        %3046 = vmatpush.bf16.msra.mxu0 0
        %3047 = vmatpush.bf16.msra.mxu0 0
        %3048 = vmatpush.bf16.msra.mxu0 0
        %3049 = vmatpush.bf16.msra.mxu0 0
        %3050 = vmatpush.bf16.msra.mxu0 0
        %3051 = vmatpush.bf16.msra.mxu0 %v3044
        %3052 = vmatpush.bf16.msra.mxu0 %v3043
        %3053 = vmatmul.bf16.gmra.mxu0 %v2970
        %v3054 = vpop.f32.mrf.mxu0
        %v3055 = vadd.f32 %v2942, %v3054
        %v3056 = vpop.f32.mrf.mxu0
        %v3057 = vadd.f32 %v2947, %v3056
        %3058 = vmatmul.bf16.gmra.mxu0 %v2973
        %v3059 = vpop.f32.mrf.mxu0
        %v3060 = vadd.f32 %v2952, %v3059
        %v3061 = vpop.f32.mrf.mxu0
        %v3062 = vadd.f32 %v2957, %v3061
        %3063 = vdwg.mxu0
        %3064 = vrot.lane.b32.xlu0 %v2925, 96
        %v3065 = vpop.permute.xlu0 %3064
        %3066 = vrot.lane.b32.xlu0 %v2926, 96
        %v3067 = vpop.permute.xlu0 %3066
        %3068 = vrot.lane.b32.xlu0 %v2927, 96
        %v3069 = vpop.permute.xlu0 %3068
        %3070 = vrot.lane.b32.xlu0 %v2928, 96
        %v3071 = vpop.permute.xlu0 %3070
        %v3076 = vadd.f32 %v3055, %v3065
        %v3077 = vadd.f32 %v3057, %v3067
        %v3078 = vadd.f32 %v3060, %v3069
        %v3079 = vadd.f32 %v3062, %v3071
        %v3080 = vmax.f32 %v3076, 0.0
        %v3081 = vmax.f32 %v3077, 0.0
        %v3082 = vmax.f32 %v3078, 0.0
        %v3083 = vmax.f32 %v3079, 0.0
        %v3084 = vpack.c.bf16 %v3081, %v3080
        %v3085 = vpack.c.bf16 %v3083, %v3082
        %3086 = vmatpush.bf16.msra.mxu0 0
        %3087 = vmatpush.bf16.msra.mxu0 0
        %3088 = vmatpush.bf16.msra.mxu0 0
        %3089 = vmatpush.bf16.msra.mxu0 0
        %3090 = vmatpush.bf16.msra.mxu0 0
        %3091 = vmatpush.bf16.msra.mxu0 0
        %3092 = vmatpush.bf16.msra.mxu0 %v3085
        %3093 = vmatpush.bf16.msra.mxu0 %v3084
        %3094 = vmatmul.bf16.gmra.mxu0 %v2970
        %v3095 = vpop.f32.mrf.mxu0
        %v3096 = vadd.f32 %v2942, %v3095
        %v3097 = vpop.f32.mrf.mxu0
        %v3098 = vadd.f32 %v2947, %v3097
        %3099 = vmatmul.bf16.gmra.mxu0 %v2973
        %v3100 = vpop.f32.mrf.mxu0
        %v3101 = vadd.f32 %v2952, %v3100
        %v3102 = vpop.f32.mrf.mxu0
        %v3103 = vadd.f32 %v2957, %v3102
        %3104 = vdwg.mxu0
        %3105 = vrot.lane.b32.xlu0 %v2925, 80
        %v3106 = vpop.permute.xlu0 %3105
        %3107 = vrot.lane.b32.xlu0 %v2926, 80
        %v3108 = vpop.permute.xlu0 %3107
        %3109 = vrot.lane.b32.xlu0 %v2927, 80
        %v3110 = vpop.permute.xlu0 %3109
        %3111 = vrot.lane.b32.xlu0 %v2928, 80
        %v3112 = vpop.permute.xlu0 %3111
        %v3117 = vadd.f32 %v3096, %v3106
        %v3118 = vadd.f32 %v3098, %v3108
        %v3119 = vadd.f32 %v3101, %v3110
        %v3120 = vadd.f32 %v3103, %v3112
        %v3121 = vmax.f32 %v3117, 0.0
        %v3122 = vmax.f32 %v3118, 0.0
        %v3123 = vmax.f32 %v3119, 0.0
        %v3124 = vmax.f32 %v3120, 0.0
        %3129 = vrot.lane.b32.xlu0 %v3039, 16
        %v3130 = vpop.permute.xlu0 %3129
        %3131 = vrot.lane.b32.xlu0 %v3040, 16
        %v3132 = vpop.permute.xlu0 %3131
        %3133 = vrot.lane.b32.xlu0 %v3041, 16
        %v3134 = vpop.permute.xlu0 %3133
        %3135 = vrot.lane.b32.xlu0 %v3042, 16
        %v3136 = vpop.permute.xlu0 %3135
        %3145 = vrot.lane.b32.xlu0 %v3080, 32
        %v3146 = vpop.permute.xlu0 %3145
        %3147 = vrot.lane.b32.xlu0 %v3081, 32
        %v3148 = vpop.permute.xlu0 %3147
        %3149 = vrot.lane.b32.xlu0 %v3082, 32
        %v3150 = vpop.permute.xlu0 %3149
        %3151 = vrot.lane.b32.xlu0 %v3083, 32
        %v3152 = vpop.permute.xlu0 %3151
        %3161 = vrot.lane.b32.xlu0 %v3121, 48
        %v3162 = vpop.permute.xlu0 %3161
        %3163 = vrot.lane.b32.xlu0 %v3122, 48
        %v3164 = vpop.permute.xlu0 %3163
        %3165 = vrot.lane.b32.xlu0 %v3123, 48
        %v3166 = vpop.permute.xlu0 %3165
        %3167 = vrot.lane.b32.xlu0 %v3124, 48
        %v3168 = vpop.permute.xlu0 %3167
        %v3173 = vsel %vm2547, %v2994, %v3130
        %v3174 = vsel %vm2547, %v2995, %v3132
        %v3175 = vsel %vm2547, %v2996, %v3134
        %v3176 = vsel %vm2547, %v2997, %v3136
        %v3177 = vsel %vm2850, %v3173, %v3146
        %v3178 = vsel %vm2850, %v3174, %v3148
        %v3179 = vsel %vm2850, %v3175, %v3150
        %v3180 = vsel %vm2850, %v3176, %v3152
        %v3181 = vsel %vm2855, %v3177, %v3162
        %v3182 = vsel %vm2855, %v3178, %v3164
        %v3183 = vsel %vm2855, %v3179, %v3166
        %v3184 = vsel %vm2855, %v3180, %v3168
        %3185 = vst.msk [vmem:[%s702] sm:$0xff] %vm2324, %v3181
        %3186 = vst.msk [vmem:[%s702 + $0x8] sm:$0xff] %vm2324, %v3182
        %3187 = vst.msk [vmem:[%s702 + $0x10] sm:$0xff] %vm2324, %v3183
        %3188 = vst.msk [vmem:[%s702 + $0x18] sm:$0xff] %vm2324, %v3184
        %v3189 = vsel %vm2547, %v2994, 0.0
        %3190 = vadd.xlane.f32.xlu0 %v3189
        %v3191 = vpop.xlane.xlu0 %3190
        %v3192 = vsel %vm2547, %v2995, 0.0
        %3193 = vadd.xlane.f32.xlu0 %v3192
        %v3194 = vpop.xlane.xlu0 %3193
        %v3195 = vsel %vm2547, %v2996, 0.0
        %3196 = vadd.xlane.f32.xlu0 %v3195
        %v3197 = vpop.xlane.xlu0 %3196
        %v3198 = vsel %vm2547, %v2997, 0.0
        %3199 = vadd.xlane.f32.xlu0 %v3198
        %v3200 = vpop.xlane.xlu0 %3199
        %v3201 = vmul.f32 %v3191, 0.0625
        %v3202 = vmul.f32 %v3194, 0.0625
        %v3203 = vmul.f32 %v3197, 0.0625
        %v3204 = vmul.f32 %v3200, 0.0625
        %v3205 = vsel %vm2547, %v3039, 0.0
        %3206 = vadd.xlane.f32.xlu0 %v3205
        %v3207 = vpop.xlane.xlu0 %3206
        %v3208 = vsel %vm2547, %v3040, 0.0
        %3209 = vadd.xlane.f32.xlu0 %v3208
        %v3210 = vpop.xlane.xlu0 %3209
        %v3211 = vsel %vm2547, %v3041, 0.0
        %3212 = vadd.xlane.f32.xlu0 %v3211
        %v3213 = vpop.xlane.xlu0 %3212
        %v3214 = vsel %vm2547, %v3042, 0.0
        %3215 = vadd.xlane.f32.xlu0 %v3214
        %v3216 = vpop.xlane.xlu0 %3215
        %v3217 = vmul.f32 %v3207, 0.0625
        %v3218 = vmul.f32 %v3210, 0.0625
        %v3219 = vmul.f32 %v3213, 0.0625
        %v3220 = vmul.f32 %v3216, 0.0625
        %v3221 = vsel %vm2547, %v3080, 0.0
        %3222 = vadd.xlane.f32.xlu0 %v3221
        %v3223 = vpop.xlane.xlu0 %3222
        %v3224 = vsel %vm2547, %v3081, 0.0
        %3225 = vadd.xlane.f32.xlu0 %v3224
        %v3226 = vpop.xlane.xlu0 %3225
        %v3227 = vsel %vm2547, %v3082, 0.0
        %3228 = vadd.xlane.f32.xlu0 %v3227
        %v3229 = vpop.xlane.xlu0 %3228
        %v3230 = vsel %vm2547, %v3083, 0.0
        %3231 = vadd.xlane.f32.xlu0 %v3230
        %v3232 = vpop.xlane.xlu0 %3231
        %v3233 = vmul.f32 %v3223, 0.0625
        %v3234 = vmul.f32 %v3226, 0.0625
        %v3235 = vmul.f32 %v3229, 0.0625
        %v3236 = vmul.f32 %v3232, 0.0625
        %v3237 = vsel %vm2547, %v3121, 0.0
        %3238 = vadd.xlane.f32.xlu0 %v3237
        %v3239 = vpop.xlane.xlu0 %3238
        %v3240 = vsel %vm2547, %v3122, 0.0
        %3241 = vadd.xlane.f32.xlu0 %v3240
        %v3242 = vpop.xlane.xlu0 %3241
        %v3243 = vsel %vm2547, %v3123, 0.0
        %3244 = vadd.xlane.f32.xlu0 %v3243
        %v3245 = vpop.xlane.xlu0 %3244
        %v3246 = vsel %vm2547, %v3124, 0.0
        %3247 = vadd.xlane.f32.xlu0 %v3246
        %v3248 = vpop.xlane.xlu0 %3247
        %v3249 = vmul.f32 %v3239, 0.0625
        %v3250 = vmul.f32 %v3242, 0.0625
        %v3251 = vmul.f32 %v3245, 0.0625
        %v3252 = vmul.f32 %v3248, 0.0625
        %3253 = vxpose.xlu0.b32.start [1/16] %v3201, 128
        %3254 = vxpose.xlu0.b32.cont [2/16] %v3202, 128
        %3255 = vxpose.xlu0.b32.cont [3/16] %v3203, 128
        %3256 = vxpose.xlu0.b32.cont [4/16] %v3204, 128
        %3257 = vxpose.xlu0.b32.cont [5/16] %v3217, 128
        %3258 = vxpose.xlu0.b32.cont [6/16] %v3218, 128
        %3259 = vxpose.xlu0.b32.cont [7/16] %v3219, 128
        %3260 = vxpose.xlu0.b32.cont [8/16] %v3220, 128
        %3261 = vxpose.xlu0.b32.cont [9/16] %v3233, 128
        %3262 = vxpose.xlu0.b32.cont [10/16] %v3234, 128
        %3263 = vxpose.xlu0.b32.cont [11/16] %v3235, 128
        %3264 = vxpose.xlu0.b32.cont [12/16] %v3236, 128
        %3265 = vxpose.xlu0.b32.cont [13/16] %v3249, 128
        %3266 = vxpose.xlu0.b32.cont [14/16] %v3250, 128
        %3267 = vxpose.xlu0.b32.cont [15/16] %v3251, 128
        %3268 = vxpose.xlu0.b32.end [16/16] %v3252, 128
        %v3269 = vpop.trf.xlu0
        %v3270 = vpop.trf.xlu0
        %v3271 = vpop.trf.xlu0
        %v3272 = vpop.trf.xlu0
        %v3273 = vpop.trf.xlu0
        %v3274 = vpop.trf.xlu0
        %v3275 = vpop.trf.xlu0
        %v3276 = vpop.trf.xlu0
        %v3277 = vpop.trf.xlu0
        %v3278 = vpop.trf.xlu0
        %v3279 = vpop.trf.xlu0
        %v3280 = vpop.trf.xlu0
        %v3281 = vpop.trf.xlu0
        %v3282 = vpop.trf.xlu0
        %v3283 = vpop.trf.xlu0
        %v3284 = vpop.trf.xlu0
        %v3285 = vpack.c.bf16 %v3269, %v3269
        %v3286 = vld [vmem:[%s16] sm:$0xf]
        %v3287 = vld [vmem:[%s16 + $0x4] sm:$0xf]
        %v3288 = vld [vmem:[%s16 + $0x8] sm:$0xf]
        %v3289 = vld [vmem:[%s16 + $0xc] sm:$0xf]
        %v3290 = vld [vmem:[%s16 + $0x10] sm:$0xf]
        %v3291 = vld [vmem:[%s16 + $0x14] sm:$0xf]
        %v3292 = vld [vmem:[%s16 + $0x18] sm:$0xf]
        %v3293 = vld [vmem:[%s16 + $0x1c] sm:$0xf]
        %v3294 = vld [vmem:[%s16 + $0x20] sm:$0xf]
        %v3295 = vld [vmem:[%s16 + $0x24] sm:$0xf]
        %v3296 = vld [vmem:[%s16 + $0x28] sm:$0xf]
        %v3297 = vld [vmem:[%s16 + $0x2c] sm:$0xf]
        %v3298 = vld [vmem:[%s16 + $0x30] sm:$0xf]
        %v3299 = vld [vmem:[%s16 + $0x34] sm:$0xf]
        %v3300 = vld [vmem:[%s16 + $0x38] sm:$0xf]
        %v3301 = vld [vmem:[%s16 + $0x3c] sm:$0xf]
        %v3302 = vld [vmem:[%s17] sm:$0x1]
        %v3319 = vunpack.c.l.b16 %v3286
        %v3320 = vunpack.c.l.b16 %v3287
        %v3321 = vunpack.c.l.b16 %v3288
        %v3322 = vunpack.c.l.b16 %v3289
        %v3323 = vunpack.c.l.b16 %v3290
        %v3324 = vunpack.c.l.b16 %v3291
        %v3325 = vunpack.c.l.b16 %v3292
        %v3326 = vunpack.c.l.b16 %v3293
        %v3327 = vunpack.c.l.b16 %v3294
        %v3328 = vunpack.c.l.b16 %v3295
        %v3329 = vunpack.c.l.b16 %v3296
        %v3330 = vunpack.c.l.b16 %v3297
        %v3331 = vunpack.c.l.b16 %v3298
        %v3332 = vunpack.c.l.b16 %v3299
        %v3333 = vunpack.c.l.b16 %v3300
        %v3334 = vunpack.c.l.b16 %v3301
        %v3335 = vpack.c.b16 %v3320, %v3319
        %v3336 = vpack.c.b16 %v3322, %v3321
        %v3337 = vpack.c.b16 %v3324, %v3323
        %v3338 = vpack.c.b16 %v3326, %v3325
        %v3339 = vpack.c.b16 %v3328, %v3327
        %v3340 = vpack.c.b16 %v3330, %v3329
        %v3341 = vpack.c.b16 %v3332, %v3331
        %v3342 = vpack.c.b16 %v3334, %v3333
        %3351 = vmatpush.bf16.msra.mxu0 %v3342
        %3352 = vmatpush.bf16.msra.mxu0 %v3341
        %3353 = vmatpush.bf16.msra.mxu0 %v3340
        %3354 = vmatpush.bf16.msra.mxu0 %v3339
        %3355 = vmatpush.bf16.msra.mxu0 %v3338
        %3356 = vmatpush.bf16.msra.mxu0 %v3337
        %3357 = vmatpush.bf16.msra.mxu0 %v3336
        %3358 = vmatpush.bf16.msra.mxu0 %v3335
        %3359 = vmatmul.bf16.gmra.mxu0 %v3285
        %v3360 = vpop.f32.mrf.mxu0
        %v3361 = vadd.f32 %v3302, %v3360
        %v3362 = vpop.f32.mrf.mxu0
        %3363 = vdwg.mxu0
        %v3364 = vmax.f32 %v3361, 0.0
        %vm3365 = vcmask 516096
        %3366 = vst.msk [vmem:[%s686] sm:$0x1] %vm3365, %v3364
        %v3367 = vpack.c.bf16 %v3364, %v3364
        %v3368 = vld [vmem:[%s18] sm:$0xf]
        %v3369 = vld [vmem:[%s18 + $0x4] sm:$0xf]
        %v3370 = vld [vmem:[%s18 + $0x8] sm:$0xf]
        %v3371 = vld [vmem:[%s18 + $0xc] sm:$0xf]
        %v3372 = vld [vmem:[%s18 + $0x10] sm:$0xf]
        %v3373 = vld [vmem:[%s18 + $0x14] sm:$0xf]
        %v3374 = vld [vmem:[%s18 + $0x18] sm:$0xf]
        %v3375 = vld [vmem:[%s18 + $0x1c] sm:$0xf]
        %v3376 = vld [vmem:[%s19] sm:$0x1]
        %v3385 = vunpack.c.l.b16 %v3368
        %v3386 = vunpack.c.l.b16 %v3369
        %v3387 = vunpack.c.l.b16 %v3370
        %v3388 = vunpack.c.l.b16 %v3371
        %v3389 = vunpack.c.l.b16 %v3372
        %v3390 = vunpack.c.l.b16 %v3373
        %v3391 = vunpack.c.l.b16 %v3374
        %v3392 = vunpack.c.l.b16 %v3375
        %v3393 = vpack.c.b16 %v3386, %v3385
        %v3394 = vpack.c.b16 %v3388, %v3387
        %v3395 = vpack.c.b16 %v3390, %v3389
        %v3396 = vpack.c.b16 %v3392, %v3391
        %v3402 = vsel %vm2324, %v3367, 0
        %3404 = vmatpush.bf16.msra.mxu0 0
        %3405 = vmatpush.bf16.msra.mxu0 0
        %3406 = vmatpush.bf16.msra.mxu0 0
        %3407 = vmatpush.bf16.msra.mxu0 0
        %3408 = vmatpush.bf16.msra.mxu0 %v3396
        %3409 = vmatpush.bf16.msra.mxu0 %v3395
        %3410 = vmatpush.bf16.msra.mxu0 %v3394
        %3411 = vmatpush.bf16.msra.mxu0 %v3393
        %3412 = vmatmul.bf16.gmra.mxu0 %v3402
        %v3413 = vpop.f32.mrf.mxu0
        %v3414 = vadd.f32 %v3376, %v3413
        %v3415 = vpop.f32.mrf.mxu0
        %3416 = vdwg.mxu0
        %vm3417 = vcmask 73728
        %3418 = vst.msk [vmem:[%s692] sm:$0x1] %vm3417, %v3414
        %p3419 = scmp.lt.s32.totalorder %s40, 1
        %s3420 = scalar_select %p3419, %s40, 1
        %s3421 = smul.addr %s3420, 4
        %s3422 = smul.addr %s3421, 8
        %s3423 = scalar_lea.vmem %s20, %s3422
        %s3424 = sand.u32 %s499, 1
        %s3425 = scalar_lea.sflag [#allocation3], %s3424
        %s3426 = sand.u32 %s499, 1
        %s3427 = scalar_lea.vmem [#allocation2], %s3426
        %s3428 = sand.u32 %s525, 1
        %s3429 = scalar_lea.sflag [#allocation5], %s3428
        %s3430 = sand.u32 %s525, 1
        %s3431 = scalar_lea.vmem [#allocation4], %s3430
        // Predicated region
        $region101: #{time_aligned_resnet_forward.1} parent=99 // pred_check
          %p3432 = pneg %p483
        $region102: #{time_aligned_resnet_forward.1} parent=99 // pred_check_branch
          %3434 = sbr.rel (%p3432) target = $region104
        $region103: #{time_aligned_resnet_forward.1} parent=99 // pred_region
          _
        $region104: #{time_aligned_resnet_forward.1} parent=99 // pred_fallthru
          _
        // Predicated region
        $region105: #{time_aligned_resnet_forward.1} parent=99 // pred_check
          %p3435 = pneg %p509
        $region106: #{time_aligned_resnet_forward.1} parent=99 // pred_check_branch
          %3437 = sbr.rel (%p3435) target = $region108
        $region107: #{time_aligned_resnet_forward.1} parent=99 // pred_region
          %3439 = vsyncadd %s3425, 0
          %s3440 = scalar_lea.hbm %s21, %s40
          %s3442 = sshll.u32 %s3427, 4
          %s3443 = int_to_ptr.vmem [resolvable:$true] %s3442
          %s3444 = sshll.u32 %s3440, 4
          %s3445 = int_to_ptr.hbm [resolvable:$true] %s3444
          %3447 = dma.vmem_to_hbm [thread:$0]  %s3443, 16, %s3445, %s3425
        $region108: #{time_aligned_resnet_forward.1} parent=99 // pred_fallthru
          _
        // Predicated region
        $region109: #{time_aligned_resnet_forward.1} parent=99 // pred_check
          %p3448 = pneg %p535
        $region110: #{time_aligned_resnet_forward.1} parent=99 // pred_check_branch
          %3450 = sbr.rel (%p3448) target = $region112
        $region111: #{time_aligned_resnet_forward.1} parent=99 // pred_region
          %3452 = vsyncadd %s3429, 0
          %s3453 = scalar_lea.hbm %s22, %s40
          %s3455 = sshll.u32 %s3431, 4
          %s3456 = int_to_ptr.vmem [resolvable:$true] %s3455
          %s3457 = sshll.u32 %s3453, 4
          %s3458 = int_to_ptr.hbm [resolvable:$true] %s3457
          %3460 = dma.vmem_to_hbm [thread:$0]  %s3456, 16, %s3458, %s3429
        $region112: #{time_aligned_resnet_forward.1} parent=99 // pred_fallthru
          _
      $region100: #{time_aligned_resnet_forward.1} parent=5 // pred_fallthru
        _
      %p3461 = scmp.le.s32.totalorder 2, %s35
      // Predicated region
      $region113: #{time_aligned_resnet_forward.1} parent=5 // pred_check
        %p3462 = pneg %p3461
      $region114: #{time_aligned_resnet_forward.1} parent=5 // pred_check_branch
        %3464 = sbr.rel (%p3462) target = $region116
      $region115: #{time_aligned_resnet_forward.1} parent=5 // pred_region
        %s3465 = ssub.s32 %s35, 2
        // Predicated region
        $region117: #{time_aligned_resnet_forward.1} parent=115 // pred_check
          %p3466 = pneg %p489
        $region118: #{time_aligned_resnet_forward.1} parent=115 // pred_check_branch
          %3468 = sbr.rel (%p3466) target = $region120
        $region119: #{time_aligned_resnet_forward.1} parent=115 // pred_region
          %p3469 = scmp.lt.s32.totalorder %s41, 1
          %s3470 = scalar_select %p3469, %s41, 1
          %s3471 = smul.addr %s3470, 4
          %s3472 = smul.addr %s3471, 8
          %s3473 = scalar_lea.vmem %s20, %s3472
        $region120: #{time_aligned_resnet_forward.1} parent=115 // pred_fallthru
          _
        // Predicated region
        $region121: #{time_aligned_resnet_forward.1} parent=115 // pred_check
          %p3474 = pneg %p515
        $region122: #{time_aligned_resnet_forward.1} parent=115 // pred_check_branch
          %3476 = sbr.rel (%p3474) target = $region124
        $region123: #{time_aligned_resnet_forward.1} parent=115 // pred_region
          %s3477 = sand.u32 %s500, 1
          %s3478 = scalar_lea.sflag [#allocation3], %s3477
          %s3479 = sand.u32 %s500, 1
          %s3480 = scalar_lea.vmem [#allocation2], %s3479
          %3482 = dma.done %s3478, 16
        $region124: #{time_aligned_resnet_forward.1} parent=115 // pred_fallthru
          _
        // Predicated region
        $region125: #{time_aligned_resnet_forward.1} parent=115 // pred_check
          %p3483 = pneg %p541
        $region126: #{time_aligned_resnet_forward.1} parent=115 // pred_check_branch
          %3485 = sbr.rel (%p3483) target = $region128
        $region127: #{time_aligned_resnet_forward.1} parent=115 // pred_region
          %s3486 = sand.u32 %s526, 1
          %s3487 = scalar_lea.sflag [#allocation5], %s3486
          %s3488 = sand.u32 %s526, 1
          %s3489 = scalar_lea.vmem [#allocation4], %s3488
          %3491 = dma.done %s3487, 16
        $region128: #{time_aligned_resnet_forward.1} parent=115 // pred_fallthru
          _
      $region116: #{time_aligned_resnet_forward.1} parent=5 // pred_fallthru
        _
    $region6: #{time_aligned_resnet_forward.1} parent=1 // loop_footer
      %s39 = sadd.s32 1, %s35
    $region7: #{time_aligned_resnet_forward.1} parent=1 // loop_footer_branch
      %34 = sbr.rel target = $region3
    $region8: #{time_aligned_resnet_forward.1} parent=1 // loop_exit
      _
    %3492 = vsyncpa [#allocation3], 1
    %s3493 = scalar_lea.sflag [#allocation3], 1
    %3494 = vsyncpa %s3493, 1
    %3495 = vsyncpa [#allocation5], 1
    %s3496 = scalar_lea.sflag [#allocation5], 1
    %3497 = vsyncpa %s3496, 1

</llo_original>
